<compile_context>
chip_gen: v7x
topology: tpu7x:2x2x1
jax: 0.10.0
libtpu: 0.0.40
codegen_flags: <defaults>
</compile_context>

<pallas_src>
import functools
import math

import jax
import jax.numpy as jnp
from jax.experimental import pallas as pl
from jax.experimental.pallas import tpu as pltpu


def _sde_block_kernel(z0_ref, noise_ref, w1_ref, b1_ref, w2_ref, b2_ref,
                      out_ref, *, n_sde, d_packed):
    w1 = w1_ref[...]                       # [Dp, 4*Dp]   (block-diag drift|diff)
    w2 = w2_ref[...]                       # [4*Dp, 2*Dp] (drift cols | diff cols)
    tb = z0_ref.shape[0]

    # Hoist bias broadcasts out of the step loop (JAX does not CSE broadcast_in_dim).
    b1 = jnp.broadcast_to(b1_ref[...], (tb, w1.shape[1]))
    b2 = jnp.broadcast_to(b2_ref[...], (tb, w2.shape[1]))

    def em_step(z, eps):
        h = jnp.tanh(jnp.dot(z, w1, preferred_element_type=jnp.float32) + b1)
        fg = jnp.dot(h, w2, preferred_element_type=jnp.float32) + b2
        # dt (drift block) and sqrt(dt) (diffusion block) are pre-folded into w2/b2.
        return z + fg[:, :d_packed] + fg[:, d_packed:] * eps

    z = z0_ref[...]
    if n_sde <= 16:
        # Small static trip count -> full unroll (static noise slices, LLO visibility).
        for i in range(n_sde):
            z = em_step(z, noise_ref[:, i, :])
    else:
        # Avoid vreg pressure / code bloat for long chains; keep modest unroll.
        z = jax.lax.fori_loop(
            0, n_sde, lambda i, zc: em_step(zc, noise_ref[:, i, :]), z, unroll=2)
    out_ref[...] = z


def _fuse_params(params, d_lat, pack, dt):
    """Fuse drift/diffusion MLPs, fold EM step constants, lane-pack `pack` rows.

    Layer 1:  block_diag(pack x [W1_drift | W1_diff])          -> [pack*d, pack*4d]
    Layer 2:  rows follow layer-1 hidden order; columns ordered so all drift
              outputs occupy lanes [0, pack*d) and all diffusion outputs occupy
              lanes [pack*d, 2*pack*d).  Drift block scaled by dt, diffusion
              block scaled by sqrt(dt) (so the kernel update is z + f + g*eps).
    """
    (w1d, b1d, w2d, b2d, w1g, b1g, w2g, b2g) = params
    sdt = math.sqrt(dt)
    w2d = w2d * dt
    b2d = b2d * dt
    w2g = w2g * sdt
    b2g = b2g * sdt

    d = d_lat
    h = 2 * d_lat
    w1cat = jnp.concatenate([w1d, w1g], axis=1)          # [d, 4d]
    b1cat = jnp.concatenate([b1d, b1g], axis=1)          # [1, 4d]

    w1p = jnp.zeros((pack * d, pack * 2 * h), jnp.float32)
    for k in range(pack):
        w1p = w1p.at[k * d:(k + 1) * d, k * 2 * h:(k + 1) * 2 * h].set(w1cat)
    b1p = jnp.tile(b1cat, (1, pack))                     # [1, pack*4d]

    w2p = jnp.zeros((pack * 2 * h, 2 * pack * d), jnp.float32)
    for k in range(pack):
        r0 = k * 2 * h
        w2p = w2p.at[r0:r0 + h, k * d:(k + 1) * d].set(w2d)                           # drift
        w2p = w2p.at[r0 + h:r0 + 2 * h, pack * d + k * d:pack * d + (k + 1) * d].set(w2g)  # diffusion
    b2p = jnp.concatenate([jnp.tile(b2d, (1, pack)), jnp.tile(b2g, (1, pack))], axis=1)
    return w1p, b1p, w2p, b2p


def sde_block(z0, params, noise, *, n_sde, t_sde, batch_tile=None):
    """Euler–Maruyama SDE block.

    z0:    [B, d_lat] float32
    noise: [n_sde, B, d_lat] float32 standard normals (one block per EM step)
    batch_tile: optional tile size over the *packed* batch axis (B // pack rows).
    """
    B, d = z0.shape
    assert noise.shape == (n_sde, B, d)
    dt = float(t_sde) / float(n_sde)

    # Lane packing factor: pack `pack` batch rows per 128-lane row when d | 128.
    pack = 128 // d if (d < 128 and 128 % d == 0) else 1
    while pack > 1 and B % pack != 0:
        pack //= 2
    Bp, Dp = B // pack, pack * d

    # Packed layouts: z/out -> [Bp, Dp]; noise -> batch-leading [Bp, n_sde, Dp]
    # (one contiguous HBM rectangle per batch tile).
    z0_p = z0.reshape(Bp, Dp)
    noise_p = (noise.transpose(1, 0, 2)              # [B, n_sde, d]
               .reshape(Bp, pack, n_sde, d)
               .transpose(0, 2, 1, 3)
               .reshape(Bp, n_sde, Dp))

    if batch_tile is None:
        # Give megacore (v7x, 2 TCs) >=2 programs when the packed batch allows
        # a sublane-aligned split; otherwise keep a single full-batch tile.
        tb = Bp // 2 if (Bp >= 16 and (Bp // 2) % 8 == 0) else Bp
    else:
        tb = batch_tile
    assert Bp % tb == 0, "packed batch (B // pack) must be divisible by batch_tile"
    assert tb == Bp or tb % 8 == 0, (
        "batch_tile must be a multiple of 8 sublanes (or the full packed batch)")
    grid = (Bp // tb,)

    w1p, b1p, w2p, b2p = _fuse_params(params, d, pack, dt)

    kernel = functools.partial(_sde_block_kernel, n_sde=n_sde, d_packed=Dp)

    out_p = pl.pallas_call(
        kernel,
        out_shape=jax.ShapeDtypeStruct((Bp, Dp), jnp.float32),
        grid_spec=pltpu.PrefetchScalarGridSpec(
            num_scalar_prefetch=0,
            grid=grid,
            in_specs=[
                pl.BlockSpec((tb, Dp), lambda i: (i, 0)),            # z0 (batch-tiled)
                pl.BlockSpec((tb, n_sde, Dp), lambda i: (i, 0, 0)),  # noise (batch-leading)
                pl.BlockSpec(w1p.shape, lambda i: (0, 0)),           # fused weights:
                pl.BlockSpec(b1p.shape, lambda i: (0, 0)),           #   constant index map
                pl.BlockSpec(w2p.shape, lambda i: (0, 0)),           #   -> VMEM-resident
                pl.BlockSpec(b2p.shape, lambda i: (0, 0)),
            ],
            out_specs=pl.BlockSpec((tb, Dp), lambda i: (i, 0)),
        ),
        compiler_params=pltpu.CompilerParams(
            dimension_semantics=("parallel",)),                      # split batch on v7x
    )(z0_p, noise_p, w1p, b1p, w2p, b2p)

    return out_p.reshape(B, d)


def init_params(key, d_lat):
    """Deterministic init mirroring nn.Linear's U(-1/sqrt(fan_in), +1/sqrt(fan_in)).

    Weights stored as [in, out] (transpose of PyTorch's [out, in]), biases [1, out].
    """
    def linear(k, fan_in, fan_out):
        kw, kb = jax.random.split(k)
        bound = 1.0 / math.sqrt(fan_in)
        w = jax.random.uniform(kw, (fan_in, fan_out), jnp.float32, -bound, bound)
        b = jax.random.uniform(kb, (1, fan_out), jnp.float32, -bound, bound)
        return w, b

    k1, k2, k3, k4 = jax.random.split(key, 4)
    w1d, b1d = linear(k1, d_lat, 2 * d_lat)     # drift layer 1
    w2d, b2d = linear(k2, 2 * d_lat, d_lat)     # drift layer 2
    w1g, b1g = linear(k3, d_lat, 2 * d_lat)     # diffusion layer 1
    w2g, b2g = linear(k4, 2 * d_lat, d_lat)     # diffusion layer 2
    return (w1d, b1d, w2d, b2d, w1g, b1g, w2g, b2g)


def _reference(z0, params, noise, n_sde, t_sde):
    """Pure-JAX reference of SDEBlock.forward with the same explicit noise."""
    (w1d, b1d, w2d, b2d, w1g, b1g, w2g, b2g) = params
    dt = t_sde / n_sde
    sdt = math.sqrt(dt)
    z = z0
    for i in range(n_sde):
        f = jnp.tanh(z @ w1d + b1d) @ w2d + b2d
        g = jnp.tanh(z @ w1g + b1g) @ w2g + b2g
        z = z + f * dt + g * (sdt * noise[i])
    return z


if __name__ == "__main__":
    d_lat = 32
    n_sde = 8
    t_sde = 1.0
    batch = 32

    key = jax.random.PRNGKey(0)
    k_params, k_z0, k_noise = jax.random.split(key, 3)

    params = init_params(k_params, d_lat)
    z0 = jax.random.normal(k_z0, (batch, d_lat), dtype=jnp.float32)
    # Pre-generated standard normals (== torch.randn_like per step, different
    # RNG stream but distributionally equivalent).
    noise = jax.random.normal(k_noise, (n_sde, batch, d_lat), dtype=jnp.float32)

    z_out = jax.block_until_ready(
        sde_block(z0, params, noise, n_sde=n_sde, t_sde=t_sde))
    z_ref = jax.block_until_ready(_reference(z0, params, noise, n_sde, t_sde))

    assert z_out.shape == (batch, d_lat) and z_out.dtype == jnp.float32
    assert bool(jnp.all(jnp.isfinite(z_out)))
    assert bool(jnp.allclose(z_out, z_ref, atol=1e-3, rtol=1e-3)), float(
        jnp.max(jnp.abs(z_out - z_ref)))
    print("KERNEL_OK")
</pallas_src>

<mosaic_0001>
module attributes {stable_mosaic.version = 11 : i64} {
  func.func @_sde_block_kernel(%arg0: i32, %arg1: memref<8x128xf32, #tpu.memory_space<vmem>>, %arg2: memref<8x8x128xf32, #tpu.memory_space<vmem>>, %arg3: memref<128x512xf32, #tpu.memory_space<vmem>>, %arg4: memref<1x512xf32, #tpu.memory_space<vmem>>, %arg5: memref<512x256xf32, #tpu.memory_space<vmem>>, %arg6: memref<1x256xf32, #tpu.memory_space<vmem>>, %arg7: memref<8x128xf32, #tpu.memory_space<vmem>>) attributes {dimension_semantics = [#tpu.dimension_semantics<parallel>], iteration_bounds = array<i64: 1>, scalar_prefetch = 0 : i64, scratch_operands = 0 : i64, tpu.core_type = #tpu.core_type<tc>, window_params = [{transform_indices = @transform_0, window_bounds = array<i64: 8, 128>}, {transform_indices = @transform_1, window_bounds = array<i64: 8, 8, 128>}, {pipeline_mode = #tpu.pipeline_mode<synchronous>, transform_indices = @transform_2, window_bounds = array<i64: 128, 512>}, {pipeline_mode = #tpu.pipeline_mode<synchronous>, transform_indices = @transform_3, window_bounds = array<i64: 1, 512>}, {pipeline_mode = #tpu.pipeline_mode<synchronous>, transform_indices = @transform_4, window_bounds = array<i64: 512, 256>}, {pipeline_mode = #tpu.pipeline_mode<synchronous>, transform_indices = @transform_5, window_bounds = array<i64: 1, 256>}, {transform_indices = @transform_6, window_bounds = array<i64: 8, 128>}]} {
    %c0 = arith.constant 0 : index
    %c0_0 = arith.constant 0 : index
    %0 = vector.load %arg3[%c0, %c0_0] : memref<128x512xf32, #tpu.memory_space<vmem>>, vector<128x512xf32>
    %c0_1 = arith.constant 0 : index
    %c0_2 = arith.constant 0 : index
    %1 = vector.load %arg5[%c0_1, %c0_2] : memref<512x256xf32, #tpu.memory_space<vmem>>, vector<512x256xf32>
    %c0_3 = arith.constant 0 : index
    %c0_4 = arith.constant 0 : index
    %2 = vector.load %arg4[%c0_3, %c0_4] : memref<1x512xf32, #tpu.memory_space<vmem>>, vector<1x512xf32>
    %3 = vector.shape_cast %2 : vector<1x512xf32> to vector<1x512xf32>
    %4 = vector.broadcast %3 : vector<1x512xf32> to vector<8x512xf32>
    %c0_5 = arith.constant 0 : index
    %c0_6 = arith.constant 0 : index
    %5 = vector.load %arg6[%c0_5, %c0_6] : memref<1x256xf32, #tpu.memory_space<vmem>>, vector<1x256xf32>
    %6 = vector.shape_cast %5 : vector<1x256xf32> to vector<1x256xf32>
    %7 = vector.broadcast %6 : vector<1x256xf32> to vector<8x256xf32>
    %c0_7 = arith.constant 0 : index
    %c0_8 = arith.constant 0 : index
    %8 = vector.load %arg1[%c0_7, %c0_8] : memref<8x128xf32, #tpu.memory_space<vmem>>, vector<8x128xf32>
    %c0_9 = arith.constant 0 : index
    %c0_10 = arith.constant 0 : index
    %c0_11 = arith.constant 0 : index
    %9 = vector.load %arg2[%c0_9, %c0_10, %c0_11] : memref<8x8x128xf32, #tpu.memory_space<vmem>>, vector<8x1x128xf32>
    %10 = vector.shape_cast %9 : vector<8x1x128xf32> to vector<8x128xf32>
    %cst = arith.constant dense<0.000000e+00> : vector<8x512xf32>
    %11 = tpu.matmul %8, %0, %cst {dimension_numbers = #tpu.dot_dimension_numbers<[1], [0], [0], [1], [0, 0, 1, 1], [], []>} : vector<8x128xf32>, vector<128x512xf32>, vector<8x512xf32> -> vector<8x512xf32>
    %12 = arith.addf %11, %4 : vector<8x512xf32>
    %13 = math.tanh %12 : vector<8x512xf32>
    %cst_12 = arith.constant dense<0.000000e+00> : vector<8x256xf32>
    %14 = tpu.matmul %13, %1, %cst_12 {dimension_numbers = #tpu.dot_dimension_numbers<[1], [0], [0], [1], [0, 0, 1, 1], [], []>} : vector<8x512xf32>, vector<512x256xf32>, vector<8x256xf32> -> vector<8x256xf32>
    %15 = arith.addf %14, %7 : vector<8x256xf32>
    %16 = vector.extract_strided_slice %15 {offsets = [0, 0], sizes = [8, 128], strides = [1, 1]} : vector<8x256xf32> to vector<8x128xf32>
    %17 = arith.addf %8, %16 : vector<8x128xf32>
    %18 = vector.extract_strided_slice %15 {offsets = [0, 128], sizes = [8, 128], strides = [1, 1]} : vector<8x256xf32> to vector<8x128xf32>
    %19 = arith.mulf %18, %10 : vector<8x128xf32>
    %20 = arith.addf %17, %19 : vector<8x128xf32>
    %c0_13 = arith.constant 0 : index
    %c1 = arith.constant 1 : index
    %c0_14 = arith.constant 0 : index
    %21 = vector.load %arg2[%c0_13, %c1, %c0_14] : memref<8x8x128xf32, #tpu.memory_space<vmem>>, vector<8x1x128xf32>
    %22 = vector.shape_cast %21 : vector<8x1x128xf32> to vector<8x128xf32>
    %cst_15 = arith.constant dense<0.000000e+00> : vector<8x512xf32>
    %23 = tpu.matmul %20, %0, %cst_15 {dimension_numbers = #tpu.dot_dimension_numbers<[1], [0], [0], [1], [0, 0, 1, 1], [], []>} : vector<8x128xf32>, vector<128x512xf32>, vector<8x512xf32> -> vector<8x512xf32>
    %24 = arith.addf %23, %4 : vector<8x512xf32>
    %25 = math.tanh %24 : vector<8x512xf32>
    %cst_16 = arith.constant dense<0.000000e+00> : vector<8x256xf32>
    %26 = tpu.matmul %25, %1, %cst_16 {dimension_numbers = #tpu.dot_dimension_numbers<[1], [0], [0], [1], [0, 0, 1, 1], [], []>} : vector<8x512xf32>, vector<512x256xf32>, vector<8x256xf32> -> vector<8x256xf32>
    %27 = arith.addf %26, %7 : vector<8x256xf32>
    %28 = vector.extract_strided_slice %27 {offsets = [0, 0], sizes = [8, 128], strides = [1, 1]} : vector<8x256xf32> to vector<8x128xf32>
    %29 = arith.addf %20, %28 : vector<8x128xf32>
    %30 = vector.extract_strided_slice %27 {offsets = [0, 128], sizes = [8, 128], strides = [1, 1]} : vector<8x256xf32> to vector<8x128xf32>
    %31 = arith.mulf %30, %22 : vector<8x128xf32>
    %32 = arith.addf %29, %31 : vector<8x128xf32>
    %c0_17 = arith.constant 0 : index
    %c2 = arith.constant 2 : index
    %c0_18 = arith.constant 0 : index
    %33 = vector.load %arg2[%c0_17, %c2, %c0_18] : memref<8x8x128xf32, #tpu.memory_space<vmem>>, vector<8x1x128xf32>
    %34 = vector.shape_cast %33 : vector<8x1x128xf32> to vector<8x128xf32>
    %cst_19 = arith.constant dense<0.000000e+00> : vector<8x512xf32>
    %35 = tpu.matmul %32, %0, %cst_19 {dimension_numbers = #tpu.dot_dimension_numbers<[1], [0], [0], [1], [0, 0, 1, 1], [], []>} : vector<8x128xf32>, vector<128x512xf32>, vector<8x512xf32> -> vector<8x512xf32>
    %36 = arith.addf %35, %4 : vector<8x512xf32>
    %37 = math.tanh %36 : vector<8x512xf32>
    %cst_20 = arith.constant dense<0.000000e+00> : vector<8x256xf32>
    %38 = tpu.matmul %37, %1, %cst_20 {dimension_numbers = #tpu.dot_dimension_numbers<[1], [0], [0], [1], [0, 0, 1, 1], [], []>} : vector<8x512xf32>, vector<512x256xf32>, vector<8x256xf32> -> vector<8x256xf32>
    %39 = arith.addf %38, %7 : vector<8x256xf32>
    %40 = vector.extract_strided_slice %39 {offsets = [0, 0], sizes = [8, 128], strides = [1, 1]} : vector<8x256xf32> to vector<8x128xf32>
    %41 = arith.addf %32, %40 : vector<8x128xf32>
    %42 = vector.extract_strided_slice %39 {offsets = [0, 128], sizes = [8, 128], strides = [1, 1]} : vector<8x256xf32> to vector<8x128xf32>
    %43 = arith.mulf %42, %34 : vector<8x128xf32>
    %44 = arith.addf %41, %43 : vector<8x128xf32>
    %c0_21 = arith.constant 0 : index
    %c3 = arith.constant 3 : index
    %c0_22 = arith.constant 0 : index
    %45 = vector.load %arg2[%c0_21, %c3, %c0_22] : memref<8x8x128xf32, #tpu.memory_space<vmem>>, vector<8x1x128xf32>
    %46 = vector.shape_cast %45 : vector<8x1x128xf32> to vector<8x128xf32>
    %cst_23 = arith.constant dense<0.000000e+00> : vector<8x512xf32>
    %47 = tpu.matmul %44, %0, %cst_23 {dimension_numbers = #tpu.dot_dimension_numbers<[1], [0], [0], [1], [0, 0, 1, 1], [], []>} : vector<8x128xf32>, vector<128x512xf32>, vector<8x512xf32> -> vector<8x512xf32>
    %48 = arith.addf %47, %4 : vector<8x512xf32>
    %49 = math.tanh %48 : vector<8x512xf32>
    %cst_24 = arith.constant dense<0.000000e+00> : vector<8x256xf32>
    %50 = tpu.matmul %49, %1, %cst_24 {dimension_numbers = #tpu.dot_dimension_numbers<[1], [0], [0], [1], [0, 0, 1, 1], [], []>} : vector<8x512xf32>, vector<512x256xf32>, vector<8x256xf32> -> vector<8x256xf32>
    %51 = arith.addf %50, %7 : vector<8x256xf32>
    %52 = vector.extract_strided_slice %51 {offsets = [0, 0], sizes = [8, 128], strides = [1, 1]} : vector<8x256xf32> to vector<8x128xf32>
    %53 = arith.addf %44, %52 : vector<8x128xf32>
    %54 = vector.extract_strided_slice %51 {offsets = [0, 128], sizes = [8, 128], strides = [1, 1]} : vector<8x256xf32> to vector<8x128xf32>
    %55 = arith.mulf %54, %46 : vector<8x128xf32>
    %56 = arith.addf %53, %55 : vector<8x128xf32>
    %c0_25 = arith.constant 0 : index
    %c4 = arith.constant 4 : index
    %c0_26 = arith.constant 0 : index
    %57 = vector.load %arg2[%c0_25, %c4, %c0_26] : memref<8x8x128xf32, #tpu.memory_space<vmem>>, vector<8x1x128xf32>
    %58 = vector.shape_cast %57 : vector<8x1x128xf32> to vector<8x128xf32>
    %cst_27 = arith.constant dense<0.000000e+00> : vector<8x512xf32>
    %59 = tpu.matmul %56, %0, %cst_27 {dimension_numbers = #tpu.dot_dimension_numbers<[1], [0], [0], [1], [0, 0, 1, 1], [], []>} : vector<8x128xf32>, vector<128x512xf32>, vector<8x512xf32> -> vector<8x512xf32>
    %60 = arith.addf %59, %4 : vector<8x512xf32>
    %61 = math.tanh %60 : vector<8x512xf32>
    %cst_28 = arith.constant dense<0.000000e+00> : vector<8x256xf32>
    %62 = tpu.matmul %61, %1, %cst_28 {dimension_numbers = #tpu.dot_dimension_numbers<[1], [0], [0], [1], [0, 0, 1, 1], [], []>} : vector<8x512xf32>, vector<512x256xf32>, vector<8x256xf32> -> vector<8x256xf32>
    %63 = arith.addf %62, %7 : vector<8x256xf32>
    %64 = vector.extract_strided_slice %63 {offsets = [0, 0], sizes = [8, 128], strides = [1, 1]} : vector<8x256xf32> to vector<8x128xf32>
    %65 = arith.addf %56, %64 : vector<8x128xf32>
    %66 = vector.extract_strided_slice %63 {offsets = [0, 128], sizes = [8, 128], strides = [1, 1]} : vector<8x256xf32> to vector<8x128xf32>
    %67 = arith.mulf %66, %58 : vector<8x128xf32>
    %68 = arith.addf %65, %67 : vector<8x128xf32>
    %c0_29 = arith.constant 0 : index
    %c5 = arith.constant 5 : index
    %c0_30 = arith.constant 0 : index
    %69 = vector.load %arg2[%c0_29, %c5, %c0_30] : memref<8x8x128xf32, #tpu.memory_space<vmem>>, vector<8x1x128xf32>
    %70 = vector.shape_cast %69 : vector<8x1x128xf32> to vector<8x128xf32>
    %cst_31 = arith.constant dense<0.000000e+00> : vector<8x512xf32>
    %71 = tpu.matmul %68, %0, %cst_31 {dimension_numbers = #tpu.dot_dimension_numbers<[1], [0], [0], [1], [0, 0, 1, 1], [], []>} : vector<8x128xf32>, vector<128x512xf32>, vector<8x512xf32> -> vector<8x512xf32>
    %72 = arith.addf %71, %4 : vector<8x512xf32>
    %73 = math.tanh %72 : vector<8x512xf32>
    %cst_32 = arith.constant dense<0.000000e+00> : vector<8x256xf32>
    %74 = tpu.matmul %73, %1, %cst_32 {dimension_numbers = #tpu.dot_dimension_numbers<[1], [0], [0], [1], [0, 0, 1, 1], [], []>} : vector<8x512xf32>, vector<512x256xf32>, vector<8x256xf32> -> vector<8x256xf32>
    %75 = arith.addf %74, %7 : vector<8x256xf32>
    %76 = vector.extract_strided_slice %75 {offsets = [0, 0], sizes = [8, 128], strides = [1, 1]} : vector<8x256xf32> to vector<8x128xf32>
    %77 = arith.addf %68, %76 : vector<8x128xf32>
    %78 = vector.extract_strided_slice %75 {offsets = [0, 128], sizes = [8, 128], strides = [1, 1]} : vector<8x256xf32> to vector<8x128xf32>
    %79 = arith.mulf %78, %70 : vector<8x128xf32>
    %80 = arith.addf %77, %79 : vector<8x128xf32>
    %c0_33 = arith.constant 0 : index
    %c6 = arith.constant 6 : index
    %c0_34 = arith.constant 0 : index
    %81 = vector.load %arg2[%c0_33, %c6, %c0_34] : memref<8x8x128xf32, #tpu.memory_space<vmem>>, vector<8x1x128xf32>
    %82 = vector.shape_cast %81 : vector<8x1x128xf32> to vector<8x128xf32>
    %cst_35 = arith.constant dense<0.000000e+00> : vector<8x512xf32>
    %83 = tpu.matmul %80, %0, %cst_35 {dimension_numbers = #tpu.dot_dimension_numbers<[1], [0], [0], [1], [0, 0, 1, 1], [], []>} : vector<8x128xf32>, vector<128x512xf32>, vector<8x512xf32> -> vector<8x512xf32>
    %84 = arith.addf %83, %4 : vector<8x512xf32>
    %85 = math.tanh %84 : vector<8x512xf32>
    %cst_36 = arith.constant dense<0.000000e+00> : vector<8x256xf32>
    %86 = tpu.matmul %85, %1, %cst_36 {dimension_numbers = #tpu.dot_dimension_numbers<[1], [0], [0], [1], [0, 0, 1, 1], [], []>} : vector<8x512xf32>, vector<512x256xf32>, vector<8x256xf32> -> vector<8x256xf32>
    %87 = arith.addf %86, %7 : vector<8x256xf32>
    %88 = vector.extract_strided_slice %87 {offsets = [0, 0], sizes = [8, 128], strides = [1, 1]} : vector<8x256xf32> to vector<8x128xf32>
    %89 = arith.addf %80, %88 : vector<8x128xf32>
    %90 = vector.extract_strided_slice %87 {offsets = [0, 128], sizes = [8, 128], strides = [1, 1]} : vector<8x256xf32> to vector<8x128xf32>
    %91 = arith.mulf %90, %82 : vector<8x128xf32>
    %92 = arith.addf %89, %91 : vector<8x128xf32>
    %c0_37 = arith.constant 0 : index
    %c7 = arith.constant 7 : index
    %c0_38 = arith.constant 0 : index
    %93 = vector.load %arg2[%c0_37, %c7, %c0_38] : memref<8x8x128xf32, #tpu.memory_space<vmem>>, vector<8x1x128xf32>
    %94 = vector.shape_cast %93 : vector<8x1x128xf32> to vector<8x128xf32>
    %cst_39 = arith.constant dense<0.000000e+00> : vector<8x512xf32>
    %95 = tpu.matmul %92, %0, %cst_39 {dimension_numbers = #tpu.dot_dimension_numbers<[1], [0], [0], [1], [0, 0, 1, 1], [], []>} : vector<8x128xf32>, vector<128x512xf32>, vector<8x512xf32> -> vector<8x512xf32>
    %96 = arith.addf %95, %4 : vector<8x512xf32>
    %97 = math.tanh %96 : vector<8x512xf32>
    %cst_40 = arith.constant dense<0.000000e+00> : vector<8x256xf32>
    %98 = tpu.matmul %97, %1, %cst_40 {dimension_numbers = #tpu.dot_dimension_numbers<[1], [0], [0], [1], [0, 0, 1, 1], [], []>} : vector<8x512xf32>, vector<512x256xf32>, vector<8x256xf32> -> vector<8x256xf32>
    %99 = arith.addf %98, %7 : vector<8x256xf32>
    %100 = vector.extract_strided_slice %99 {offsets = [0, 0], sizes = [8, 128], strides = [1, 1]} : vector<8x256xf32> to vector<8x128xf32>
    %101 = arith.addf %92, %100 : vector<8x128xf32>
    %102 = vector.extract_strided_slice %99 {offsets = [0, 128], sizes = [8, 128], strides = [1, 1]} : vector<8x256xf32> to vector<8x128xf32>
    %103 = arith.mulf %102, %94 : vector<8x128xf32>
    %104 = arith.addf %101, %103 : vector<8x128xf32>
    %c0_41 = arith.constant 0 : index
    %c0_42 = arith.constant 0 : index
    %105 = vector.load %arg7[%c0_41, %c0_42] : memref<8x128xf32, #tpu.memory_space<vmem>>, vector<8x128xf32>
    tpu.vector_store %arg7[%c0_41, %c0_42], %104 {strides = array<i32>} : memref<8x128xf32, #tpu.memory_space<vmem>>, vector<8x128xf32>,
    return
  }
  func.func @transform_0(%arg0: i32) -> (i32, i32) {
    %c0_i32 = arith.constant 0 : i32
    %c0_i32_0 = arith.constant 0 : i32
    return %arg0, %c0_i32 : i32, i32
  }
  func.func @transform_1(%arg0: i32) -> (i32, i32, i32) {
    %c0_i32 = arith.constant 0 : i32
    %c0_i32_0 = arith.constant 0 : i32
    %c0_i32_1 = arith.constant 0 : i32
    return %arg0, %c0_i32, %c0_i32_0 : i32, i32, i32
  }
  func.func @transform_2(%arg0: i32) -> (i32, i32) {
    %c0_i32 = arith.constant 0 : i32
    %c0_i32_0 = arith.constant 0 : i32
    %c0_i32_1 = arith.constant 0 : i32
    return %c0_i32, %c0_i32_0 : i32, i32
  }
  func.func @transform_3(%arg0: i32) -> (i32, i32) {
    %c0_i32 = arith.constant 0 : i32
    %c0_i32_0 = arith.constant 0 : i32
    %c0_i32_1 = arith.constant 0 : i32
    return %c0_i32, %c0_i32_0 : i32, i32
  }
  func.func @transform_4(%arg0: i32) -> (i32, i32) {
    %c0_i32 = arith.constant 0 : i32
    %c0_i32_0 = arith.constant 0 : i32
    %c0_i32_1 = arith.constant 0 : i32
    return %c0_i32, %c0_i32_0 : i32, i32
  }
  func.func @transform_5(%arg0: i32) -> (i32, i32) {
    %c0_i32 = arith.constant 0 : i32
    %c0_i32_0 = arith.constant 0 : i32
    %c0_i32_1 = arith.constant 0 : i32
    return %c0_i32, %c0_i32_0 : i32, i32
  }
  func.func @transform_6(%arg0: i32) -> (i32, i32) {
    %c0_i32 = arith.constant 0 : i32
    %c0_i32_0 = arith.constant 0 : i32
    return %arg0, %c0_i32 : i32, i32
  }
}

</mosaic_0001>

<llo_original>
// kernel: tpu_custom_call.1
$region0: #{tpu_custom_call.1}
  #allocation0 [shape = 'u32[]', space=smem, size = 0x4, offset = 0x4, fixed_abs, tag = 'smem constant byte address 0x4 - core index']
  #allocation1 [shape = 'u32[144,128]{1,0:T(1,128)}', space=vmem, size = 0x12000, scoped, tag = 'internal scratch']
  %s0 = inlined_call_operand.hbm [shape: f32[8,128], index: 0, kind: input, shape index: {}]
  %s1 = inlined_call_operand.hbm [shape: f32[8,8,128], index: 1, kind: input, shape index: {}]
  %s2 = inlined_call_operand.hbm [shape: f32[128,512], index: 2, kind: input, shape index: {}]
  %s3 = inlined_call_operand.vmem [shape: f32[1,512], index: 3, kind: input, shape index: {}]
  %s4 = inlined_call_operand.hbm [shape: f32[512,256], index: 4, kind: input, shape index: {}]
  %s5 = inlined_call_operand.vmem [shape: f32[1,256], index: 5, kind: input, shape index: {}]
  %s6 = inlined_call_operand.hbm [shape: f32[8,128], index: 6, kind: output, shape index: {}]
  %s7 = sld [smem:[#allocation0]]
  $region50: #{tpu_custom_call.1} parent=0
    _
  %s9 = ssub.s32 1, %s7
  %s10 = scalar_select 0, %s9, %s7
  $region1: #{tpu_custom_call.1} parent=0
    #allocation2 [shape = 'u8[4096]{0}', space=vmem, size = 0x1000, scoped, tag = 'input window, operand 0, single buffered']
    #allocation3 [shape = 's32[1]{0}', space=sflag, size = 0x4, scoped, tag = 'scoped memory for tpu_custom_call.1']
    #allocation4 [shape = 's32[1]{0}', space=sflag, size = 0x4, scoped, tag = 'scoped memory for tpu_custom_call.1']
    #allocation5 [shape = 'u8[32768]{0}', space=vmem, size = 0x8000, scoped, tag = 'input window, operand 1, single buffered']
    #allocation6 [shape = 's32[1]{0}', space=sflag, size = 0x4, scoped, tag = 'scoped memory for tpu_custom_call.1']
    #allocation7 [shape = 'u8[262144]{0}', space=vmem, size = 0x40000, scoped, tag = 'input window, operand 2, single buffered']
    #allocation8 [shape = 'u8[524288]{0}', space=vmem, size = 0x80000, scoped, tag = 'input window, operand 4, single buffered']
    #allocation9 [shape = 's32[1]{0}', space=sflag, size = 0x4, scoped, tag = 'scoped memory for tpu_custom_call.1']
    #allocation10 [shape = 'u8[4096]{0}', space=vmem, size = 0x1000, scoped, tag = 'output window, operand 0, single buffered']
    %11 = vsyncpa [#allocation3], 0
    %12 = vsyncpa [#allocation6], 0
    %13 = vsyncpa [#allocation9], 0
    %14 = vsyncpa [#allocation4], 0
    // Predicated region
    $region2: #{tpu_custom_call.1} parent=1 // pred_check
      _
    $region3: #{tpu_custom_call.1} parent=1 // pred_check_branch
      %16 = sbr.rel (0) target = $region5
    $region4: #{tpu_custom_call.1} parent=1 // pred_region
      %s18 = ssub.s32 128, 128
      %19 = vsyncadd [#allocation3], %s18
      %s21 = sshll.u32 [#allocation2], 4
      %s22 = int_to_ptr.vmem [resolvable:$true] %s21
      %24 = dma.hbm_to_vmem [thread:$0]  %s0, 128, %s22, [#allocation3]
    $region5: #{tpu_custom_call.1} parent=1 // pred_fallthru
      _
    // Predicated region
    $region6: #{tpu_custom_call.1} parent=1 // pred_check
      _
    $region7: #{tpu_custom_call.1} parent=1 // pred_check_branch
      %26 = sbr.rel (0) target = $region9
    $region8: #{tpu_custom_call.1} parent=1 // pred_region
      %s28 = ssub.s32 1024, 1024
      %29 = vsyncadd [#allocation6], %s28
      %s30 = sshll.u32 [#allocation5], 4
      %s31 = int_to_ptr.vmem [resolvable:$true] %s30
      %36 = dma.hbm_to_vmem [thread:$0]  %s1, 1024, %s31, [#allocation6], 128, 128, 8
    $region9: #{tpu_custom_call.1} parent=1 // pred_fallthru
      _
    // Predicated region
    $region10: #{tpu_custom_call.1} parent=1 // pred_check
      _
    $region11: #{tpu_custom_call.1} parent=1 // pred_check_branch
      %38 = sbr.rel (0) target = $region13
    $region12: #{tpu_custom_call.1} parent=1 // pred_region
      %s40 = ssub.s32 8192, 8192
      %41 = vsyncadd [#allocation6], %s40
      %s42 = sshll.u32 [#allocation7], 4
      %s43 = int_to_ptr.vmem [resolvable:$true] %s42
      %48 = dma.hbm_to_vmem [thread:$0]  %s2, 8192, %s43, [#allocation6], 512, 512, 32
    $region13: #{tpu_custom_call.1} parent=1 // pred_fallthru
      _
    // Predicated region
    $region14: #{tpu_custom_call.1} parent=1 // pred_check
      _
    $region15: #{tpu_custom_call.1} parent=1 // pred_check_branch
      %50 = sbr.rel (0) target = $region17
    $region16: #{tpu_custom_call.1} parent=1 // pred_region
      _
    $region17: #{tpu_custom_call.1} parent=1 // pred_fallthru
      _
    // Predicated region
    $region18: #{tpu_custom_call.1} parent=1 // pred_check
      _
    $region19: #{tpu_custom_call.1} parent=1 // pred_check_branch
      %52 = sbr.rel (0) target = $region21
    $region20: #{tpu_custom_call.1} parent=1 // pred_region
      %s54 = ssub.s32 16384, 16384
      %55 = vsyncadd [#allocation9], %s54
      %s56 = sshll.u32 [#allocation8], 4
      %s57 = int_to_ptr.vmem [resolvable:$true] %s56
      %62 = dma.hbm_to_vmem [thread:$0]  %s4, 16384, %s57, [#allocation9], 256, 256, 16
    $region21: #{tpu_custom_call.1} parent=1 // pred_fallthru
      _
    // Predicated region
    $region22: #{tpu_custom_call.1} parent=1 // pred_check
      _
    $region23: #{tpu_custom_call.1} parent=1 // pred_check_branch
      %64 = sbr.rel (0) target = $region25
    $region24: #{tpu_custom_call.1} parent=1 // pred_region
      _
    $region25: #{tpu_custom_call.1} parent=1 // pred_fallthru
      _
    // Predicated region
    $region26: #{tpu_custom_call.1} parent=1 // pred_check
      _
    $region27: #{tpu_custom_call.1} parent=1 // pred_check_branch
      %66 = sbr.rel (0) target = $region29
    $region28: #{tpu_custom_call.1} parent=1 // pred_region
      %67 = dma.done [#allocation3], 128
    $region29: #{tpu_custom_call.1} parent=1 // pred_fallthru
      _
    // Predicated region
    $region30: #{tpu_custom_call.1} parent=1 // pred_check
      _
    $region31: #{tpu_custom_call.1} parent=1 // pred_check_branch
      %69 = sbr.rel (0) target = $region33
    $region32: #{tpu_custom_call.1} parent=1 // pred_region
      %70 = dma.done [#allocation6], 1024
    $region33: #{tpu_custom_call.1} parent=1 // pred_fallthru
      _
    // Predicated region
    $region34: #{tpu_custom_call.1} parent=1 // pred_check
      _
    $region35: #{tpu_custom_call.1} parent=1 // pred_check_branch
      %72 = sbr.rel (0) target = $region37
    $region36: #{tpu_custom_call.1} parent=1 // pred_region
      %73 = dma.done [#allocation6], 8192
    $region37: #{tpu_custom_call.1} parent=1 // pred_fallthru
      _
    // Predicated region
    $region38: #{tpu_custom_call.1} parent=1 // pred_check
      _
    $region39: #{tpu_custom_call.1} parent=1 // pred_check_branch
      %75 = sbr.rel (0) target = $region41
    $region40: #{tpu_custom_call.1} parent=1 // pred_region
      %76 = dma.done [#allocation9], 16384
    $region41: #{tpu_custom_call.1} parent=1 // pred_fallthru
      _
    %v77 = vld [vmem:[#allocation7] sm:$0xff]
    %v78 = vld [vmem:[#allocation7 + $0x8] sm:$0xff]
    %v79 = vld [vmem:[#allocation7 + $0x10] sm:$0xff]
    %v80 = vld [vmem:[#allocation7 + $0x18] sm:$0xff]
    %v81 = vld [vmem:[#allocation7 + $0x20] sm:$0xff]
    %v82 = vld [vmem:[#allocation7 + $0x28] sm:$0xff]
    %v83 = vld [vmem:[#allocation7 + $0x30] sm:$0xff]
    %v84 = vld [vmem:[#allocation7 + $0x38] sm:$0xff]
    %v85 = vld [vmem:[#allocation7 + $0x40] sm:$0xff]
    %v86 = vld [vmem:[#allocation7 + $0x48] sm:$0xff]
    %v87 = vld [vmem:[#allocation7 + $0x50] sm:$0xff]
    %v88 = vld [vmem:[#allocation7 + $0x58] sm:$0xff]
    %v89 = vld [vmem:[#allocation7 + $0x60] sm:$0xff]
    %v90 = vld [vmem:[#allocation7 + $0x68] sm:$0xff]
    %v91 = vld [vmem:[#allocation7 + $0x70] sm:$0xff]
    %v92 = vld [vmem:[#allocation7 + $0x78] sm:$0xff]
    %v93 = vld [vmem:[#allocation7 + $0x80] sm:$0xff]
    %v94 = vld [vmem:[#allocation7 + $0x88] sm:$0xff]
    %v95 = vld [vmem:[#allocation7 + $0x90] sm:$0xff]
    %v96 = vld [vmem:[#allocation7 + $0x98] sm:$0xff]
    %v97 = vld [vmem:[#allocation7 + $0xa0] sm:$0xff]
    %v98 = vld [vmem:[#allocation7 + $0xa8] sm:$0xff]
    %v99 = vld [vmem:[#allocation7 + $0xb0] sm:$0xff]
    %v100 = vld [vmem:[#allocation7 + $0xb8] sm:$0xff]
    %v101 = vld [vmem:[#allocation7 + $0xc0] sm:$0xff]
    %v102 = vld [vmem:[#allocation7 + $0xc8] sm:$0xff]
    %v103 = vld [vmem:[#allocation7 + $0xd0] sm:$0xff]
    %v104 = vld [vmem:[#allocation7 + $0xd8] sm:$0xff]
    %v105 = vld [vmem:[#allocation7 + $0xe0] sm:$0xff]
    %v106 = vld [vmem:[#allocation7 + $0xe8] sm:$0xff]
    %v107 = vld [vmem:[#allocation7 + $0xf0] sm:$0xff]
    %v108 = vld [vmem:[#allocation7 + $0xf8] sm:$0xff]
    %v109 = vld [vmem:[#allocation7 + $0x100] sm:$0xff]
    %v110 = vld [vmem:[#allocation7 + $0x108] sm:$0xff]
    %v111 = vld [vmem:[#allocation7 + $0x110] sm:$0xff]
    %v112 = vld [vmem:[#allocation7 + $0x118] sm:$0xff]
    %v113 = vld [vmem:[#allocation7 + $0x120] sm:$0xff]
    %v114 = vld [vmem:[#allocation7 + $0x128] sm:$0xff]
    %v115 = vld [vmem:[#allocation7 + $0x130] sm:$0xff]
    %v116 = vld [vmem:[#allocation7 + $0x138] sm:$0xff]
    %v117 = vld [vmem:[#allocation7 + $0x140] sm:$0xff]
    %v118 = vld [vmem:[#allocation7 + $0x148] sm:$0xff]
    %v119 = vld [vmem:[#allocation7 + $0x150] sm:$0xff]
    %v120 = vld [vmem:[#allocation7 + $0x158] sm:$0xff]
    %v121 = vld [vmem:[#allocation7 + $0x160] sm:$0xff]
    %v122 = vld [vmem:[#allocation7 + $0x168] sm:$0xff]
    %v123 = vld [vmem:[#allocation7 + $0x170] sm:$0xff]
    %v124 = vld [vmem:[#allocation7 + $0x178] sm:$0xff]
    %v125 = vld [vmem:[#allocation7 + $0x180] sm:$0xff]
    %v126 = vld [vmem:[#allocation7 + $0x188] sm:$0xff]
    %v127 = vld [vmem:[#allocation7 + $0x190] sm:$0xff]
    %v128 = vld [vmem:[#allocation7 + $0x198] sm:$0xff]
    %v129 = vld [vmem:[#allocation7 + $0x1a0] sm:$0xff]
    %v130 = vld [vmem:[#allocation7 + $0x1a8] sm:$0xff]
    %v131 = vld [vmem:[#allocation7 + $0x1b0] sm:$0xff]
    %v132 = vld [vmem:[#allocation7 + $0x1b8] sm:$0xff]
    %v133 = vld [vmem:[#allocation7 + $0x1c0] sm:$0xff]
    %v134 = vld [vmem:[#allocation7 + $0x1c8] sm:$0xff]
    %v135 = vld [vmem:[#allocation7 + $0x1d0] sm:$0xff]
    %v136 = vld [vmem:[#allocation7 + $0x1d8] sm:$0xff]
    %v137 = vld [vmem:[#allocation7 + $0x1e0] sm:$0xff]
    %v138 = vld [vmem:[#allocation7 + $0x1e8] sm:$0xff]
    %v139 = vld [vmem:[#allocation7 + $0x1f0] sm:$0xff]
    %v140 = vld [vmem:[#allocation7 + $0x1f8] sm:$0xff]
    %v141 = vld [vmem:[#allocation8] sm:$0xff]
    %v142 = vld [vmem:[#allocation8 + $0x8] sm:$0xff]
    %v143 = vld [vmem:[#allocation8 + $0x10] sm:$0xff]
    %v144 = vld [vmem:[#allocation8 + $0x18] sm:$0xff]
    %v145 = vld [vmem:[#allocation8 + $0x20] sm:$0xff]
    %v146 = vld [vmem:[#allocation8 + $0x28] sm:$0xff]
    %v147 = vld [vmem:[#allocation8 + $0x30] sm:$0xff]
    %v148 = vld [vmem:[#allocation8 + $0x38] sm:$0xff]
    %v149 = vld [vmem:[#allocation8 + $0x40] sm:$0xff]
    %v150 = vld [vmem:[#allocation8 + $0x48] sm:$0xff]
    %v151 = vld [vmem:[#allocation8 + $0x50] sm:$0xff]
    %v152 = vld [vmem:[#allocation8 + $0x58] sm:$0xff]
    %v153 = vld [vmem:[#allocation8 + $0x60] sm:$0xff]
    %v154 = vld [vmem:[#allocation8 + $0x68] sm:$0xff]
    %v155 = vld [vmem:[#allocation8 + $0x70] sm:$0xff]
    %v156 = vld [vmem:[#allocation8 + $0x78] sm:$0xff]
    %v157 = vld [vmem:[#allocation8 + $0x80] sm:$0xff]
    %v158 = vld [vmem:[#allocation8 + $0x88] sm:$0xff]
    %v159 = vld [vmem:[#allocation8 + $0x90] sm:$0xff]
    %v160 = vld [vmem:[#allocation8 + $0x98] sm:$0xff]
    %v161 = vld [vmem:[#allocation8 + $0xa0] sm:$0xff]
    %v162 = vld [vmem:[#allocation8 + $0xa8] sm:$0xff]
    %v163 = vld [vmem:[#allocation8 + $0xb0] sm:$0xff]
    %v164 = vld [vmem:[#allocation8 + $0xb8] sm:$0xff]
    %v165 = vld [vmem:[#allocation8 + $0xc0] sm:$0xff]
    %v166 = vld [vmem:[#allocation8 + $0xc8] sm:$0xff]
    %v167 = vld [vmem:[#allocation8 + $0xd0] sm:$0xff]
    %v168 = vld [vmem:[#allocation8 + $0xd8] sm:$0xff]
    %v169 = vld [vmem:[#allocation8 + $0xe0] sm:$0xff]
    %v170 = vld [vmem:[#allocation8 + $0xe8] sm:$0xff]
    %v171 = vld [vmem:[#allocation8 + $0xf0] sm:$0xff]
    %v172 = vld [vmem:[#allocation8 + $0xf8] sm:$0xff]
    %v173 = vld [vmem:[#allocation8 + $0x100] sm:$0xff]
    %v174 = vld [vmem:[#allocation8 + $0x108] sm:$0xff]
    %v175 = vld [vmem:[#allocation8 + $0x110] sm:$0xff]
    %v176 = vld [vmem:[#allocation8 + $0x118] sm:$0xff]
    %v177 = vld [vmem:[#allocation8 + $0x120] sm:$0xff]
    %v178 = vld [vmem:[#allocation8 + $0x128] sm:$0xff]
    %v179 = vld [vmem:[#allocation8 + $0x130] sm:$0xff]
    %v180 = vld [vmem:[#allocation8 + $0x138] sm:$0xff]
    %v181 = vld [vmem:[#allocation8 + $0x140] sm:$0xff]
    %v182 = vld [vmem:[#allocation8 + $0x148] sm:$0xff]
    %v183 = vld [vmem:[#allocation8 + $0x150] sm:$0xff]
    %v184 = vld [vmem:[#allocation8 + $0x158] sm:$0xff]
    %v185 = vld [vmem:[#allocation8 + $0x160] sm:$0xff]
    %v186 = vld [vmem:[#allocation8 + $0x168] sm:$0xff]
    %v187 = vld [vmem:[#allocation8 + $0x170] sm:$0xff]
    %v188 = vld [vmem:[#allocation8 + $0x178] sm:$0xff]
    %v189 = vld [vmem:[#allocation8 + $0x180] sm:$0xff]
    %v190 = vld [vmem:[#allocation8 + $0x188] sm:$0xff]
    %v191 = vld [vmem:[#allocation8 + $0x190] sm:$0xff]
    %v192 = vld [vmem:[#allocation8 + $0x198] sm:$0xff]
    %v193 = vld [vmem:[#allocation8 + $0x1a0] sm:$0xff]
    %v194 = vld [vmem:[#allocation8 + $0x1a8] sm:$0xff]
    %v195 = vld [vmem:[#allocation8 + $0x1b0] sm:$0xff]
    %v196 = vld [vmem:[#allocation8 + $0x1b8] sm:$0xff]
    %v197 = vld [vmem:[#allocation8 + $0x1c0] sm:$0xff]
    %v198 = vld [vmem:[#allocation8 + $0x1c8] sm:$0xff]
    %v199 = vld [vmem:[#allocation8 + $0x1d0] sm:$0xff]
    %v200 = vld [vmem:[#allocation8 + $0x1d8] sm:$0xff]
    %v201 = vld [vmem:[#allocation8 + $0x1e0] sm:$0xff]
    %v202 = vld [vmem:[#allocation8 + $0x1e8] sm:$0xff]
    %v203 = vld [vmem:[#allocation8 + $0x1f0] sm:$0xff]
    %v204 = vld [vmem:[#allocation8 + $0x1f8] sm:$0xff]
    %v205 = vld [vmem:[#allocation8 + $0x200] sm:$0xff]
    %v206 = vld [vmem:[#allocation8 + $0x208] sm:$0xff]
    %v207 = vld [vmem:[#allocation8 + $0x210] sm:$0xff]
    %v208 = vld [vmem:[#allocation8 + $0x218] sm:$0xff]
    %v209 = vld [vmem:[#allocation8 + $0x220] sm:$0xff]
    %v210 = vld [vmem:[#allocation8 + $0x228] sm:$0xff]
    %v211 = vld [vmem:[#allocation8 + $0x230] sm:$0xff]
    %v212 = vld [vmem:[#allocation8 + $0x238] sm:$0xff]
    %v213 = vld [vmem:[#allocation8 + $0x240] sm:$0xff]
    %v214 = vld [vmem:[#allocation8 + $0x248] sm:$0xff]
    %v215 = vld [vmem:[#allocation8 + $0x250] sm:$0xff]
    %v216 = vld [vmem:[#allocation8 + $0x258] sm:$0xff]
    %v217 = vld [vmem:[#allocation8 + $0x260] sm:$0xff]
    %v218 = vld [vmem:[#allocation8 + $0x268] sm:$0xff]
    %v219 = vld [vmem:[#allocation8 + $0x270] sm:$0xff]
    %v220 = vld [vmem:[#allocation8 + $0x278] sm:$0xff]
    %v221 = vld [vmem:[#allocation8 + $0x280] sm:$0xff]
    %v222 = vld [vmem:[#allocation8 + $0x288] sm:$0xff]
    %v223 = vld [vmem:[#allocation8 + $0x290] sm:$0xff]
    %v224 = vld [vmem:[#allocation8 + $0x298] sm:$0xff]
    %v225 = vld [vmem:[#allocation8 + $0x2a0] sm:$0xff]
    %v226 = vld [vmem:[#allocation8 + $0x2a8] sm:$0xff]
    %v227 = vld [vmem:[#allocation8 + $0x2b0] sm:$0xff]
    %v228 = vld [vmem:[#allocation8 + $0x2b8] sm:$0xff]
    %v229 = vld [vmem:[#allocation8 + $0x2c0] sm:$0xff]
    %v230 = vld [vmem:[#allocation8 + $0x2c8] sm:$0xff]
    %v231 = vld [vmem:[#allocation8 + $0x2d0] sm:$0xff]
    %v232 = vld [vmem:[#allocation8 + $0x2d8] sm:$0xff]
    %v233 = vld [vmem:[#allocation8 + $0x2e0] sm:$0xff]
    %v234 = vld [vmem:[#allocation8 + $0x2e8] sm:$0xff]
    %v235 = vld [vmem:[#allocation8 + $0x2f0] sm:$0xff]
    %v236 = vld [vmem:[#allocation8 + $0x2f8] sm:$0xff]
    %v237 = vld [vmem:[#allocation8 + $0x300] sm:$0xff]
    %v238 = vld [vmem:[#allocation8 + $0x308] sm:$0xff]
    %v239 = vld [vmem:[#allocation8 + $0x310] sm:$0xff]
    %v240 = vld [vmem:[#allocation8 + $0x318] sm:$0xff]
    %v241 = vld [vmem:[#allocation8 + $0x320] sm:$0xff]
    %v242 = vld [vmem:[#allocation8 + $0x328] sm:$0xff]
    %v243 = vld [vmem:[#allocation8 + $0x330] sm:$0xff]
    %v244 = vld [vmem:[#allocation8 + $0x338] sm:$0xff]
    %v245 = vld [vmem:[#allocation8 + $0x340] sm:$0xff]
    %v246 = vld [vmem:[#allocation8 + $0x348] sm:$0xff]
    %v247 = vld [vmem:[#allocation8 + $0x350] sm:$0xff]
    %v248 = vld [vmem:[#allocation8 + $0x358] sm:$0xff]
    %v249 = vld [vmem:[#allocation8 + $0x360] sm:$0xff]
    %v250 = vld [vmem:[#allocation8 + $0x368] sm:$0xff]
    %v251 = vld [vmem:[#allocation8 + $0x370] sm:$0xff]
    %v252 = vld [vmem:[#allocation8 + $0x378] sm:$0xff]
    %v253 = vld [vmem:[#allocation8 + $0x380] sm:$0xff]
    %v254 = vld [vmem:[#allocation8 + $0x388] sm:$0xff]
    %v255 = vld [vmem:[#allocation8 + $0x390] sm:$0xff]
    %v256 = vld [vmem:[#allocation8 + $0x398] sm:$0xff]
    %v257 = vld [vmem:[#allocation8 + $0x3a0] sm:$0xff]
    %v258 = vld [vmem:[#allocation8 + $0x3a8] sm:$0xff]
    %v259 = vld [vmem:[#allocation8 + $0x3b0] sm:$0xff]
    %v260 = vld [vmem:[#allocation8 + $0x3b8] sm:$0xff]
    %v261 = vld [vmem:[#allocation8 + $0x3c0] sm:$0xff]
    %v262 = vld [vmem:[#allocation8 + $0x3c8] sm:$0xff]
    %v263 = vld [vmem:[#allocation8 + $0x3d0] sm:$0xff]
    %v264 = vld [vmem:[#allocation8 + $0x3d8] sm:$0xff]
    %v265 = vld [vmem:[#allocation8 + $0x3e0] sm:$0xff]
    %v266 = vld [vmem:[#allocation8 + $0x3e8] sm:$0xff]
    %v267 = vld [vmem:[#allocation8 + $0x3f0] sm:$0xff]
    %v268 = vld [vmem:[#allocation8 + $0x3f8] sm:$0xff]
    %v269 = vld [vmem:[%s3] sm:$0xf]
    %v271 = vlaneseq
    %v272 = vshrl.u32 %v271, 7
    %v273 = vsub.s32 0, %v272
    %v274 = vrot.slane %v269, %v273
    %v275 = vlaneseq
    %v276 = vshrl.u32 %v275, 7
    %v277 = vsub.s32 1, %v276
    %v278 = vrot.slane %v269, %v277
    %v279 = vlaneseq
    %v280 = vshrl.u32 %v279, 7
    %v281 = vsub.s32 2, %v280
    %v282 = vrot.slane %v269, %v281
    %v283 = vlaneseq
    %v284 = vshrl.u32 %v283, 7
    %v285 = vsub.s32 3, %v284
    %v286 = vrot.slane %v269, %v285
    %v291 = vld [vmem:[%s5] sm:$0x3]
    %v293 = vlaneseq
    %v294 = vshrl.u32 %v293, 7
    %v295 = vsub.s32 0, %v294
    %v296 = vrot.slane %v291, %v295
    %v297 = vlaneseq
    %v298 = vshrl.u32 %v297, 7
    %v299 = vsub.s32 1, %v298
    %v300 = vrot.slane %v291, %v299
    %v303 = vld [vmem:[#allocation2] sm:$0xff]
    %v304 = vld [vmem:[#allocation5] sm:$0x1]
    %v305 = vld [vmem:[#allocation5 + $0x8] sm:$0x1]
    %v306 = vld [vmem:[#allocation5 + $0x10] sm:$0x1]
    %v307 = vld [vmem:[#allocation5 + $0x18] sm:$0x1]
    %v308 = vld [vmem:[#allocation5 + $0x20] sm:$0x1]
    %v309 = vld [vmem:[#allocation5 + $0x28] sm:$0x1]
    %v310 = vld [vmem:[#allocation5 + $0x30] sm:$0x1]
    %v311 = vld [vmem:[#allocation5 + $0x38] sm:$0x1]
    %312 = vmatprep.subr.mxu0 %v78
    %313 = vmatpush1.msra.mxu0 %v77
    %314 = vmatprep.subr.mxu0 %v82
    %315 = vmatpush1.msra.mxu0 %v81
    %316 = vmatprep.subr.mxu0 %v86
    %317 = vmatpush1.msra.mxu0 %v85
    %318 = vmatprep.subr.mxu0 %v90
    %319 = vmatpush1.msra.mxu0 %v89
    %320 = vmatprep.subr.mxu0 %v94
    %321 = vmatpush1.msra.mxu0 %v93
    %322 = vmatprep.subr.mxu0 %v98
    %323 = vmatpush1.msra.mxu0 %v97
    %324 = vmatprep.subr.mxu0 %v102
    %325 = vmatpush1.msra.mxu0 %v101
    %326 = vmatprep.subr.mxu0 %v106
    %327 = vmatpush1.msra.mxu0 %v105
    %328 = vmatprep.subr.mxu0 %v110
    %329 = vmatpush1.msra.mxu0 %v109
    %330 = vmatprep.subr.mxu0 %v114
    %331 = vmatpush1.msra.mxu0 %v113
    %332 = vmatprep.subr.mxu0 %v118
    %333 = vmatpush1.msra.mxu0 %v117
    %334 = vmatprep.subr.mxu0 %v122
    %335 = vmatpush1.msra.mxu0 %v121
    %336 = vmatprep.subr.mxu0 %v126
    %337 = vmatpush1.msra.mxu0 %v125
    %338 = vmatprep.subr.mxu0 %v130
    %339 = vmatpush1.msra.mxu0 %v129
    %340 = vmatprep.subr.mxu0 %v134
    %341 = vmatpush1.msra.mxu0 %v133
    %342 = vmatprep.subr.mxu0 %v138
    %343 = vmatpush1.msra.mxu0 %v137
    %344 = vmatprep.subr.mxu0 0.0
    %345 = vmatpush1.msra.mxu0 0.0
    %346 = vmatprep.subr.mxu0 0.0
    %347 = vmatpush1.msra.mxu0 0.0
    %348 = vmatprep.subr.mxu0 0.0
    %349 = vmatpush1.msra.mxu0 0.0
    %350 = vmatprep.subr.mxu0 0.0
    %351 = vmatpush1.msra.mxu0 0.0
    %352 = vmatprep.subr.mxu0 0.0
    %353 = vmatpush1.msra.mxu0 0.0
    %354 = vmatprep.subr.mxu0 0.0
    %355 = vmatpush1.msra.mxu0 0.0
    %356 = vmatprep.subr.mxu0 0.0
    %357 = vmatpush1.msra.mxu0 0.0
    %358 = vmatprep.subr.mxu0 0.0
    %359 = vmatpush1.msra.mxu0 0.0
    %360 = vmatprep.subr.mxu0 0.0
    %361 = vmatpush1.msra.mxu0 0.0
    %362 = vmatprep.subr.mxu0 0.0
    %363 = vmatpush1.msra.mxu0 0.0
    %364 = vmatprep.subr.mxu0 0.0
    %365 = vmatpush1.msra.mxu0 0.0
    %366 = vmatprep.subr.mxu0 0.0
    %367 = vmatpush1.msra.mxu0 0.0
    %368 = vmatprep.subr.mxu0 0.0
    %369 = vmatpush1.msra.mxu0 0.0
    %370 = vmatprep.subr.mxu0 0.0
    %371 = vmatpush1.msra.mxu0 0.0
    %372 = vmatprep.subr.mxu0 0.0
    %373 = vmatpush1.msra.mxu0 0.0
    %374 = vmatprep.subr.mxu0 0.0
    %375 = vmatpush1.msra.mxu0 0.0
    %376 = vmatprep.mubr.f32.mxu0 0.0
    %377 = vmatmul.mubr.f32.gmra.mrb[0].mxu0 %v303
    %v378 = vpop.f32.mrb[0].mxu0
    %v379 = vadd.f32 %v274, %v378
    %v380 = vpop.f32.mrb[0].mxu0
    %v381 = vadd.f32 %v278, %v380
    %382 = vdwg.mxu0
    %383 = vmatprep.subr.mxu0 %v80
    %384 = vmatpush1.msra.mxu0 %v79
    %385 = vmatprep.subr.mxu0 %v84
    %386 = vmatpush1.msra.mxu0 %v83
    %387 = vmatprep.subr.mxu0 %v88
    %388 = vmatpush1.msra.mxu0 %v87
    %389 = vmatprep.subr.mxu0 %v92
    %390 = vmatpush1.msra.mxu0 %v91
    %391 = vmatprep.subr.mxu0 %v96
    %392 = vmatpush1.msra.mxu0 %v95
    %393 = vmatprep.subr.mxu0 %v100
    %394 = vmatpush1.msra.mxu0 %v99
    %395 = vmatprep.subr.mxu0 %v104
    %396 = vmatpush1.msra.mxu0 %v103
    %397 = vmatprep.subr.mxu0 %v108
    %398 = vmatpush1.msra.mxu0 %v107
    %399 = vmatprep.subr.mxu0 %v112
    %400 = vmatpush1.msra.mxu0 %v111
    %401 = vmatprep.subr.mxu0 %v116
    %402 = vmatpush1.msra.mxu0 %v115
    %403 = vmatprep.subr.mxu0 %v120
    %404 = vmatpush1.msra.mxu0 %v119
    %405 = vmatprep.subr.mxu0 %v124
    %406 = vmatpush1.msra.mxu0 %v123
    %407 = vmatprep.subr.mxu0 %v128
    %408 = vmatpush1.msra.mxu0 %v127
    %409 = vmatprep.subr.mxu0 %v132
    %410 = vmatpush1.msra.mxu0 %v131
    %411 = vmatprep.subr.mxu0 %v136
    %412 = vmatpush1.msra.mxu0 %v135
    %413 = vmatprep.subr.mxu0 %v140
    %414 = vmatpush1.msra.mxu0 %v139
    %415 = vmatprep.subr.mxu0 0.0
    %416 = vmatpush1.msra.mxu0 0.0
    %417 = vmatprep.subr.mxu0 0.0
    %418 = vmatpush1.msra.mxu0 0.0
    %419 = vmatprep.subr.mxu0 0.0
    %420 = vmatpush1.msra.mxu0 0.0
    %421 = vmatprep.subr.mxu0 0.0
    %422 = vmatpush1.msra.mxu0 0.0
    %423 = vmatprep.subr.mxu0 0.0
    %424 = vmatpush1.msra.mxu0 0.0
    %425 = vmatprep.subr.mxu0 0.0
    %426 = vmatpush1.msra.mxu0 0.0
    %427 = vmatprep.subr.mxu0 0.0
    %428 = vmatpush1.msra.mxu0 0.0
    %429 = vmatprep.subr.mxu0 0.0
    %430 = vmatpush1.msra.mxu0 0.0
    %431 = vmatprep.subr.mxu0 0.0
    %432 = vmatpush1.msra.mxu0 0.0
    %433 = vmatprep.subr.mxu0 0.0
    %434 = vmatpush1.msra.mxu0 0.0
    %435 = vmatprep.subr.mxu0 0.0
    %436 = vmatpush1.msra.mxu0 0.0
    %437 = vmatprep.subr.mxu0 0.0
    %438 = vmatpush1.msra.mxu0 0.0
    %439 = vmatprep.subr.mxu0 0.0
    %440 = vmatpush1.msra.mxu0 0.0
    %441 = vmatprep.subr.mxu0 0.0
    %442 = vmatpush1.msra.mxu0 0.0
    %443 = vmatprep.subr.mxu0 0.0
    %444 = vmatpush1.msra.mxu0 0.0
    %445 = vmatprep.subr.mxu0 0.0
    %446 = vmatpush1.msra.mxu0 0.0
    %447 = vmatprep.mubr.f32.mxu0 0.0
    %448 = vmatmul.mubr.f32.gmra.mrb[0].mxu0 %v303
    %v449 = vpop.f32.mrb[0].mxu0
    %v450 = vadd.f32 %v282, %v449
    %v451 = vpop.f32.mrb[0].mxu0
    %v452 = vadd.f32 %v286, %v451
    %453 = vdwg.mxu0
    %v454 = vtanh.pop %v379
    %v455 = vtanh.pop %v381
    %v456 = vtanh.pop %v450
    %v457 = vtanh.pop %v452
    %458 = vmatprep.subr.mxu0 %v142
    %459 = vmatpush1.msra.mxu0 %v141
    %460 = vmatprep.subr.mxu0 %v144
    %461 = vmatpush1.msra.mxu0 %v143
    %462 = vmatprep.subr.mxu0 %v146
    %463 = vmatpush1.msra.mxu0 %v145
    %464 = vmatprep.subr.mxu0 %v148
    %465 = vmatpush1.msra.mxu0 %v147
    %466 = vmatprep.subr.mxu0 %v150
    %467 = vmatpush1.msra.mxu0 %v149
    %468 = vmatprep.subr.mxu0 %v152
    %469 = vmatpush1.msra.mxu0 %v151
    %470 = vmatprep.subr.mxu0 %v154
    %471 = vmatpush1.msra.mxu0 %v153
    %472 = vmatprep.subr.mxu0 %v156
    %473 = vmatpush1.msra.mxu0 %v155
    %474 = vmatprep.subr.mxu0 %v158
    %475 = vmatpush1.msra.mxu0 %v157
    %476 = vmatprep.subr.mxu0 %v160
    %477 = vmatpush1.msra.mxu0 %v159
    %478 = vmatprep.subr.mxu0 %v162
    %479 = vmatpush1.msra.mxu0 %v161
    %480 = vmatprep.subr.mxu0 %v164
    %481 = vmatpush1.msra.mxu0 %v163
    %482 = vmatprep.subr.mxu0 %v166
    %483 = vmatpush1.msra.mxu0 %v165
    %484 = vmatprep.subr.mxu0 %v168
    %485 = vmatpush1.msra.mxu0 %v167
    %486 = vmatprep.subr.mxu0 %v170
    %487 = vmatpush1.msra.mxu0 %v169
    %488 = vmatprep.subr.mxu0 %v172
    %489 = vmatpush1.msra.mxu0 %v171
    %490 = vmatprep.subr.mxu0 %v174
    %491 = vmatpush1.msra.mxu0 %v173
    %492 = vmatprep.subr.mxu0 %v176
    %493 = vmatpush1.msra.mxu0 %v175
    %494 = vmatprep.subr.mxu0 %v178
    %495 = vmatpush1.msra.mxu0 %v177
    %496 = vmatprep.subr.mxu0 %v180
    %497 = vmatpush1.msra.mxu0 %v179
    %498 = vmatprep.subr.mxu0 %v182
    %499 = vmatpush1.msra.mxu0 %v181
    %500 = vmatprep.subr.mxu0 %v184
    %501 = vmatpush1.msra.mxu0 %v183
    %502 = vmatprep.subr.mxu0 %v186
    %503 = vmatpush1.msra.mxu0 %v185
    %504 = vmatprep.subr.mxu0 %v188
    %505 = vmatpush1.msra.mxu0 %v187
    %506 = vmatprep.subr.mxu0 %v190
    %507 = vmatpush1.msra.mxu0 %v189
    %508 = vmatprep.subr.mxu0 %v192
    %509 = vmatpush1.msra.mxu0 %v191
    %510 = vmatprep.subr.mxu0 %v194
    %511 = vmatpush1.msra.mxu0 %v193
    %512 = vmatprep.subr.mxu0 %v196
    %513 = vmatpush1.msra.mxu0 %v195
    %514 = vmatprep.subr.mxu0 %v198
    %515 = vmatpush1.msra.mxu0 %v197
    %516 = vmatprep.subr.mxu0 %v200
    %517 = vmatpush1.msra.mxu0 %v199
    %518 = vmatprep.subr.mxu0 %v202
    %519 = vmatpush1.msra.mxu0 %v201
    %520 = vmatprep.subr.mxu0 %v204
    %521 = vmatpush1.msra.mxu0 %v203
    %522 = vmatprep.mubr.f32.mxu0 %v455
    %523 = vmatmul.mubr.f32.gmra.mrb[0].mxu0 %v454
    %v524 = vpop.f32.mrb[0].mxu0
    %v525 = vadd.f32 %v296, %v524
    %v526 = vpop.f32.mrb[0].mxu0
    %v527 = vadd.f32 %v300, %v526
    %528 = vdwg.mxu0
    %529 = vmatprep.subr.mxu0 %v206
    %530 = vmatpush1.msra.mxu0 %v205
    %531 = vmatprep.subr.mxu0 %v208
    %532 = vmatpush1.msra.mxu0 %v207
    %533 = vmatprep.subr.mxu0 %v210
    %534 = vmatpush1.msra.mxu0 %v209
    %535 = vmatprep.subr.mxu0 %v212
    %536 = vmatpush1.msra.mxu0 %v211
    %537 = vmatprep.subr.mxu0 %v214
    %538 = vmatpush1.msra.mxu0 %v213
    %539 = vmatprep.subr.mxu0 %v216
    %540 = vmatpush1.msra.mxu0 %v215
    %541 = vmatprep.subr.mxu0 %v218
    %542 = vmatpush1.msra.mxu0 %v217
    %543 = vmatprep.subr.mxu0 %v220
    %544 = vmatpush1.msra.mxu0 %v219
    %545 = vmatprep.subr.mxu0 %v222
    %546 = vmatpush1.msra.mxu0 %v221
    %547 = vmatprep.subr.mxu0 %v224
    %548 = vmatpush1.msra.mxu0 %v223
    %549 = vmatprep.subr.mxu0 %v226
    %550 = vmatpush1.msra.mxu0 %v225
    %551 = vmatprep.subr.mxu0 %v228
    %552 = vmatpush1.msra.mxu0 %v227
    %553 = vmatprep.subr.mxu0 %v230
    %554 = vmatpush1.msra.mxu0 %v229
    %555 = vmatprep.subr.mxu0 %v232
    %556 = vmatpush1.msra.mxu0 %v231
    %557 = vmatprep.subr.mxu0 %v234
    %558 = vmatpush1.msra.mxu0 %v233
    %559 = vmatprep.subr.mxu0 %v236
    %560 = vmatpush1.msra.mxu0 %v235
    %561 = vmatprep.subr.mxu0 %v238
    %562 = vmatpush1.msra.mxu0 %v237
    %563 = vmatprep.subr.mxu0 %v240
    %564 = vmatpush1.msra.mxu0 %v239
    %565 = vmatprep.subr.mxu0 %v242
    %566 = vmatpush1.msra.mxu0 %v241
    %567 = vmatprep.subr.mxu0 %v244
    %568 = vmatpush1.msra.mxu0 %v243
    %569 = vmatprep.subr.mxu0 %v246
    %570 = vmatpush1.msra.mxu0 %v245
    %571 = vmatprep.subr.mxu0 %v248
    %572 = vmatpush1.msra.mxu0 %v247
    %573 = vmatprep.subr.mxu0 %v250
    %574 = vmatpush1.msra.mxu0 %v249
    %575 = vmatprep.subr.mxu0 %v252
    %576 = vmatpush1.msra.mxu0 %v251
    %577 = vmatprep.subr.mxu0 %v254
    %578 = vmatpush1.msra.mxu0 %v253
    %579 = vmatprep.subr.mxu0 %v256
    %580 = vmatpush1.msra.mxu0 %v255
    %581 = vmatprep.subr.mxu0 %v258
    %582 = vmatpush1.msra.mxu0 %v257
    %583 = vmatprep.subr.mxu0 %v260
    %584 = vmatpush1.msra.mxu0 %v259
    %585 = vmatprep.subr.mxu0 %v262
    %586 = vmatpush1.msra.mxu0 %v261
    %587 = vmatprep.subr.mxu0 %v264
    %588 = vmatpush1.msra.mxu0 %v263
    %589 = vmatprep.subr.mxu0 %v266
    %590 = vmatpush1.msra.mxu0 %v265
    %591 = vmatprep.subr.mxu0 %v268
    %592 = vmatpush1.msra.mxu0 %v267
    %593 = vmatprep.mubr.f32.mxu0 %v457
    %594 = vmatmul.mubr.f32.gmra.mrb[0].mxu0 %v456
    %v595 = vpop.f32.mrb[0].mxu0
    %v596 = vadd.f32 %v525, %v595
    %v597 = vpop.f32.mrb[0].mxu0
    %v598 = vadd.f32 %v527, %v597
    %599 = vdwg.mxu0
    %v600 = vadd.f32 %v303, %v596
    %v609 = vrot.slane %v305, 7
    %vm610 = vcmask 1041409
    %v611 = vsel %vm610, %v609, %v304
    %v612 = vrot.slane %v306, 6
    %vm613 = vcmask 1042434
    %v614 = vsel %vm613, %v612, %v611
    %v615 = vrot.slane %v307, 5
    %vm616 = vcmask 1043459
    %v617 = vsel %vm616, %v615, %v614
    %v618 = vrot.slane %v308, 4
    %vm619 = vcmask 1044484
    %v620 = vsel %vm619, %v618, %v617
    %v621 = vrot.slane %v309, 3
    %vm622 = vcmask 1045509
    %v623 = vsel %vm622, %v621, %v620
    %v624 = vrot.slane %v310, 2
    %vm625 = vcmask 1046534
    %v626 = vsel %vm625, %v624, %v623
    %v627 = vrot.slane %v311, 1
    %vm628 = vcmask 1047559
    %v629 = vsel %vm628, %v627, %v626
    %v631 = vmul.f32 %v598, %v629
    %v632 = vadd.f32 %v600, %v631
    %v633 = vld [vmem:[#allocation5 + $0x1] sm:$0x1]
    %v634 = vld [vmem:[#allocation5 + $0x9] sm:$0x1]
    %v635 = vld [vmem:[#allocation5 + $0x11] sm:$0x1]
    %v636 = vld [vmem:[#allocation5 + $0x19] sm:$0x1]
    %v637 = vld [vmem:[#allocation5 + $0x21] sm:$0x1]
    %v638 = vld [vmem:[#allocation5 + $0x29] sm:$0x1]
    %v639 = vld [vmem:[#allocation5 + $0x31] sm:$0x1]
    %v640 = vld [vmem:[#allocation5 + $0x39] sm:$0x1]
    %641 = vmatprep.subr.mxu0 %v78
    %642 = vmatpush1.msra.mxu0 %v77
    %643 = vmatprep.subr.mxu0 %v82
    %644 = vmatpush1.msra.mxu0 %v81
    %645 = vmatprep.subr.mxu0 %v86
    %646 = vmatpush1.msra.mxu0 %v85
    %647 = vmatprep.subr.mxu0 %v90
    %648 = vmatpush1.msra.mxu0 %v89
    %649 = vmatprep.subr.mxu0 %v94
    %650 = vmatpush1.msra.mxu0 %v93
    %651 = vmatprep.subr.mxu0 %v98
    %652 = vmatpush1.msra.mxu0 %v97
    %653 = vmatprep.subr.mxu0 %v102
    %654 = vmatpush1.msra.mxu0 %v101
    %655 = vmatprep.subr.mxu0 %v106
    %656 = vmatpush1.msra.mxu0 %v105
    %657 = vmatprep.subr.mxu0 %v110
    %658 = vmatpush1.msra.mxu0 %v109
    %659 = vmatprep.subr.mxu0 %v114
    %660 = vmatpush1.msra.mxu0 %v113
    %661 = vmatprep.subr.mxu0 %v118
    %662 = vmatpush1.msra.mxu0 %v117
    %663 = vmatprep.subr.mxu0 %v122
    %664 = vmatpush1.msra.mxu0 %v121
    %665 = vmatprep.subr.mxu0 %v126
    %666 = vmatpush1.msra.mxu0 %v125
    %667 = vmatprep.subr.mxu0 %v130
    %668 = vmatpush1.msra.mxu0 %v129
    %669 = vmatprep.subr.mxu0 %v134
    %670 = vmatpush1.msra.mxu0 %v133
    %671 = vmatprep.subr.mxu0 %v138
    %672 = vmatpush1.msra.mxu0 %v137
    %673 = vmatprep.subr.mxu0 0.0
    %674 = vmatpush1.msra.mxu0 0.0
    %675 = vmatprep.subr.mxu0 0.0
    %676 = vmatpush1.msra.mxu0 0.0
    %677 = vmatprep.subr.mxu0 0.0
    %678 = vmatpush1.msra.mxu0 0.0
    %679 = vmatprep.subr.mxu0 0.0
    %680 = vmatpush1.msra.mxu0 0.0
    %681 = vmatprep.subr.mxu0 0.0
    %682 = vmatpush1.msra.mxu0 0.0
    %683 = vmatprep.subr.mxu0 0.0
    %684 = vmatpush1.msra.mxu0 0.0
    %685 = vmatprep.subr.mxu0 0.0
    %686 = vmatpush1.msra.mxu0 0.0
    %687 = vmatprep.subr.mxu0 0.0
    %688 = vmatpush1.msra.mxu0 0.0
    %689 = vmatprep.subr.mxu0 0.0
    %690 = vmatpush1.msra.mxu0 0.0
    %691 = vmatprep.subr.mxu0 0.0
    %692 = vmatpush1.msra.mxu0 0.0
    %693 = vmatprep.subr.mxu0 0.0
    %694 = vmatpush1.msra.mxu0 0.0
    %695 = vmatprep.subr.mxu0 0.0
    %696 = vmatpush1.msra.mxu0 0.0
    %697 = vmatprep.subr.mxu0 0.0
    %698 = vmatpush1.msra.mxu0 0.0
    %699 = vmatprep.subr.mxu0 0.0
    %700 = vmatpush1.msra.mxu0 0.0
    %701 = vmatprep.subr.mxu0 0.0
    %702 = vmatpush1.msra.mxu0 0.0
    %703 = vmatprep.subr.mxu0 0.0
    %704 = vmatpush1.msra.mxu0 0.0
    %705 = vmatprep.mubr.f32.mxu0 0.0
    %706 = vmatmul.mubr.f32.gmra.mrb[0].mxu0 %v632
    %v707 = vpop.f32.mrb[0].mxu0
    %v708 = vadd.f32 %v274, %v707
    %v709 = vpop.f32.mrb[0].mxu0
    %v710 = vadd.f32 %v278, %v709
    %711 = vdwg.mxu0
    %712 = vmatprep.subr.mxu0 %v80
    %713 = vmatpush1.msra.mxu0 %v79
    %714 = vmatprep.subr.mxu0 %v84
    %715 = vmatpush1.msra.mxu0 %v83
    %716 = vmatprep.subr.mxu0 %v88
    %717 = vmatpush1.msra.mxu0 %v87
    %718 = vmatprep.subr.mxu0 %v92
    %719 = vmatpush1.msra.mxu0 %v91
    %720 = vmatprep.subr.mxu0 %v96
    %721 = vmatpush1.msra.mxu0 %v95
    %722 = vmatprep.subr.mxu0 %v100
    %723 = vmatpush1.msra.mxu0 %v99
    %724 = vmatprep.subr.mxu0 %v104
    %725 = vmatpush1.msra.mxu0 %v103
    %726 = vmatprep.subr.mxu0 %v108
    %727 = vmatpush1.msra.mxu0 %v107
    %728 = vmatprep.subr.mxu0 %v112
    %729 = vmatpush1.msra.mxu0 %v111
    %730 = vmatprep.subr.mxu0 %v116
    %731 = vmatpush1.msra.mxu0 %v115
    %732 = vmatprep.subr.mxu0 %v120
    %733 = vmatpush1.msra.mxu0 %v119
    %734 = vmatprep.subr.mxu0 %v124
    %735 = vmatpush1.msra.mxu0 %v123
    %736 = vmatprep.subr.mxu0 %v128
    %737 = vmatpush1.msra.mxu0 %v127
    %738 = vmatprep.subr.mxu0 %v132
    %739 = vmatpush1.msra.mxu0 %v131
    %740 = vmatprep.subr.mxu0 %v136
    %741 = vmatpush1.msra.mxu0 %v135
    %742 = vmatprep.subr.mxu0 %v140
    %743 = vmatpush1.msra.mxu0 %v139
    %744 = vmatprep.subr.mxu0 0.0
    %745 = vmatpush1.msra.mxu0 0.0
    %746 = vmatprep.subr.mxu0 0.0
    %747 = vmatpush1.msra.mxu0 0.0
    %748 = vmatprep.subr.mxu0 0.0
    %749 = vmatpush1.msra.mxu0 0.0
    %750 = vmatprep.subr.mxu0 0.0
    %751 = vmatpush1.msra.mxu0 0.0
    %752 = vmatprep.subr.mxu0 0.0
    %753 = vmatpush1.msra.mxu0 0.0
    %754 = vmatprep.subr.mxu0 0.0
    %755 = vmatpush1.msra.mxu0 0.0
    %756 = vmatprep.subr.mxu0 0.0
    %757 = vmatpush1.msra.mxu0 0.0
    %758 = vmatprep.subr.mxu0 0.0
    %759 = vmatpush1.msra.mxu0 0.0
    %760 = vmatprep.subr.mxu0 0.0
    %761 = vmatpush1.msra.mxu0 0.0
    %762 = vmatprep.subr.mxu0 0.0
    %763 = vmatpush1.msra.mxu0 0.0
    %764 = vmatprep.subr.mxu0 0.0
    %765 = vmatpush1.msra.mxu0 0.0
    %766 = vmatprep.subr.mxu0 0.0
    %767 = vmatpush1.msra.mxu0 0.0
    %768 = vmatprep.subr.mxu0 0.0
    %769 = vmatpush1.msra.mxu0 0.0
    %770 = vmatprep.subr.mxu0 0.0
    %771 = vmatpush1.msra.mxu0 0.0
    %772 = vmatprep.subr.mxu0 0.0
    %773 = vmatpush1.msra.mxu0 0.0
    %774 = vmatprep.subr.mxu0 0.0
    %775 = vmatpush1.msra.mxu0 0.0
    %776 = vmatprep.mubr.f32.mxu0 0.0
    %777 = vmatmul.mubr.f32.gmra.mrb[0].mxu0 %v632
    %v778 = vpop.f32.mrb[0].mxu0
    %v779 = vadd.f32 %v282, %v778
    %v780 = vpop.f32.mrb[0].mxu0
    %v781 = vadd.f32 %v286, %v780
    %782 = vdwg.mxu0
    %v783 = vtanh.pop %v708
    %v784 = vtanh.pop %v710
    %v785 = vtanh.pop %v779
    %v786 = vtanh.pop %v781
    %787 = vmatprep.subr.mxu0 %v142
    %788 = vmatpush1.msra.mxu0 %v141
    %789 = vmatprep.subr.mxu0 %v144
    %790 = vmatpush1.msra.mxu0 %v143
    %791 = vmatprep.subr.mxu0 %v146
    %792 = vmatpush1.msra.mxu0 %v145
    %793 = vmatprep.subr.mxu0 %v148
    %794 = vmatpush1.msra.mxu0 %v147
    %795 = vmatprep.subr.mxu0 %v150
    %796 = vmatpush1.msra.mxu0 %v149
    %797 = vmatprep.subr.mxu0 %v152
    %798 = vmatpush1.msra.mxu0 %v151
    %799 = vmatprep.subr.mxu0 %v154
    %800 = vmatpush1.msra.mxu0 %v153
    %801 = vmatprep.subr.mxu0 %v156
    %802 = vmatpush1.msra.mxu0 %v155
    %803 = vmatprep.subr.mxu0 %v158
    %804 = vmatpush1.msra.mxu0 %v157
    %805 = vmatprep.subr.mxu0 %v160
    %806 = vmatpush1.msra.mxu0 %v159
    %807 = vmatprep.subr.mxu0 %v162
    %808 = vmatpush1.msra.mxu0 %v161
    %809 = vmatprep.subr.mxu0 %v164
    %810 = vmatpush1.msra.mxu0 %v163
    %811 = vmatprep.subr.mxu0 %v166
    %812 = vmatpush1.msra.mxu0 %v165
    %813 = vmatprep.subr.mxu0 %v168
    %814 = vmatpush1.msra.mxu0 %v167
    %815 = vmatprep.subr.mxu0 %v170
    %816 = vmatpush1.msra.mxu0 %v169
    %817 = vmatprep.subr.mxu0 %v172
    %818 = vmatpush1.msra.mxu0 %v171
    %819 = vmatprep.subr.mxu0 %v174
    %820 = vmatpush1.msra.mxu0 %v173
    %821 = vmatprep.subr.mxu0 %v176
    %822 = vmatpush1.msra.mxu0 %v175
    %823 = vmatprep.subr.mxu0 %v178
    %824 = vmatpush1.msra.mxu0 %v177
    %825 = vmatprep.subr.mxu0 %v180
    %826 = vmatpush1.msra.mxu0 %v179
    %827 = vmatprep.subr.mxu0 %v182
    %828 = vmatpush1.msra.mxu0 %v181
    %829 = vmatprep.subr.mxu0 %v184
    %830 = vmatpush1.msra.mxu0 %v183
    %831 = vmatprep.subr.mxu0 %v186
    %832 = vmatpush1.msra.mxu0 %v185
    %833 = vmatprep.subr.mxu0 %v188
    %834 = vmatpush1.msra.mxu0 %v187
    %835 = vmatprep.subr.mxu0 %v190
    %836 = vmatpush1.msra.mxu0 %v189
    %837 = vmatprep.subr.mxu0 %v192
    %838 = vmatpush1.msra.mxu0 %v191
    %839 = vmatprep.subr.mxu0 %v194
    %840 = vmatpush1.msra.mxu0 %v193
    %841 = vmatprep.subr.mxu0 %v196
    %842 = vmatpush1.msra.mxu0 %v195
    %843 = vmatprep.subr.mxu0 %v198
    %844 = vmatpush1.msra.mxu0 %v197
    %845 = vmatprep.subr.mxu0 %v200
    %846 = vmatpush1.msra.mxu0 %v199
    %847 = vmatprep.subr.mxu0 %v202
    %848 = vmatpush1.msra.mxu0 %v201
    %849 = vmatprep.subr.mxu0 %v204
    %850 = vmatpush1.msra.mxu0 %v203
    %851 = vmatprep.mubr.f32.mxu0 %v784
    %852 = vmatmul.mubr.f32.gmra.mrb[0].mxu0 %v783
    %v853 = vpop.f32.mrb[0].mxu0
    %v854 = vadd.f32 %v296, %v853
    %v855 = vpop.f32.mrb[0].mxu0
    %v856 = vadd.f32 %v300, %v855
    %857 = vdwg.mxu0
    %858 = vmatprep.subr.mxu0 %v206
    %859 = vmatpush1.msra.mxu0 %v205
    %860 = vmatprep.subr.mxu0 %v208
    %861 = vmatpush1.msra.mxu0 %v207
    %862 = vmatprep.subr.mxu0 %v210
    %863 = vmatpush1.msra.mxu0 %v209
    %864 = vmatprep.subr.mxu0 %v212
    %865 = vmatpush1.msra.mxu0 %v211
    %866 = vmatprep.subr.mxu0 %v214
    %867 = vmatpush1.msra.mxu0 %v213
    %868 = vmatprep.subr.mxu0 %v216
    %869 = vmatpush1.msra.mxu0 %v215
    %870 = vmatprep.subr.mxu0 %v218
    %871 = vmatpush1.msra.mxu0 %v217
    %872 = vmatprep.subr.mxu0 %v220
    %873 = vmatpush1.msra.mxu0 %v219
    %874 = vmatprep.subr.mxu0 %v222
    %875 = vmatpush1.msra.mxu0 %v221
    %876 = vmatprep.subr.mxu0 %v224
    %877 = vmatpush1.msra.mxu0 %v223
    %878 = vmatprep.subr.mxu0 %v226
    %879 = vmatpush1.msra.mxu0 %v225
    %880 = vmatprep.subr.mxu0 %v228
    %881 = vmatpush1.msra.mxu0 %v227
    %882 = vmatprep.subr.mxu0 %v230
    %883 = vmatpush1.msra.mxu0 %v229
    %884 = vmatprep.subr.mxu0 %v232
    %885 = vmatpush1.msra.mxu0 %v231
    %886 = vmatprep.subr.mxu0 %v234
    %887 = vmatpush1.msra.mxu0 %v233
    %888 = vmatprep.subr.mxu0 %v236
    %889 = vmatpush1.msra.mxu0 %v235
    %890 = vmatprep.subr.mxu0 %v238
    %891 = vmatpush1.msra.mxu0 %v237
    %892 = vmatprep.subr.mxu0 %v240
    %893 = vmatpush1.msra.mxu0 %v239
    %894 = vmatprep.subr.mxu0 %v242
    %895 = vmatpush1.msra.mxu0 %v241
    %896 = vmatprep.subr.mxu0 %v244
    %897 = vmatpush1.msra.mxu0 %v243
    %898 = vmatprep.subr.mxu0 %v246
    %899 = vmatpush1.msra.mxu0 %v245
    %900 = vmatprep.subr.mxu0 %v248
    %901 = vmatpush1.msra.mxu0 %v247
    %902 = vmatprep.subr.mxu0 %v250
    %903 = vmatpush1.msra.mxu0 %v249
    %904 = vmatprep.subr.mxu0 %v252
    %905 = vmatpush1.msra.mxu0 %v251
    %906 = vmatprep.subr.mxu0 %v254
    %907 = vmatpush1.msra.mxu0 %v253
    %908 = vmatprep.subr.mxu0 %v256
    %909 = vmatpush1.msra.mxu0 %v255
    %910 = vmatprep.subr.mxu0 %v258
    %911 = vmatpush1.msra.mxu0 %v257
    %912 = vmatprep.subr.mxu0 %v260
    %913 = vmatpush1.msra.mxu0 %v259
    %914 = vmatprep.subr.mxu0 %v262
    %915 = vmatpush1.msra.mxu0 %v261
    %916 = vmatprep.subr.mxu0 %v264
    %917 = vmatpush1.msra.mxu0 %v263
    %918 = vmatprep.subr.mxu0 %v266
    %919 = vmatpush1.msra.mxu0 %v265
    %920 = vmatprep.subr.mxu0 %v268
    %921 = vmatpush1.msra.mxu0 %v267
    %922 = vmatprep.mubr.f32.mxu0 %v786
    %923 = vmatmul.mubr.f32.gmra.mrb[0].mxu0 %v785
    %v924 = vpop.f32.mrb[0].mxu0
    %v925 = vadd.f32 %v854, %v924
    %v926 = vpop.f32.mrb[0].mxu0
    %v927 = vadd.f32 %v856, %v926
    %928 = vdwg.mxu0
    %v929 = vadd.f32 %v632, %v925
    %v938 = vrot.slane %v634, 7
    %v939 = vsel %vm610, %v938, %v633
    %v940 = vrot.slane %v635, 6
    %v941 = vsel %vm613, %v940, %v939
    %v942 = vrot.slane %v636, 5
    %v943 = vsel %vm616, %v942, %v941
    %v944 = vrot.slane %v637, 4
    %v945 = vsel %vm619, %v944, %v943
    %v946 = vrot.slane %v638, 3
    %v947 = vsel %vm622, %v946, %v945
    %v948 = vrot.slane %v639, 2
    %v949 = vsel %vm625, %v948, %v947
    %v950 = vrot.slane %v640, 1
    %v951 = vsel %vm628, %v950, %v949
    %v953 = vmul.f32 %v927, %v951
    %v954 = vadd.f32 %v929, %v953
    %v955 = vld [vmem:[#allocation5 + $0x2] sm:$0x1]
    %v956 = vld [vmem:[#allocation5 + $0xa] sm:$0x1]
    %v957 = vld [vmem:[#allocation5 + $0x12] sm:$0x1]
    %v958 = vld [vmem:[#allocation5 + $0x1a] sm:$0x1]
    %v959 = vld [vmem:[#allocation5 + $0x22] sm:$0x1]
    %v960 = vld [vmem:[#allocation5 + $0x2a] sm:$0x1]
    %v961 = vld [vmem:[#allocation5 + $0x32] sm:$0x1]
    %v962 = vld [vmem:[#allocation5 + $0x3a] sm:$0x1]
    %963 = vmatprep.subr.mxu0 %v78
    %964 = vmatpush1.msra.mxu0 %v77
    %965 = vmatprep.subr.mxu0 %v82
    %966 = vmatpush1.msra.mxu0 %v81
    %967 = vmatprep.subr.mxu0 %v86
    %968 = vmatpush1.msra.mxu0 %v85
    %969 = vmatprep.subr.mxu0 %v90
    %970 = vmatpush1.msra.mxu0 %v89
    %971 = vmatprep.subr.mxu0 %v94
    %972 = vmatpush1.msra.mxu0 %v93
    %973 = vmatprep.subr.mxu0 %v98
    %974 = vmatpush1.msra.mxu0 %v97
    %975 = vmatprep.subr.mxu0 %v102
    %976 = vmatpush1.msra.mxu0 %v101
    %977 = vmatprep.subr.mxu0 %v106
    %978 = vmatpush1.msra.mxu0 %v105
    %979 = vmatprep.subr.mxu0 %v110
    %980 = vmatpush1.msra.mxu0 %v109
    %981 = vmatprep.subr.mxu0 %v114
    %982 = vmatpush1.msra.mxu0 %v113
    %983 = vmatprep.subr.mxu0 %v118
    %984 = vmatpush1.msra.mxu0 %v117
    %985 = vmatprep.subr.mxu0 %v122
    %986 = vmatpush1.msra.mxu0 %v121
    %987 = vmatprep.subr.mxu0 %v126
    %988 = vmatpush1.msra.mxu0 %v125
    %989 = vmatprep.subr.mxu0 %v130
    %990 = vmatpush1.msra.mxu0 %v129
    %991 = vmatprep.subr.mxu0 %v134
    %992 = vmatpush1.msra.mxu0 %v133
    %993 = vmatprep.subr.mxu0 %v138
    %994 = vmatpush1.msra.mxu0 %v137
    %995 = vmatprep.subr.mxu0 0.0
    %996 = vmatpush1.msra.mxu0 0.0
    %997 = vmatprep.subr.mxu0 0.0
    %998 = vmatpush1.msra.mxu0 0.0
    %999 = vmatprep.subr.mxu0 0.0
    %1000 = vmatpush1.msra.mxu0 0.0
    %1001 = vmatprep.subr.mxu0 0.0
    %1002 = vmatpush1.msra.mxu0 0.0
    %1003 = vmatprep.subr.mxu0 0.0
    %1004 = vmatpush1.msra.mxu0 0.0
    %1005 = vmatprep.subr.mxu0 0.0
    %1006 = vmatpush1.msra.mxu0 0.0
    %1007 = vmatprep.subr.mxu0 0.0
    %1008 = vmatpush1.msra.mxu0 0.0
    %1009 = vmatprep.subr.mxu0 0.0
    %1010 = vmatpush1.msra.mxu0 0.0
    %1011 = vmatprep.subr.mxu0 0.0
    %1012 = vmatpush1.msra.mxu0 0.0
    %1013 = vmatprep.subr.mxu0 0.0
    %1014 = vmatpush1.msra.mxu0 0.0
    %1015 = vmatprep.subr.mxu0 0.0
    %1016 = vmatpush1.msra.mxu0 0.0
    %1017 = vmatprep.subr.mxu0 0.0
    %1018 = vmatpush1.msra.mxu0 0.0
    %1019 = vmatprep.subr.mxu0 0.0
    %1020 = vmatpush1.msra.mxu0 0.0
    %1021 = vmatprep.subr.mxu0 0.0
    %1022 = vmatpush1.msra.mxu0 0.0
    %1023 = vmatprep.subr.mxu0 0.0
    %1024 = vmatpush1.msra.mxu0 0.0
    %1025 = vmatprep.subr.mxu0 0.0
    %1026 = vmatpush1.msra.mxu0 0.0
    %1027 = vmatprep.mubr.f32.mxu0 0.0
    %1028 = vmatmul.mubr.f32.gmra.mrb[0].mxu0 %v954
    %v1029 = vpop.f32.mrb[0].mxu0
    %v1030 = vadd.f32 %v274, %v1029
    %v1031 = vpop.f32.mrb[0].mxu0
    %v1032 = vadd.f32 %v278, %v1031
    %1033 = vdwg.mxu0
    %1034 = vmatprep.subr.mxu0 %v80
    %1035 = vmatpush1.msra.mxu0 %v79
    %1036 = vmatprep.subr.mxu0 %v84
    %1037 = vmatpush1.msra.mxu0 %v83
    %1038 = vmatprep.subr.mxu0 %v88
    %1039 = vmatpush1.msra.mxu0 %v87
    %1040 = vmatprep.subr.mxu0 %v92
    %1041 = vmatpush1.msra.mxu0 %v91
    %1042 = vmatprep.subr.mxu0 %v96
    %1043 = vmatpush1.msra.mxu0 %v95
    %1044 = vmatprep.subr.mxu0 %v100
    %1045 = vmatpush1.msra.mxu0 %v99
    %1046 = vmatprep.subr.mxu0 %v104
    %1047 = vmatpush1.msra.mxu0 %v103
    %1048 = vmatprep.subr.mxu0 %v108
    %1049 = vmatpush1.msra.mxu0 %v107
    %1050 = vmatprep.subr.mxu0 %v112
    %1051 = vmatpush1.msra.mxu0 %v111
    %1052 = vmatprep.subr.mxu0 %v116
    %1053 = vmatpush1.msra.mxu0 %v115
    %1054 = vmatprep.subr.mxu0 %v120
    %1055 = vmatpush1.msra.mxu0 %v119
    %1056 = vmatprep.subr.mxu0 %v124
    %1057 = vmatpush1.msra.mxu0 %v123
    %1058 = vmatprep.subr.mxu0 %v128
    %1059 = vmatpush1.msra.mxu0 %v127
    %1060 = vmatprep.subr.mxu0 %v132
    %1061 = vmatpush1.msra.mxu0 %v131
    %1062 = vmatprep.subr.mxu0 %v136
    %1063 = vmatpush1.msra.mxu0 %v135
    %1064 = vmatprep.subr.mxu0 %v140
    %1065 = vmatpush1.msra.mxu0 %v139
    %1066 = vmatprep.subr.mxu0 0.0
    %1067 = vmatpush1.msra.mxu0 0.0
    %1068 = vmatprep.subr.mxu0 0.0
    %1069 = vmatpush1.msra.mxu0 0.0
    %1070 = vmatprep.subr.mxu0 0.0
    %1071 = vmatpush1.msra.mxu0 0.0
    %1072 = vmatprep.subr.mxu0 0.0
    %1073 = vmatpush1.msra.mxu0 0.0
    %1074 = vmatprep.subr.mxu0 0.0
    %1075 = vmatpush1.msra.mxu0 0.0
    %1076 = vmatprep.subr.mxu0 0.0
    %1077 = vmatpush1.msra.mxu0 0.0
    %1078 = vmatprep.subr.mxu0 0.0
    %1079 = vmatpush1.msra.mxu0 0.0
    %1080 = vmatprep.subr.mxu0 0.0
    %1081 = vmatpush1.msra.mxu0 0.0
    %1082 = vmatprep.subr.mxu0 0.0
    %1083 = vmatpush1.msra.mxu0 0.0
    %1084 = vmatprep.subr.mxu0 0.0
    %1085 = vmatpush1.msra.mxu0 0.0
    %1086 = vmatprep.subr.mxu0 0.0
    %1087 = vmatpush1.msra.mxu0 0.0
    %1088 = vmatprep.subr.mxu0 0.0
    %1089 = vmatpush1.msra.mxu0 0.0
    %1090 = vmatprep.subr.mxu0 0.0
    %1091 = vmatpush1.msra.mxu0 0.0
    %1092 = vmatprep.subr.mxu0 0.0
    %1093 = vmatpush1.msra.mxu0 0.0
    %1094 = vmatprep.subr.mxu0 0.0
    %1095 = vmatpush1.msra.mxu0 0.0
    %1096 = vmatprep.subr.mxu0 0.0
    %1097 = vmatpush1.msra.mxu0 0.0
    %1098 = vmatprep.mubr.f32.mxu0 0.0
    %1099 = vmatmul.mubr.f32.gmra.mrb[0].mxu0 %v954
    %v1100 = vpop.f32.mrb[0].mxu0
    %v1101 = vadd.f32 %v282, %v1100
    %v1102 = vpop.f32.mrb[0].mxu0
    %v1103 = vadd.f32 %v286, %v1102
    %1104 = vdwg.mxu0
    %v1105 = vtanh.pop %v1030
    %v1106 = vtanh.pop %v1032
    %v1107 = vtanh.pop %v1101
    %v1108 = vtanh.pop %v1103
    %1109 = vmatprep.subr.mxu0 %v142
    %1110 = vmatpush1.msra.mxu0 %v141
    %1111 = vmatprep.subr.mxu0 %v144
    %1112 = vmatpush1.msra.mxu0 %v143
    %1113 = vmatprep.subr.mxu0 %v146
    %1114 = vmatpush1.msra.mxu0 %v145
    %1115 = vmatprep.subr.mxu0 %v148
    %1116 = vmatpush1.msra.mxu0 %v147
    %1117 = vmatprep.subr.mxu0 %v150
    %1118 = vmatpush1.msra.mxu0 %v149
    %1119 = vmatprep.subr.mxu0 %v152
    %1120 = vmatpush1.msra.mxu0 %v151
    %1121 = vmatprep.subr.mxu0 %v154
    %1122 = vmatpush1.msra.mxu0 %v153
    %1123 = vmatprep.subr.mxu0 %v156
    %1124 = vmatpush1.msra.mxu0 %v155
    %1125 = vmatprep.subr.mxu0 %v158
    %1126 = vmatpush1.msra.mxu0 %v157
    %1127 = vmatprep.subr.mxu0 %v160
    %1128 = vmatpush1.msra.mxu0 %v159
    %1129 = vmatprep.subr.mxu0 %v162
    %1130 = vmatpush1.msra.mxu0 %v161
    %1131 = vmatprep.subr.mxu0 %v164
    %1132 = vmatpush1.msra.mxu0 %v163
    %1133 = vmatprep.subr.mxu0 %v166
    %1134 = vmatpush1.msra.mxu0 %v165
    %1135 = vmatprep.subr.mxu0 %v168
    %1136 = vmatpush1.msra.mxu0 %v167
    %1137 = vmatprep.subr.mxu0 %v170
    %1138 = vmatpush1.msra.mxu0 %v169
    %1139 = vmatprep.subr.mxu0 %v172
    %1140 = vmatpush1.msra.mxu0 %v171
    %1141 = vmatprep.subr.mxu0 %v174
    %1142 = vmatpush1.msra.mxu0 %v173
    %1143 = vmatprep.subr.mxu0 %v176
    %1144 = vmatpush1.msra.mxu0 %v175
    %1145 = vmatprep.subr.mxu0 %v178
    %1146 = vmatpush1.msra.mxu0 %v177
    %1147 = vmatprep.subr.mxu0 %v180
    %1148 = vmatpush1.msra.mxu0 %v179
    %1149 = vmatprep.subr.mxu0 %v182
    %1150 = vmatpush1.msra.mxu0 %v181
    %1151 = vmatprep.subr.mxu0 %v184
    %1152 = vmatpush1.msra.mxu0 %v183
    %1153 = vmatprep.subr.mxu0 %v186
    %1154 = vmatpush1.msra.mxu0 %v185
    %1155 = vmatprep.subr.mxu0 %v188
    %1156 = vmatpush1.msra.mxu0 %v187
    %1157 = vmatprep.subr.mxu0 %v190
    %1158 = vmatpush1.msra.mxu0 %v189
    %1159 = vmatprep.subr.mxu0 %v192
    %1160 = vmatpush1.msra.mxu0 %v191
    %1161 = vmatprep.subr.mxu0 %v194
    %1162 = vmatpush1.msra.mxu0 %v193
    %1163 = vmatprep.subr.mxu0 %v196
    %1164 = vmatpush1.msra.mxu0 %v195
    %1165 = vmatprep.subr.mxu0 %v198
    %1166 = vmatpush1.msra.mxu0 %v197
    %1167 = vmatprep.subr.mxu0 %v200
    %1168 = vmatpush1.msra.mxu0 %v199
    %1169 = vmatprep.subr.mxu0 %v202
    %1170 = vmatpush1.msra.mxu0 %v201
    %1171 = vmatprep.subr.mxu0 %v204
    %1172 = vmatpush1.msra.mxu0 %v203
    %1173 = vmatprep.mubr.f32.mxu0 %v1106
    %1174 = vmatmul.mubr.f32.gmra.mrb[0].mxu0 %v1105
    %v1175 = vpop.f32.mrb[0].mxu0
    %v1176 = vadd.f32 %v296, %v1175
    %v1177 = vpop.f32.mrb[0].mxu0
    %v1178 = vadd.f32 %v300, %v1177
    %1179 = vdwg.mxu0
    %1180 = vmatprep.subr.mxu0 %v206
    %1181 = vmatpush1.msra.mxu0 %v205
    %1182 = vmatprep.subr.mxu0 %v208
    %1183 = vmatpush1.msra.mxu0 %v207
    %1184 = vmatprep.subr.mxu0 %v210
    %1185 = vmatpush1.msra.mxu0 %v209
    %1186 = vmatprep.subr.mxu0 %v212
    %1187 = vmatpush1.msra.mxu0 %v211
    %1188 = vmatprep.subr.mxu0 %v214
    %1189 = vmatpush1.msra.mxu0 %v213
    %1190 = vmatprep.subr.mxu0 %v216
    %1191 = vmatpush1.msra.mxu0 %v215
    %1192 = vmatprep.subr.mxu0 %v218
    %1193 = vmatpush1.msra.mxu0 %v217
    %1194 = vmatprep.subr.mxu0 %v220
    %1195 = vmatpush1.msra.mxu0 %v219
    %1196 = vmatprep.subr.mxu0 %v222
    %1197 = vmatpush1.msra.mxu0 %v221
    %1198 = vmatprep.subr.mxu0 %v224
    %1199 = vmatpush1.msra.mxu0 %v223
    %1200 = vmatprep.subr.mxu0 %v226
    %1201 = vmatpush1.msra.mxu0 %v225
    %1202 = vmatprep.subr.mxu0 %v228
    %1203 = vmatpush1.msra.mxu0 %v227
    %1204 = vmatprep.subr.mxu0 %v230
    %1205 = vmatpush1.msra.mxu0 %v229
    %1206 = vmatprep.subr.mxu0 %v232
    %1207 = vmatpush1.msra.mxu0 %v231
    %1208 = vmatprep.subr.mxu0 %v234
    %1209 = vmatpush1.msra.mxu0 %v233
    %1210 = vmatprep.subr.mxu0 %v236
    %1211 = vmatpush1.msra.mxu0 %v235
    %1212 = vmatprep.subr.mxu0 %v238
    %1213 = vmatpush1.msra.mxu0 %v237
    %1214 = vmatprep.subr.mxu0 %v240
    %1215 = vmatpush1.msra.mxu0 %v239
    %1216 = vmatprep.subr.mxu0 %v242
    %1217 = vmatpush1.msra.mxu0 %v241
    %1218 = vmatprep.subr.mxu0 %v244
    %1219 = vmatpush1.msra.mxu0 %v243
    %1220 = vmatprep.subr.mxu0 %v246
    %1221 = vmatpush1.msra.mxu0 %v245
    %1222 = vmatprep.subr.mxu0 %v248
    %1223 = vmatpush1.msra.mxu0 %v247
    %1224 = vmatprep.subr.mxu0 %v250
    %1225 = vmatpush1.msra.mxu0 %v249
    %1226 = vmatprep.subr.mxu0 %v252
    %1227 = vmatpush1.msra.mxu0 %v251
    %1228 = vmatprep.subr.mxu0 %v254
    %1229 = vmatpush1.msra.mxu0 %v253
    %1230 = vmatprep.subr.mxu0 %v256
    %1231 = vmatpush1.msra.mxu0 %v255
    %1232 = vmatprep.subr.mxu0 %v258
    %1233 = vmatpush1.msra.mxu0 %v257
    %1234 = vmatprep.subr.mxu0 %v260
    %1235 = vmatpush1.msra.mxu0 %v259
    %1236 = vmatprep.subr.mxu0 %v262
    %1237 = vmatpush1.msra.mxu0 %v261
    %1238 = vmatprep.subr.mxu0 %v264
    %1239 = vmatpush1.msra.mxu0 %v263
    %1240 = vmatprep.subr.mxu0 %v266
    %1241 = vmatpush1.msra.mxu0 %v265
    %1242 = vmatprep.subr.mxu0 %v268
    %1243 = vmatpush1.msra.mxu0 %v267
    %1244 = vmatprep.mubr.f32.mxu0 %v1108
    %1245 = vmatmul.mubr.f32.gmra.mrb[0].mxu0 %v1107
    %v1246 = vpop.f32.mrb[0].mxu0
    %v1247 = vadd.f32 %v1176, %v1246
    %v1248 = vpop.f32.mrb[0].mxu0
    %v1249 = vadd.f32 %v1178, %v1248
    %1250 = vdwg.mxu0
    %v1251 = vadd.f32 %v954, %v1247
    %v1260 = vrot.slane %v956, 7
    %v1261 = vsel %vm610, %v1260, %v955
    %v1262 = vrot.slane %v957, 6
    %v1263 = vsel %vm613, %v1262, %v1261
    %v1264 = vrot.slane %v958, 5
    %v1265 = vsel %vm616, %v1264, %v1263
    %v1266 = vrot.slane %v959, 4
    %v1267 = vsel %vm619, %v1266, %v1265
    %v1268 = vrot.slane %v960, 3
    %v1269 = vsel %vm622, %v1268, %v1267
    %v1270 = vrot.slane %v961, 2
    %v1271 = vsel %vm625, %v1270, %v1269
    %v1272 = vrot.slane %v962, 1
    %v1273 = vsel %vm628, %v1272, %v1271
    %v1275 = vmul.f32 %v1249, %v1273
    %v1276 = vadd.f32 %v1251, %v1275
    %v1277 = vld [vmem:[#allocation5 + $0x3] sm:$0x1]
    %v1278 = vld [vmem:[#allocation5 + $0xb] sm:$0x1]
    %v1279 = vld [vmem:[#allocation5 + $0x13] sm:$0x1]
    %v1280 = vld [vmem:[#allocation5 + $0x1b] sm:$0x1]
    %v1281 = vld [vmem:[#allocation5 + $0x23] sm:$0x1]
    %v1282 = vld [vmem:[#allocation5 + $0x2b] sm:$0x1]
    %v1283 = vld [vmem:[#allocation5 + $0x33] sm:$0x1]
    %v1284 = vld [vmem:[#allocation5 + $0x3b] sm:$0x1]
    %1285 = vmatprep.subr.mxu0 %v78
    %1286 = vmatpush1.msra.mxu0 %v77
    %1287 = vmatprep.subr.mxu0 %v82
    %1288 = vmatpush1.msra.mxu0 %v81
    %1289 = vmatprep.subr.mxu0 %v86
    %1290 = vmatpush1.msra.mxu0 %v85
    %1291 = vmatprep.subr.mxu0 %v90
    %1292 = vmatpush1.msra.mxu0 %v89
    %1293 = vmatprep.subr.mxu0 %v94
    %1294 = vmatpush1.msra.mxu0 %v93
    %1295 = vmatprep.subr.mxu0 %v98
    %1296 = vmatpush1.msra.mxu0 %v97
    %1297 = vmatprep.subr.mxu0 %v102
    %1298 = vmatpush1.msra.mxu0 %v101
    %1299 = vmatprep.subr.mxu0 %v106
    %1300 = vmatpush1.msra.mxu0 %v105
    %1301 = vmatprep.subr.mxu0 %v110
    %1302 = vmatpush1.msra.mxu0 %v109
    %1303 = vmatprep.subr.mxu0 %v114
    %1304 = vmatpush1.msra.mxu0 %v113
    %1305 = vmatprep.subr.mxu0 %v118
    %1306 = vmatpush1.msra.mxu0 %v117
    %1307 = vmatprep.subr.mxu0 %v122
    %1308 = vmatpush1.msra.mxu0 %v121
    %1309 = vmatprep.subr.mxu0 %v126
    %1310 = vmatpush1.msra.mxu0 %v125
    %1311 = vmatprep.subr.mxu0 %v130
    %1312 = vmatpush1.msra.mxu0 %v129
    %1313 = vmatprep.subr.mxu0 %v134
    %1314 = vmatpush1.msra.mxu0 %v133
    %1315 = vmatprep.subr.mxu0 %v138
    %1316 = vmatpush1.msra.mxu0 %v137
    %1317 = vmatprep.subr.mxu0 0.0
    %1318 = vmatpush1.msra.mxu0 0.0
    %1319 = vmatprep.subr.mxu0 0.0
    %1320 = vmatpush1.msra.mxu0 0.0
    %1321 = vmatprep.subr.mxu0 0.0
    %1322 = vmatpush1.msra.mxu0 0.0
    %1323 = vmatprep.subr.mxu0 0.0
    %1324 = vmatpush1.msra.mxu0 0.0
    %1325 = vmatprep.subr.mxu0 0.0
    %1326 = vmatpush1.msra.mxu0 0.0
    %1327 = vmatprep.subr.mxu0 0.0
    %1328 = vmatpush1.msra.mxu0 0.0
    %1329 = vmatprep.subr.mxu0 0.0
    %1330 = vmatpush1.msra.mxu0 0.0
    %1331 = vmatprep.subr.mxu0 0.0
    %1332 = vmatpush1.msra.mxu0 0.0
    %1333 = vmatprep.subr.mxu0 0.0
    %1334 = vmatpush1.msra.mxu0 0.0
    %1335 = vmatprep.subr.mxu0 0.0
    %1336 = vmatpush1.msra.mxu0 0.0
    %1337 = vmatprep.subr.mxu0 0.0
    %1338 = vmatpush1.msra.mxu0 0.0
    %1339 = vmatprep.subr.mxu0 0.0
    %1340 = vmatpush1.msra.mxu0 0.0
    %1341 = vmatprep.subr.mxu0 0.0
    %1342 = vmatpush1.msra.mxu0 0.0
    %1343 = vmatprep.subr.mxu0 0.0
    %1344 = vmatpush1.msra.mxu0 0.0
    %1345 = vmatprep.subr.mxu0 0.0
    %1346 = vmatpush1.msra.mxu0 0.0
    %1347 = vmatprep.subr.mxu0 0.0
    %1348 = vmatpush1.msra.mxu0 0.0
    %1349 = vmatprep.mubr.f32.mxu0 0.0
    %1350 = vmatmul.mubr.f32.gmra.mrb[0].mxu0 %v1276
    %v1351 = vpop.f32.mrb[0].mxu0
    %v1352 = vadd.f32 %v274, %v1351
    %v1353 = vpop.f32.mrb[0].mxu0
    %v1354 = vadd.f32 %v278, %v1353
    %1355 = vdwg.mxu0
    %1356 = vmatprep.subr.mxu0 %v80
    %1357 = vmatpush1.msra.mxu0 %v79
    %1358 = vmatprep.subr.mxu0 %v84
    %1359 = vmatpush1.msra.mxu0 %v83
    %1360 = vmatprep.subr.mxu0 %v88
    %1361 = vmatpush1.msra.mxu0 %v87
    %1362 = vmatprep.subr.mxu0 %v92
    %1363 = vmatpush1.msra.mxu0 %v91
    %1364 = vmatprep.subr.mxu0 %v96
    %1365 = vmatpush1.msra.mxu0 %v95
    %1366 = vmatprep.subr.mxu0 %v100
    %1367 = vmatpush1.msra.mxu0 %v99
    %1368 = vmatprep.subr.mxu0 %v104
    %1369 = vmatpush1.msra.mxu0 %v103
    %1370 = vmatprep.subr.mxu0 %v108
    %1371 = vmatpush1.msra.mxu0 %v107
    %1372 = vmatprep.subr.mxu0 %v112
    %1373 = vmatpush1.msra.mxu0 %v111
    %1374 = vmatprep.subr.mxu0 %v116
    %1375 = vmatpush1.msra.mxu0 %v115
    %1376 = vmatprep.subr.mxu0 %v120
    %1377 = vmatpush1.msra.mxu0 %v119
    %1378 = vmatprep.subr.mxu0 %v124
    %1379 = vmatpush1.msra.mxu0 %v123
    %1380 = vmatprep.subr.mxu0 %v128
    %1381 = vmatpush1.msra.mxu0 %v127
    %1382 = vmatprep.subr.mxu0 %v132
    %1383 = vmatpush1.msra.mxu0 %v131
    %1384 = vmatprep.subr.mxu0 %v136
    %1385 = vmatpush1.msra.mxu0 %v135
    %1386 = vmatprep.subr.mxu0 %v140
    %1387 = vmatpush1.msra.mxu0 %v139
    %1388 = vmatprep.subr.mxu0 0.0
    %1389 = vmatpush1.msra.mxu0 0.0
    %1390 = vmatprep.subr.mxu0 0.0
    %1391 = vmatpush1.msra.mxu0 0.0
    %1392 = vmatprep.subr.mxu0 0.0
    %1393 = vmatpush1.msra.mxu0 0.0
    %1394 = vmatprep.subr.mxu0 0.0
    %1395 = vmatpush1.msra.mxu0 0.0
    %1396 = vmatprep.subr.mxu0 0.0
    %1397 = vmatpush1.msra.mxu0 0.0
    %1398 = vmatprep.subr.mxu0 0.0
    %1399 = vmatpush1.msra.mxu0 0.0
    %1400 = vmatprep.subr.mxu0 0.0
    %1401 = vmatpush1.msra.mxu0 0.0
    %1402 = vmatprep.subr.mxu0 0.0
    %1403 = vmatpush1.msra.mxu0 0.0
    %1404 = vmatprep.subr.mxu0 0.0
    %1405 = vmatpush1.msra.mxu0 0.0
    %1406 = vmatprep.subr.mxu0 0.0
    %1407 = vmatpush1.msra.mxu0 0.0
    %1408 = vmatprep.subr.mxu0 0.0
    %1409 = vmatpush1.msra.mxu0 0.0
    %1410 = vmatprep.subr.mxu0 0.0
    %1411 = vmatpush1.msra.mxu0 0.0
    %1412 = vmatprep.subr.mxu0 0.0
    %1413 = vmatpush1.msra.mxu0 0.0
    %1414 = vmatprep.subr.mxu0 0.0
    %1415 = vmatpush1.msra.mxu0 0.0
    %1416 = vmatprep.subr.mxu0 0.0
    %1417 = vmatpush1.msra.mxu0 0.0
    %1418 = vmatprep.subr.mxu0 0.0
    %1419 = vmatpush1.msra.mxu0 0.0
    %1420 = vmatprep.mubr.f32.mxu0 0.0
    %1421 = vmatmul.mubr.f32.gmra.mrb[0].mxu0 %v1276
    %v1422 = vpop.f32.mrb[0].mxu0
    %v1423 = vadd.f32 %v282, %v1422
    %v1424 = vpop.f32.mrb[0].mxu0
    %v1425 = vadd.f32 %v286, %v1424
    %1426 = vdwg.mxu0
    %v1427 = vtanh.pop %v1352
    %v1428 = vtanh.pop %v1354
    %v1429 = vtanh.pop %v1423
    %v1430 = vtanh.pop %v1425
    %1431 = vmatprep.subr.mxu0 %v142
    %1432 = vmatpush1.msra.mxu0 %v141
    %1433 = vmatprep.subr.mxu0 %v144
    %1434 = vmatpush1.msra.mxu0 %v143
    %1435 = vmatprep.subr.mxu0 %v146
    %1436 = vmatpush1.msra.mxu0 %v145
    %1437 = vmatprep.subr.mxu0 %v148
    %1438 = vmatpush1.msra.mxu0 %v147
    %1439 = vmatprep.subr.mxu0 %v150
    %1440 = vmatpush1.msra.mxu0 %v149
    %1441 = vmatprep.subr.mxu0 %v152
    %1442 = vmatpush1.msra.mxu0 %v151
    %1443 = vmatprep.subr.mxu0 %v154
    %1444 = vmatpush1.msra.mxu0 %v153
    %1445 = vmatprep.subr.mxu0 %v156
    %1446 = vmatpush1.msra.mxu0 %v155
    %1447 = vmatprep.subr.mxu0 %v158
    %1448 = vmatpush1.msra.mxu0 %v157
    %1449 = vmatprep.subr.mxu0 %v160
    %1450 = vmatpush1.msra.mxu0 %v159
    %1451 = vmatprep.subr.mxu0 %v162
    %1452 = vmatpush1.msra.mxu0 %v161
    %1453 = vmatprep.subr.mxu0 %v164
    %1454 = vmatpush1.msra.mxu0 %v163
    %1455 = vmatprep.subr.mxu0 %v166
    %1456 = vmatpush1.msra.mxu0 %v165
    %1457 = vmatprep.subr.mxu0 %v168
    %1458 = vmatpush1.msra.mxu0 %v167
    %1459 = vmatprep.subr.mxu0 %v170
    %1460 = vmatpush1.msra.mxu0 %v169
    %1461 = vmatprep.subr.mxu0 %v172
    %1462 = vmatpush1.msra.mxu0 %v171
    %1463 = vmatprep.subr.mxu0 %v174
    %1464 = vmatpush1.msra.mxu0 %v173
    %1465 = vmatprep.subr.mxu0 %v176
    %1466 = vmatpush1.msra.mxu0 %v175
    %1467 = vmatprep.subr.mxu0 %v178
    %1468 = vmatpush1.msra.mxu0 %v177
    %1469 = vmatprep.subr.mxu0 %v180
    %1470 = vmatpush1.msra.mxu0 %v179
    %1471 = vmatprep.subr.mxu0 %v182
    %1472 = vmatpush1.msra.mxu0 %v181
    %1473 = vmatprep.subr.mxu0 %v184
    %1474 = vmatpush1.msra.mxu0 %v183
    %1475 = vmatprep.subr.mxu0 %v186
    %1476 = vmatpush1.msra.mxu0 %v185
    %1477 = vmatprep.subr.mxu0 %v188
    %1478 = vmatpush1.msra.mxu0 %v187
    %1479 = vmatprep.subr.mxu0 %v190
    %1480 = vmatpush1.msra.mxu0 %v189
    %1481 = vmatprep.subr.mxu0 %v192
    %1482 = vmatpush1.msra.mxu0 %v191
    %1483 = vmatprep.subr.mxu0 %v194
    %1484 = vmatpush1.msra.mxu0 %v193
    %1485 = vmatprep.subr.mxu0 %v196
    %1486 = vmatpush1.msra.mxu0 %v195
    %1487 = vmatprep.subr.mxu0 %v198
    %1488 = vmatpush1.msra.mxu0 %v197
    %1489 = vmatprep.subr.mxu0 %v200
    %1490 = vmatpush1.msra.mxu0 %v199
    %1491 = vmatprep.subr.mxu0 %v202
    %1492 = vmatpush1.msra.mxu0 %v201
    %1493 = vmatprep.subr.mxu0 %v204
    %1494 = vmatpush1.msra.mxu0 %v203
    %1495 = vmatprep.mubr.f32.mxu0 %v1428
    %1496 = vmatmul.mubr.f32.gmra.mrb[0].mxu0 %v1427
    %v1497 = vpop.f32.mrb[0].mxu0
    %v1498 = vadd.f32 %v296, %v1497
    %v1499 = vpop.f32.mrb[0].mxu0
    %v1500 = vadd.f32 %v300, %v1499
    %1501 = vdwg.mxu0
    %1502 = vmatprep.subr.mxu0 %v206
    %1503 = vmatpush1.msra.mxu0 %v205
    %1504 = vmatprep.subr.mxu0 %v208
    %1505 = vmatpush1.msra.mxu0 %v207
    %1506 = vmatprep.subr.mxu0 %v210
    %1507 = vmatpush1.msra.mxu0 %v209
    %1508 = vmatprep.subr.mxu0 %v212
    %1509 = vmatpush1.msra.mxu0 %v211
    %1510 = vmatprep.subr.mxu0 %v214
    %1511 = vmatpush1.msra.mxu0 %v213
    %1512 = vmatprep.subr.mxu0 %v216
    %1513 = vmatpush1.msra.mxu0 %v215
    %1514 = vmatprep.subr.mxu0 %v218
    %1515 = vmatpush1.msra.mxu0 %v217
    %1516 = vmatprep.subr.mxu0 %v220
    %1517 = vmatpush1.msra.mxu0 %v219
    %1518 = vmatprep.subr.mxu0 %v222
    %1519 = vmatpush1.msra.mxu0 %v221
    %1520 = vmatprep.subr.mxu0 %v224
    %1521 = vmatpush1.msra.mxu0 %v223
    %1522 = vmatprep.subr.mxu0 %v226
    %1523 = vmatpush1.msra.mxu0 %v225
    %1524 = vmatprep.subr.mxu0 %v228
    %1525 = vmatpush1.msra.mxu0 %v227
    %1526 = vmatprep.subr.mxu0 %v230
    %1527 = vmatpush1.msra.mxu0 %v229
    %1528 = vmatprep.subr.mxu0 %v232
    %1529 = vmatpush1.msra.mxu0 %v231
    %1530 = vmatprep.subr.mxu0 %v234
    %1531 = vmatpush1.msra.mxu0 %v233
    %1532 = vmatprep.subr.mxu0 %v236
    %1533 = vmatpush1.msra.mxu0 %v235
    %1534 = vmatprep.subr.mxu0 %v238
    %1535 = vmatpush1.msra.mxu0 %v237
    %1536 = vmatprep.subr.mxu0 %v240
    %1537 = vmatpush1.msra.mxu0 %v239
    %1538 = vmatprep.subr.mxu0 %v242
    %1539 = vmatpush1.msra.mxu0 %v241
    %1540 = vmatprep.subr.mxu0 %v244
    %1541 = vmatpush1.msra.mxu0 %v243
    %1542 = vmatprep.subr.mxu0 %v246
    %1543 = vmatpush1.msra.mxu0 %v245
    %1544 = vmatprep.subr.mxu0 %v248
    %1545 = vmatpush1.msra.mxu0 %v247
    %1546 = vmatprep.subr.mxu0 %v250
    %1547 = vmatpush1.msra.mxu0 %v249
    %1548 = vmatprep.subr.mxu0 %v252
    %1549 = vmatpush1.msra.mxu0 %v251
    %1550 = vmatprep.subr.mxu0 %v254
    %1551 = vmatpush1.msra.mxu0 %v253
    %1552 = vmatprep.subr.mxu0 %v256
    %1553 = vmatpush1.msra.mxu0 %v255
    %1554 = vmatprep.subr.mxu0 %v258
    %1555 = vmatpush1.msra.mxu0 %v257
    %1556 = vmatprep.subr.mxu0 %v260
    %1557 = vmatpush1.msra.mxu0 %v259
    %1558 = vmatprep.subr.mxu0 %v262
    %1559 = vmatpush1.msra.mxu0 %v261
    %1560 = vmatprep.subr.mxu0 %v264
    %1561 = vmatpush1.msra.mxu0 %v263
    %1562 = vmatprep.subr.mxu0 %v266
    %1563 = vmatpush1.msra.mxu0 %v265
    %1564 = vmatprep.subr.mxu0 %v268
    %1565 = vmatpush1.msra.mxu0 %v267
    %1566 = vmatprep.mubr.f32.mxu0 %v1430
    %1567 = vmatmul.mubr.f32.gmra.mrb[0].mxu0 %v1429
    %v1568 = vpop.f32.mrb[0].mxu0
    %v1569 = vadd.f32 %v1498, %v1568
    %v1570 = vpop.f32.mrb[0].mxu0
    %v1571 = vadd.f32 %v1500, %v1570
    %1572 = vdwg.mxu0
    %v1573 = vadd.f32 %v1276, %v1569
    %v1582 = vrot.slane %v1278, 7
    %v1583 = vsel %vm610, %v1582, %v1277
    %v1584 = vrot.slane %v1279, 6
    %v1585 = vsel %vm613, %v1584, %v1583
    %v1586 = vrot.slane %v1280, 5
    %v1587 = vsel %vm616, %v1586, %v1585
    %v1588 = vrot.slane %v1281, 4
    %v1589 = vsel %vm619, %v1588, %v1587
    %v1590 = vrot.slane %v1282, 3
    %v1591 = vsel %vm622, %v1590, %v1589
    %v1592 = vrot.slane %v1283, 2
    %v1593 = vsel %vm625, %v1592, %v1591
    %v1594 = vrot.slane %v1284, 1
    %v1595 = vsel %vm628, %v1594, %v1593
    %v1597 = vmul.f32 %v1571, %v1595
    %v1598 = vadd.f32 %v1573, %v1597
    %v1599 = vld [vmem:[#allocation5 + $0x4] sm:$0x1]
    %v1600 = vld [vmem:[#allocation5 + $0xc] sm:$0x1]
    %v1601 = vld [vmem:[#allocation5 + $0x14] sm:$0x1]
    %v1602 = vld [vmem:[#allocation5 + $0x1c] sm:$0x1]
    %v1603 = vld [vmem:[#allocation5 + $0x24] sm:$0x1]
    %v1604 = vld [vmem:[#allocation5 + $0x2c] sm:$0x1]
    %v1605 = vld [vmem:[#allocation5 + $0x34] sm:$0x1]
    %v1606 = vld [vmem:[#allocation5 + $0x3c] sm:$0x1]
    %1607 = vmatprep.subr.mxu0 %v78
    %1608 = vmatpush1.msra.mxu0 %v77
    %1609 = vmatprep.subr.mxu0 %v82
    %1610 = vmatpush1.msra.mxu0 %v81
    %1611 = vmatprep.subr.mxu0 %v86
    %1612 = vmatpush1.msra.mxu0 %v85
    %1613 = vmatprep.subr.mxu0 %v90
    %1614 = vmatpush1.msra.mxu0 %v89
    %1615 = vmatprep.subr.mxu0 %v94
    %1616 = vmatpush1.msra.mxu0 %v93
    %1617 = vmatprep.subr.mxu0 %v98
    %1618 = vmatpush1.msra.mxu0 %v97
    %1619 = vmatprep.subr.mxu0 %v102
    %1620 = vmatpush1.msra.mxu0 %v101
    %1621 = vmatprep.subr.mxu0 %v106
    %1622 = vmatpush1.msra.mxu0 %v105
    %1623 = vmatprep.subr.mxu0 %v110
    %1624 = vmatpush1.msra.mxu0 %v109
    %1625 = vmatprep.subr.mxu0 %v114
    %1626 = vmatpush1.msra.mxu0 %v113
    %1627 = vmatprep.subr.mxu0 %v118
    %1628 = vmatpush1.msra.mxu0 %v117
    %1629 = vmatprep.subr.mxu0 %v122
    %1630 = vmatpush1.msra.mxu0 %v121
    %1631 = vmatprep.subr.mxu0 %v126
    %1632 = vmatpush1.msra.mxu0 %v125
    %1633 = vmatprep.subr.mxu0 %v130
    %1634 = vmatpush1.msra.mxu0 %v129
    %1635 = vmatprep.subr.mxu0 %v134
    %1636 = vmatpush1.msra.mxu0 %v133
    %1637 = vmatprep.subr.mxu0 %v138
    %1638 = vmatpush1.msra.mxu0 %v137
    %1639 = vmatprep.subr.mxu0 0.0
    %1640 = vmatpush1.msra.mxu0 0.0
    %1641 = vmatprep.subr.mxu0 0.0
    %1642 = vmatpush1.msra.mxu0 0.0
    %1643 = vmatprep.subr.mxu0 0.0
    %1644 = vmatpush1.msra.mxu0 0.0
    %1645 = vmatprep.subr.mxu0 0.0
    %1646 = vmatpush1.msra.mxu0 0.0
    %1647 = vmatprep.subr.mxu0 0.0
    %1648 = vmatpush1.msra.mxu0 0.0
    %1649 = vmatprep.subr.mxu0 0.0
    %1650 = vmatpush1.msra.mxu0 0.0
    %1651 = vmatprep.subr.mxu0 0.0
    %1652 = vmatpush1.msra.mxu0 0.0
    %1653 = vmatprep.subr.mxu0 0.0
    %1654 = vmatpush1.msra.mxu0 0.0
    %1655 = vmatprep.subr.mxu0 0.0
    %1656 = vmatpush1.msra.mxu0 0.0
    %1657 = vmatprep.subr.mxu0 0.0
    %1658 = vmatpush1.msra.mxu0 0.0
    %1659 = vmatprep.subr.mxu0 0.0
    %1660 = vmatpush1.msra.mxu0 0.0
    %1661 = vmatprep.subr.mxu0 0.0
    %1662 = vmatpush1.msra.mxu0 0.0
    %1663 = vmatprep.subr.mxu0 0.0
    %1664 = vmatpush1.msra.mxu0 0.0
    %1665 = vmatprep.subr.mxu0 0.0
    %1666 = vmatpush1.msra.mxu0 0.0
    %1667 = vmatprep.subr.mxu0 0.0
    %1668 = vmatpush1.msra.mxu0 0.0
    %1669 = vmatprep.subr.mxu0 0.0
    %1670 = vmatpush1.msra.mxu0 0.0
    %1671 = vmatprep.mubr.f32.mxu0 0.0
    %1672 = vmatmul.mubr.f32.gmra.mrb[0].mxu0 %v1598
    %v1673 = vpop.f32.mrb[0].mxu0
    %v1674 = vadd.f32 %v274, %v1673
    %v1675 = vpop.f32.mrb[0].mxu0
    %v1676 = vadd.f32 %v278, %v1675
    %1677 = vdwg.mxu0
    %1678 = vmatprep.subr.mxu0 %v80
    %1679 = vmatpush1.msra.mxu0 %v79
    %1680 = vmatprep.subr.mxu0 %v84
    %1681 = vmatpush1.msra.mxu0 %v83
    %1682 = vmatprep.subr.mxu0 %v88
    %1683 = vmatpush1.msra.mxu0 %v87
    %1684 = vmatprep.subr.mxu0 %v92
    %1685 = vmatpush1.msra.mxu0 %v91
    %1686 = vmatprep.subr.mxu0 %v96
    %1687 = vmatpush1.msra.mxu0 %v95
    %1688 = vmatprep.subr.mxu0 %v100
    %1689 = vmatpush1.msra.mxu0 %v99
    %1690 = vmatprep.subr.mxu0 %v104
    %1691 = vmatpush1.msra.mxu0 %v103
    %1692 = vmatprep.subr.mxu0 %v108
    %1693 = vmatpush1.msra.mxu0 %v107
    %1694 = vmatprep.subr.mxu0 %v112
    %1695 = vmatpush1.msra.mxu0 %v111
    %1696 = vmatprep.subr.mxu0 %v116
    %1697 = vmatpush1.msra.mxu0 %v115
    %1698 = vmatprep.subr.mxu0 %v120
    %1699 = vmatpush1.msra.mxu0 %v119
    %1700 = vmatprep.subr.mxu0 %v124
    %1701 = vmatpush1.msra.mxu0 %v123
    %1702 = vmatprep.subr.mxu0 %v128
    %1703 = vmatpush1.msra.mxu0 %v127
    %1704 = vmatprep.subr.mxu0 %v132
    %1705 = vmatpush1.msra.mxu0 %v131
    %1706 = vmatprep.subr.mxu0 %v136
    %1707 = vmatpush1.msra.mxu0 %v135
    %1708 = vmatprep.subr.mxu0 %v140
    %1709 = vmatpush1.msra.mxu0 %v139
    %1710 = vmatprep.subr.mxu0 0.0
    %1711 = vmatpush1.msra.mxu0 0.0
    %1712 = vmatprep.subr.mxu0 0.0
    %1713 = vmatpush1.msra.mxu0 0.0
    %1714 = vmatprep.subr.mxu0 0.0
    %1715 = vmatpush1.msra.mxu0 0.0
    %1716 = vmatprep.subr.mxu0 0.0
    %1717 = vmatpush1.msra.mxu0 0.0
    %1718 = vmatprep.subr.mxu0 0.0
    %1719 = vmatpush1.msra.mxu0 0.0
    %1720 = vmatprep.subr.mxu0 0.0
    %1721 = vmatpush1.msra.mxu0 0.0
    %1722 = vmatprep.subr.mxu0 0.0
    %1723 = vmatpush1.msra.mxu0 0.0
    %1724 = vmatprep.subr.mxu0 0.0
    %1725 = vmatpush1.msra.mxu0 0.0
    %1726 = vmatprep.subr.mxu0 0.0
    %1727 = vmatpush1.msra.mxu0 0.0
    %1728 = vmatprep.subr.mxu0 0.0
    %1729 = vmatpush1.msra.mxu0 0.0
    %1730 = vmatprep.subr.mxu0 0.0
    %1731 = vmatpush1.msra.mxu0 0.0
    %1732 = vmatprep.subr.mxu0 0.0
    %1733 = vmatpush1.msra.mxu0 0.0
    %1734 = vmatprep.subr.mxu0 0.0
    %1735 = vmatpush1.msra.mxu0 0.0
    %1736 = vmatprep.subr.mxu0 0.0
    %1737 = vmatpush1.msra.mxu0 0.0
    %1738 = vmatprep.subr.mxu0 0.0
    %1739 = vmatpush1.msra.mxu0 0.0
    %1740 = vmatprep.subr.mxu0 0.0
    %1741 = vmatpush1.msra.mxu0 0.0
    %1742 = vmatprep.mubr.f32.mxu0 0.0
    %1743 = vmatmul.mubr.f32.gmra.mrb[0].mxu0 %v1598
    %v1744 = vpop.f32.mrb[0].mxu0
    %v1745 = vadd.f32 %v282, %v1744
    %v1746 = vpop.f32.mrb[0].mxu0
    %v1747 = vadd.f32 %v286, %v1746
    %1748 = vdwg.mxu0
    %v1749 = vtanh.pop %v1674
    %v1750 = vtanh.pop %v1676
    %v1751 = vtanh.pop %v1745
    %v1752 = vtanh.pop %v1747
    %1753 = vmatprep.subr.mxu0 %v142
    %1754 = vmatpush1.msra.mxu0 %v141
    %1755 = vmatprep.subr.mxu0 %v144
    %1756 = vmatpush1.msra.mxu0 %v143
    %1757 = vmatprep.subr.mxu0 %v146
    %1758 = vmatpush1.msra.mxu0 %v145
    %1759 = vmatprep.subr.mxu0 %v148
    %1760 = vmatpush1.msra.mxu0 %v147
    %1761 = vmatprep.subr.mxu0 %v150
    %1762 = vmatpush1.msra.mxu0 %v149
    %1763 = vmatprep.subr.mxu0 %v152
    %1764 = vmatpush1.msra.mxu0 %v151
    %1765 = vmatprep.subr.mxu0 %v154
    %1766 = vmatpush1.msra.mxu0 %v153
    %1767 = vmatprep.subr.mxu0 %v156
    %1768 = vmatpush1.msra.mxu0 %v155
    %1769 = vmatprep.subr.mxu0 %v158
    %1770 = vmatpush1.msra.mxu0 %v157
    %1771 = vmatprep.subr.mxu0 %v160
    %1772 = vmatpush1.msra.mxu0 %v159
    %1773 = vmatprep.subr.mxu0 %v162
    %1774 = vmatpush1.msra.mxu0 %v161
    %1775 = vmatprep.subr.mxu0 %v164
    %1776 = vmatpush1.msra.mxu0 %v163
    %1777 = vmatprep.subr.mxu0 %v166
    %1778 = vmatpush1.msra.mxu0 %v165
    %1779 = vmatprep.subr.mxu0 %v168
    %1780 = vmatpush1.msra.mxu0 %v167
    %1781 = vmatprep.subr.mxu0 %v170
    %1782 = vmatpush1.msra.mxu0 %v169
    %1783 = vmatprep.subr.mxu0 %v172
    %1784 = vmatpush1.msra.mxu0 %v171
    %1785 = vmatprep.subr.mxu0 %v174
    %1786 = vmatpush1.msra.mxu0 %v173
    %1787 = vmatprep.subr.mxu0 %v176
    %1788 = vmatpush1.msra.mxu0 %v175
    %1789 = vmatprep.subr.mxu0 %v178
    %1790 = vmatpush1.msra.mxu0 %v177
    %1791 = vmatprep.subr.mxu0 %v180
    %1792 = vmatpush1.msra.mxu0 %v179
    %1793 = vmatprep.subr.mxu0 %v182
    %1794 = vmatpush1.msra.mxu0 %v181
    %1795 = vmatprep.subr.mxu0 %v184
    %1796 = vmatpush1.msra.mxu0 %v183
    %1797 = vmatprep.subr.mxu0 %v186
    %1798 = vmatpush1.msra.mxu0 %v185
    %1799 = vmatprep.subr.mxu0 %v188
    %1800 = vmatpush1.msra.mxu0 %v187
    %1801 = vmatprep.subr.mxu0 %v190
    %1802 = vmatpush1.msra.mxu0 %v189
    %1803 = vmatprep.subr.mxu0 %v192
    %1804 = vmatpush1.msra.mxu0 %v191
    %1805 = vmatprep.subr.mxu0 %v194
    %1806 = vmatpush1.msra.mxu0 %v193
    %1807 = vmatprep.subr.mxu0 %v196
    %1808 = vmatpush1.msra.mxu0 %v195
    %1809 = vmatprep.subr.mxu0 %v198
    %1810 = vmatpush1.msra.mxu0 %v197
    %1811 = vmatprep.subr.mxu0 %v200
    %1812 = vmatpush1.msra.mxu0 %v199
    %1813 = vmatprep.subr.mxu0 %v202
    %1814 = vmatpush1.msra.mxu0 %v201
    %1815 = vmatprep.subr.mxu0 %v204
    %1816 = vmatpush1.msra.mxu0 %v203
    %1817 = vmatprep.mubr.f32.mxu0 %v1750
    %1818 = vmatmul.mubr.f32.gmra.mrb[0].mxu0 %v1749
    %v1819 = vpop.f32.mrb[0].mxu0
    %v1820 = vadd.f32 %v296, %v1819
    %v1821 = vpop.f32.mrb[0].mxu0
    %v1822 = vadd.f32 %v300, %v1821
    %1823 = vdwg.mxu0
    %1824 = vmatprep.subr.mxu0 %v206
    %1825 = vmatpush1.msra.mxu0 %v205
    %1826 = vmatprep.subr.mxu0 %v208
    %1827 = vmatpush1.msra.mxu0 %v207
    %1828 = vmatprep.subr.mxu0 %v210
    %1829 = vmatpush1.msra.mxu0 %v209
    %1830 = vmatprep.subr.mxu0 %v212
    %1831 = vmatpush1.msra.mxu0 %v211
    %1832 = vmatprep.subr.mxu0 %v214
    %1833 = vmatpush1.msra.mxu0 %v213
    %1834 = vmatprep.subr.mxu0 %v216
    %1835 = vmatpush1.msra.mxu0 %v215
    %1836 = vmatprep.subr.mxu0 %v218
    %1837 = vmatpush1.msra.mxu0 %v217
    %1838 = vmatprep.subr.mxu0 %v220
    %1839 = vmatpush1.msra.mxu0 %v219
    %1840 = vmatprep.subr.mxu0 %v222
    %1841 = vmatpush1.msra.mxu0 %v221
    %1842 = vmatprep.subr.mxu0 %v224
    %1843 = vmatpush1.msra.mxu0 %v223
    %1844 = vmatprep.subr.mxu0 %v226
    %1845 = vmatpush1.msra.mxu0 %v225
    %1846 = vmatprep.subr.mxu0 %v228
    %1847 = vmatpush1.msra.mxu0 %v227
    %1848 = vmatprep.subr.mxu0 %v230
    %1849 = vmatpush1.msra.mxu0 %v229
    %1850 = vmatprep.subr.mxu0 %v232
    %1851 = vmatpush1.msra.mxu0 %v231
    %1852 = vmatprep.subr.mxu0 %v234
    %1853 = vmatpush1.msra.mxu0 %v233
    %1854 = vmatprep.subr.mxu0 %v236
    %1855 = vmatpush1.msra.mxu0 %v235
    %1856 = vmatprep.subr.mxu0 %v238
    %1857 = vmatpush1.msra.mxu0 %v237
    %1858 = vmatprep.subr.mxu0 %v240
    %1859 = vmatpush1.msra.mxu0 %v239
    %1860 = vmatprep.subr.mxu0 %v242
    %1861 = vmatpush1.msra.mxu0 %v241
    %1862 = vmatprep.subr.mxu0 %v244
    %1863 = vmatpush1.msra.mxu0 %v243
    %1864 = vmatprep.subr.mxu0 %v246
    %1865 = vmatpush1.msra.mxu0 %v245
    %1866 = vmatprep.subr.mxu0 %v248
    %1867 = vmatpush1.msra.mxu0 %v247
    %1868 = vmatprep.subr.mxu0 %v250
    %1869 = vmatpush1.msra.mxu0 %v249
    %1870 = vmatprep.subr.mxu0 %v252
    %1871 = vmatpush1.msra.mxu0 %v251
    %1872 = vmatprep.subr.mxu0 %v254
    %1873 = vmatpush1.msra.mxu0 %v253
    %1874 = vmatprep.subr.mxu0 %v256
    %1875 = vmatpush1.msra.mxu0 %v255
    %1876 = vmatprep.subr.mxu0 %v258
    %1877 = vmatpush1.msra.mxu0 %v257
    %1878 = vmatprep.subr.mxu0 %v260
    %1879 = vmatpush1.msra.mxu0 %v259
    %1880 = vmatprep.subr.mxu0 %v262
    %1881 = vmatpush1.msra.mxu0 %v261
    %1882 = vmatprep.subr.mxu0 %v264
    %1883 = vmatpush1.msra.mxu0 %v263
    %1884 = vmatprep.subr.mxu0 %v266
    %1885 = vmatpush1.msra.mxu0 %v265
    %1886 = vmatprep.subr.mxu0 %v268
    %1887 = vmatpush1.msra.mxu0 %v267
    %1888 = vmatprep.mubr.f32.mxu0 %v1752
    %1889 = vmatmul.mubr.f32.gmra.mrb[0].mxu0 %v1751
    %v1890 = vpop.f32.mrb[0].mxu0
    %v1891 = vadd.f32 %v1820, %v1890
    %v1892 = vpop.f32.mrb[0].mxu0
    %v1893 = vadd.f32 %v1822, %v1892
    %1894 = vdwg.mxu0
    %v1895 = vadd.f32 %v1598, %v1891
    %v1904 = vrot.slane %v1600, 7
    %v1905 = vsel %vm610, %v1904, %v1599
    %v1906 = vrot.slane %v1601, 6
    %v1907 = vsel %vm613, %v1906, %v1905
    %v1908 = vrot.slane %v1602, 5
    %v1909 = vsel %vm616, %v1908, %v1907
    %v1910 = vrot.slane %v1603, 4
    %v1911 = vsel %vm619, %v1910, %v1909
    %v1912 = vrot.slane %v1604, 3
    %v1913 = vsel %vm622, %v1912, %v1911
    %v1914 = vrot.slane %v1605, 2
    %v1915 = vsel %vm625, %v1914, %v1913
    %v1916 = vrot.slane %v1606, 1
    %v1917 = vsel %vm628, %v1916, %v1915
    %v1919 = vmul.f32 %v1893, %v1917
    %v1920 = vadd.f32 %v1895, %v1919
    %v1921 = vld [vmem:[#allocation5 + $0x5] sm:$0x1]
    %v1922 = vld [vmem:[#allocation5 + $0xd] sm:$0x1]
    %v1923 = vld [vmem:[#allocation5 + $0x15] sm:$0x1]
    %v1924 = vld [vmem:[#allocation5 + $0x1d] sm:$0x1]
    %v1925 = vld [vmem:[#allocation5 + $0x25] sm:$0x1]
    %v1926 = vld [vmem:[#allocation5 + $0x2d] sm:$0x1]
    %v1927 = vld [vmem:[#allocation5 + $0x35] sm:$0x1]
    %v1928 = vld [vmem:[#allocation5 + $0x3d] sm:$0x1]
    %1929 = vmatprep.subr.mxu0 %v78
    %1930 = vmatpush1.msra.mxu0 %v77
    %1931 = vmatprep.subr.mxu0 %v82
    %1932 = vmatpush1.msra.mxu0 %v81
    %1933 = vmatprep.subr.mxu0 %v86
    %1934 = vmatpush1.msra.mxu0 %v85
    %1935 = vmatprep.subr.mxu0 %v90
    %1936 = vmatpush1.msra.mxu0 %v89
    %1937 = vmatprep.subr.mxu0 %v94
    %1938 = vmatpush1.msra.mxu0 %v93
    %1939 = vmatprep.subr.mxu0 %v98
    %1940 = vmatpush1.msra.mxu0 %v97
    %1941 = vmatprep.subr.mxu0 %v102
    %1942 = vmatpush1.msra.mxu0 %v101
    %1943 = vmatprep.subr.mxu0 %v106
    %1944 = vmatpush1.msra.mxu0 %v105
    %1945 = vmatprep.subr.mxu0 %v110
    %1946 = vmatpush1.msra.mxu0 %v109
    %1947 = vmatprep.subr.mxu0 %v114
    %1948 = vmatpush1.msra.mxu0 %v113
    %1949 = vmatprep.subr.mxu0 %v118
    %1950 = vmatpush1.msra.mxu0 %v117
    %1951 = vmatprep.subr.mxu0 %v122
    %1952 = vmatpush1.msra.mxu0 %v121
    %1953 = vmatprep.subr.mxu0 %v126
    %1954 = vmatpush1.msra.mxu0 %v125
    %1955 = vmatprep.subr.mxu0 %v130
    %1956 = vmatpush1.msra.mxu0 %v129
    %1957 = vmatprep.subr.mxu0 %v134
    %1958 = vmatpush1.msra.mxu0 %v133
    %1959 = vmatprep.subr.mxu0 %v138
    %1960 = vmatpush1.msra.mxu0 %v137
    %1961 = vmatprep.subr.mxu0 0.0
    %1962 = vmatpush1.msra.mxu0 0.0
    %1963 = vmatprep.subr.mxu0 0.0
    %1964 = vmatpush1.msra.mxu0 0.0
    %1965 = vmatprep.subr.mxu0 0.0
    %1966 = vmatpush1.msra.mxu0 0.0
    %1967 = vmatprep.subr.mxu0 0.0
    %1968 = vmatpush1.msra.mxu0 0.0
    %1969 = vmatprep.subr.mxu0 0.0
    %1970 = vmatpush1.msra.mxu0 0.0
    %1971 = vmatprep.subr.mxu0 0.0
    %1972 = vmatpush1.msra.mxu0 0.0
    %1973 = vmatprep.subr.mxu0 0.0
    %1974 = vmatpush1.msra.mxu0 0.0
    %1975 = vmatprep.subr.mxu0 0.0
    %1976 = vmatpush1.msra.mxu0 0.0
    %1977 = vmatprep.subr.mxu0 0.0
    %1978 = vmatpush1.msra.mxu0 0.0
    %1979 = vmatprep.subr.mxu0 0.0
    %1980 = vmatpush1.msra.mxu0 0.0
    %1981 = vmatprep.subr.mxu0 0.0
    %1982 = vmatpush1.msra.mxu0 0.0
    %1983 = vmatprep.subr.mxu0 0.0
    %1984 = vmatpush1.msra.mxu0 0.0
    %1985 = vmatprep.subr.mxu0 0.0
    %1986 = vmatpush1.msra.mxu0 0.0
    %1987 = vmatprep.subr.mxu0 0.0
    %1988 = vmatpush1.msra.mxu0 0.0
    %1989 = vmatprep.subr.mxu0 0.0
    %1990 = vmatpush1.msra.mxu0 0.0
    %1991 = vmatprep.subr.mxu0 0.0
    %1992 = vmatpush1.msra.mxu0 0.0
    %1993 = vmatprep.mubr.f32.mxu0 0.0
    %1994 = vmatmul.mubr.f32.gmra.mrb[0].mxu0 %v1920
    %v1995 = vpop.f32.mrb[0].mxu0
    %v1996 = vadd.f32 %v274, %v1995
    %v1997 = vpop.f32.mrb[0].mxu0
    %v1998 = vadd.f32 %v278, %v1997
    %1999 = vdwg.mxu0
    %2000 = vmatprep.subr.mxu0 %v80
    %2001 = vmatpush1.msra.mxu0 %v79
    %2002 = vmatprep.subr.mxu0 %v84
    %2003 = vmatpush1.msra.mxu0 %v83
    %2004 = vmatprep.subr.mxu0 %v88
    %2005 = vmatpush1.msra.mxu0 %v87
    %2006 = vmatprep.subr.mxu0 %v92
    %2007 = vmatpush1.msra.mxu0 %v91
    %2008 = vmatprep.subr.mxu0 %v96
    %2009 = vmatpush1.msra.mxu0 %v95
    %2010 = vmatprep.subr.mxu0 %v100
    %2011 = vmatpush1.msra.mxu0 %v99
    %2012 = vmatprep.subr.mxu0 %v104
    %2013 = vmatpush1.msra.mxu0 %v103
    %2014 = vmatprep.subr.mxu0 %v108
    %2015 = vmatpush1.msra.mxu0 %v107
    %2016 = vmatprep.subr.mxu0 %v112
    %2017 = vmatpush1.msra.mxu0 %v111
    %2018 = vmatprep.subr.mxu0 %v116
    %2019 = vmatpush1.msra.mxu0 %v115
    %2020 = vmatprep.subr.mxu0 %v120
    %2021 = vmatpush1.msra.mxu0 %v119
    %2022 = vmatprep.subr.mxu0 %v124
    %2023 = vmatpush1.msra.mxu0 %v123
    %2024 = vmatprep.subr.mxu0 %v128
    %2025 = vmatpush1.msra.mxu0 %v127
    %2026 = vmatprep.subr.mxu0 %v132
    %2027 = vmatpush1.msra.mxu0 %v131
    %2028 = vmatprep.subr.mxu0 %v136
    %2029 = vmatpush1.msra.mxu0 %v135
    %2030 = vmatprep.subr.mxu0 %v140
    %2031 = vmatpush1.msra.mxu0 %v139
    %2032 = vmatprep.subr.mxu0 0.0
    %2033 = vmatpush1.msra.mxu0 0.0
    %2034 = vmatprep.subr.mxu0 0.0
    %2035 = vmatpush1.msra.mxu0 0.0
    %2036 = vmatprep.subr.mxu0 0.0
    %2037 = vmatpush1.msra.mxu0 0.0
    %2038 = vmatprep.subr.mxu0 0.0
    %2039 = vmatpush1.msra.mxu0 0.0
    %2040 = vmatprep.subr.mxu0 0.0
    %2041 = vmatpush1.msra.mxu0 0.0
    %2042 = vmatprep.subr.mxu0 0.0
    %2043 = vmatpush1.msra.mxu0 0.0
    %2044 = vmatprep.subr.mxu0 0.0
    %2045 = vmatpush1.msra.mxu0 0.0
    %2046 = vmatprep.subr.mxu0 0.0
    %2047 = vmatpush1.msra.mxu0 0.0
    %2048 = vmatprep.subr.mxu0 0.0
    %2049 = vmatpush1.msra.mxu0 0.0
    %2050 = vmatprep.subr.mxu0 0.0
    %2051 = vmatpush1.msra.mxu0 0.0
    %2052 = vmatprep.subr.mxu0 0.0
    %2053 = vmatpush1.msra.mxu0 0.0
    %2054 = vmatprep.subr.mxu0 0.0
    %2055 = vmatpush1.msra.mxu0 0.0
    %2056 = vmatprep.subr.mxu0 0.0
    %2057 = vmatpush1.msra.mxu0 0.0
    %2058 = vmatprep.subr.mxu0 0.0
    %2059 = vmatpush1.msra.mxu0 0.0
    %2060 = vmatprep.subr.mxu0 0.0
    %2061 = vmatpush1.msra.mxu0 0.0
    %2062 = vmatprep.subr.mxu0 0.0
    %2063 = vmatpush1.msra.mxu0 0.0
    %2064 = vmatprep.mubr.f32.mxu0 0.0
    %2065 = vmatmul.mubr.f32.gmra.mrb[0].mxu0 %v1920
    %v2066 = vpop.f32.mrb[0].mxu0
    %v2067 = vadd.f32 %v282, %v2066
    %v2068 = vpop.f32.mrb[0].mxu0
    %v2069 = vadd.f32 %v286, %v2068
    %2070 = vdwg.mxu0
    %v2071 = vtanh.pop %v1996
    %v2072 = vtanh.pop %v1998
    %v2073 = vtanh.pop %v2067
    %v2074 = vtanh.pop %v2069
    %2075 = vmatprep.subr.mxu0 %v142
    %2076 = vmatpush1.msra.mxu0 %v141
    %2077 = vmatprep.subr.mxu0 %v144
    %2078 = vmatpush1.msra.mxu0 %v143
    %2079 = vmatprep.subr.mxu0 %v146
    %2080 = vmatpush1.msra.mxu0 %v145
    %2081 = vmatprep.subr.mxu0 %v148
    %2082 = vmatpush1.msra.mxu0 %v147
    %2083 = vmatprep.subr.mxu0 %v150
    %2084 = vmatpush1.msra.mxu0 %v149
    %2085 = vmatprep.subr.mxu0 %v152
    %2086 = vmatpush1.msra.mxu0 %v151
    %2087 = vmatprep.subr.mxu0 %v154
    %2088 = vmatpush1.msra.mxu0 %v153
    %2089 = vmatprep.subr.mxu0 %v156
    %2090 = vmatpush1.msra.mxu0 %v155
    %2091 = vmatprep.subr.mxu0 %v158
    %2092 = vmatpush1.msra.mxu0 %v157
    %2093 = vmatprep.subr.mxu0 %v160
    %2094 = vmatpush1.msra.mxu0 %v159
    %2095 = vmatprep.subr.mxu0 %v162
    %2096 = vmatpush1.msra.mxu0 %v161
    %2097 = vmatprep.subr.mxu0 %v164
    %2098 = vmatpush1.msra.mxu0 %v163
    %2099 = vmatprep.subr.mxu0 %v166
    %2100 = vmatpush1.msra.mxu0 %v165
    %2101 = vmatprep.subr.mxu0 %v168
    %2102 = vmatpush1.msra.mxu0 %v167
    %2103 = vmatprep.subr.mxu0 %v170
    %2104 = vmatpush1.msra.mxu0 %v169
    %2105 = vmatprep.subr.mxu0 %v172
    %2106 = vmatpush1.msra.mxu0 %v171
    %2107 = vmatprep.subr.mxu0 %v174
    %2108 = vmatpush1.msra.mxu0 %v173
    %2109 = vmatprep.subr.mxu0 %v176
    %2110 = vmatpush1.msra.mxu0 %v175
    %2111 = vmatprep.subr.mxu0 %v178
    %2112 = vmatpush1.msra.mxu0 %v177
    %2113 = vmatprep.subr.mxu0 %v180
    %2114 = vmatpush1.msra.mxu0 %v179
    %2115 = vmatprep.subr.mxu0 %v182
    %2116 = vmatpush1.msra.mxu0 %v181
    %2117 = vmatprep.subr.mxu0 %v184
    %2118 = vmatpush1.msra.mxu0 %v183
    %2119 = vmatprep.subr.mxu0 %v186
    %2120 = vmatpush1.msra.mxu0 %v185
    %2121 = vmatprep.subr.mxu0 %v188
    %2122 = vmatpush1.msra.mxu0 %v187
    %2123 = vmatprep.subr.mxu0 %v190
    %2124 = vmatpush1.msra.mxu0 %v189
    %2125 = vmatprep.subr.mxu0 %v192
    %2126 = vmatpush1.msra.mxu0 %v191
    %2127 = vmatprep.subr.mxu0 %v194
    %2128 = vmatpush1.msra.mxu0 %v193
    %2129 = vmatprep.subr.mxu0 %v196
    %2130 = vmatpush1.msra.mxu0 %v195
    %2131 = vmatprep.subr.mxu0 %v198
    %2132 = vmatpush1.msra.mxu0 %v197
    %2133 = vmatprep.subr.mxu0 %v200
    %2134 = vmatpush1.msra.mxu0 %v199
    %2135 = vmatprep.subr.mxu0 %v202
    %2136 = vmatpush1.msra.mxu0 %v201
    %2137 = vmatprep.subr.mxu0 %v204
    %2138 = vmatpush1.msra.mxu0 %v203
    %2139 = vmatprep.mubr.f32.mxu0 %v2072
    %2140 = vmatmul.mubr.f32.gmra.mrb[0].mxu0 %v2071
    %v2141 = vpop.f32.mrb[0].mxu0
    %v2142 = vadd.f32 %v296, %v2141
    %v2143 = vpop.f32.mrb[0].mxu0
    %v2144 = vadd.f32 %v300, %v2143
    %2145 = vdwg.mxu0
    %2146 = vmatprep.subr.mxu0 %v206
    %2147 = vmatpush1.msra.mxu0 %v205
    %2148 = vmatprep.subr.mxu0 %v208
    %2149 = vmatpush1.msra.mxu0 %v207
    %2150 = vmatprep.subr.mxu0 %v210
    %2151 = vmatpush1.msra.mxu0 %v209
    %2152 = vmatprep.subr.mxu0 %v212
    %2153 = vmatpush1.msra.mxu0 %v211
    %2154 = vmatprep.subr.mxu0 %v214
    %2155 = vmatpush1.msra.mxu0 %v213
    %2156 = vmatprep.subr.mxu0 %v216
    %2157 = vmatpush1.msra.mxu0 %v215
    %2158 = vmatprep.subr.mxu0 %v218
    %2159 = vmatpush1.msra.mxu0 %v217
    %2160 = vmatprep.subr.mxu0 %v220
    %2161 = vmatpush1.msra.mxu0 %v219
    %2162 = vmatprep.subr.mxu0 %v222
    %2163 = vmatpush1.msra.mxu0 %v221
    %2164 = vmatprep.subr.mxu0 %v224
    %2165 = vmatpush1.msra.mxu0 %v223
    %2166 = vmatprep.subr.mxu0 %v226
    %2167 = vmatpush1.msra.mxu0 %v225
    %2168 = vmatprep.subr.mxu0 %v228
    %2169 = vmatpush1.msra.mxu0 %v227
    %2170 = vmatprep.subr.mxu0 %v230
    %2171 = vmatpush1.msra.mxu0 %v229
    %2172 = vmatprep.subr.mxu0 %v232
    %2173 = vmatpush1.msra.mxu0 %v231
    %2174 = vmatprep.subr.mxu0 %v234
    %2175 = vmatpush1.msra.mxu0 %v233
    %2176 = vmatprep.subr.mxu0 %v236
    %2177 = vmatpush1.msra.mxu0 %v235
    %2178 = vmatprep.subr.mxu0 %v238
    %2179 = vmatpush1.msra.mxu0 %v237
    %2180 = vmatprep.subr.mxu0 %v240
    %2181 = vmatpush1.msra.mxu0 %v239
    %2182 = vmatprep.subr.mxu0 %v242
    %2183 = vmatpush1.msra.mxu0 %v241
    %2184 = vmatprep.subr.mxu0 %v244
    %2185 = vmatpush1.msra.mxu0 %v243
    %2186 = vmatprep.subr.mxu0 %v246
    %2187 = vmatpush1.msra.mxu0 %v245
    %2188 = vmatprep.subr.mxu0 %v248
    %2189 = vmatpush1.msra.mxu0 %v247
    %2190 = vmatprep.subr.mxu0 %v250
    %2191 = vmatpush1.msra.mxu0 %v249
    %2192 = vmatprep.subr.mxu0 %v252
    %2193 = vmatpush1.msra.mxu0 %v251
    %2194 = vmatprep.subr.mxu0 %v254
    %2195 = vmatpush1.msra.mxu0 %v253
    %2196 = vmatprep.subr.mxu0 %v256
    %2197 = vmatpush1.msra.mxu0 %v255
    %2198 = vmatprep.subr.mxu0 %v258
    %2199 = vmatpush1.msra.mxu0 %v257
    %2200 = vmatprep.subr.mxu0 %v260
    %2201 = vmatpush1.msra.mxu0 %v259
    %2202 = vmatprep.subr.mxu0 %v262
    %2203 = vmatpush1.msra.mxu0 %v261
    %2204 = vmatprep.subr.mxu0 %v264
    %2205 = vmatpush1.msra.mxu0 %v263
    %2206 = vmatprep.subr.mxu0 %v266
    %2207 = vmatpush1.msra.mxu0 %v265
    %2208 = vmatprep.subr.mxu0 %v268
    %2209 = vmatpush1.msra.mxu0 %v267
    %2210 = vmatprep.mubr.f32.mxu0 %v2074
    %2211 = vmatmul.mubr.f32.gmra.mrb[0].mxu0 %v2073
    %v2212 = vpop.f32.mrb[0].mxu0
    %v2213 = vadd.f32 %v2142, %v2212
    %v2214 = vpop.f32.mrb[0].mxu0
    %v2215 = vadd.f32 %v2144, %v2214
    %2216 = vdwg.mxu0
    %v2217 = vadd.f32 %v1920, %v2213
    %v2226 = vrot.slane %v1922, 7
    %v2227 = vsel %vm610, %v2226, %v1921
    %v2228 = vrot.slane %v1923, 6
    %v2229 = vsel %vm613, %v2228, %v2227
    %v2230 = vrot.slane %v1924, 5
    %v2231 = vsel %vm616, %v2230, %v2229
    %v2232 = vrot.slane %v1925, 4
    %v2233 = vsel %vm619, %v2232, %v2231
    %v2234 = vrot.slane %v1926, 3
    %v2235 = vsel %vm622, %v2234, %v2233
    %v2236 = vrot.slane %v1927, 2
    %v2237 = vsel %vm625, %v2236, %v2235
    %v2238 = vrot.slane %v1928, 1
    %v2239 = vsel %vm628, %v2238, %v2237
    %v2241 = vmul.f32 %v2215, %v2239
    %v2242 = vadd.f32 %v2217, %v2241
    %v2243 = vld [vmem:[#allocation5 + $0x6] sm:$0x1]
    %v2244 = vld [vmem:[#allocation5 + $0xe] sm:$0x1]
    %v2245 = vld [vmem:[#allocation5 + $0x16] sm:$0x1]
    %v2246 = vld [vmem:[#allocation5 + $0x1e] sm:$0x1]
    %v2247 = vld [vmem:[#allocation5 + $0x26] sm:$0x1]
    %v2248 = vld [vmem:[#allocation5 + $0x2e] sm:$0x1]
    %v2249 = vld [vmem:[#allocation5 + $0x36] sm:$0x1]
    %v2250 = vld [vmem:[#allocation5 + $0x3e] sm:$0x1]
    %2251 = vmatprep.subr.mxu0 %v78
    %2252 = vmatpush1.msra.mxu0 %v77
    %2253 = vmatprep.subr.mxu0 %v82
    %2254 = vmatpush1.msra.mxu0 %v81
    %2255 = vmatprep.subr.mxu0 %v86
    %2256 = vmatpush1.msra.mxu0 %v85
    %2257 = vmatprep.subr.mxu0 %v90
    %2258 = vmatpush1.msra.mxu0 %v89
    %2259 = vmatprep.subr.mxu0 %v94
    %2260 = vmatpush1.msra.mxu0 %v93
    %2261 = vmatprep.subr.mxu0 %v98
    %2262 = vmatpush1.msra.mxu0 %v97
    %2263 = vmatprep.subr.mxu0 %v102
    %2264 = vmatpush1.msra.mxu0 %v101
    %2265 = vmatprep.subr.mxu0 %v106
    %2266 = vmatpush1.msra.mxu0 %v105
    %2267 = vmatprep.subr.mxu0 %v110
    %2268 = vmatpush1.msra.mxu0 %v109
    %2269 = vmatprep.subr.mxu0 %v114
    %2270 = vmatpush1.msra.mxu0 %v113
    %2271 = vmatprep.subr.mxu0 %v118
    %2272 = vmatpush1.msra.mxu0 %v117
    %2273 = vmatprep.subr.mxu0 %v122
    %2274 = vmatpush1.msra.mxu0 %v121
    %2275 = vmatprep.subr.mxu0 %v126
    %2276 = vmatpush1.msra.mxu0 %v125
    %2277 = vmatprep.subr.mxu0 %v130
    %2278 = vmatpush1.msra.mxu0 %v129
    %2279 = vmatprep.subr.mxu0 %v134
    %2280 = vmatpush1.msra.mxu0 %v133
    %2281 = vmatprep.subr.mxu0 %v138
    %2282 = vmatpush1.msra.mxu0 %v137
    %2283 = vmatprep.subr.mxu0 0.0
    %2284 = vmatpush1.msra.mxu0 0.0
    %2285 = vmatprep.subr.mxu0 0.0
    %2286 = vmatpush1.msra.mxu0 0.0
    %2287 = vmatprep.subr.mxu0 0.0
    %2288 = vmatpush1.msra.mxu0 0.0
    %2289 = vmatprep.subr.mxu0 0.0
    %2290 = vmatpush1.msra.mxu0 0.0
    %2291 = vmatprep.subr.mxu0 0.0
    %2292 = vmatpush1.msra.mxu0 0.0
    %2293 = vmatprep.subr.mxu0 0.0
    %2294 = vmatpush1.msra.mxu0 0.0
    %2295 = vmatprep.subr.mxu0 0.0
    %2296 = vmatpush1.msra.mxu0 0.0
    %2297 = vmatprep.subr.mxu0 0.0
    %2298 = vmatpush1.msra.mxu0 0.0
    %2299 = vmatprep.subr.mxu0 0.0
    %2300 = vmatpush1.msra.mxu0 0.0
    %2301 = vmatprep.subr.mxu0 0.0
    %2302 = vmatpush1.msra.mxu0 0.0
    %2303 = vmatprep.subr.mxu0 0.0
    %2304 = vmatpush1.msra.mxu0 0.0
    %2305 = vmatprep.subr.mxu0 0.0
    %2306 = vmatpush1.msra.mxu0 0.0
    %2307 = vmatprep.subr.mxu0 0.0
    %2308 = vmatpush1.msra.mxu0 0.0
    %2309 = vmatprep.subr.mxu0 0.0
    %2310 = vmatpush1.msra.mxu0 0.0
    %2311 = vmatprep.subr.mxu0 0.0
    %2312 = vmatpush1.msra.mxu0 0.0
    %2313 = vmatprep.subr.mxu0 0.0
    %2314 = vmatpush1.msra.mxu0 0.0
    %2315 = vmatprep.mubr.f32.mxu0 0.0
    %2316 = vmatmul.mubr.f32.gmra.mrb[0].mxu0 %v2242
    %v2317 = vpop.f32.mrb[0].mxu0
    %v2318 = vadd.f32 %v274, %v2317
    %v2319 = vpop.f32.mrb[0].mxu0
    %v2320 = vadd.f32 %v278, %v2319
    %2321 = vdwg.mxu0
    %2322 = vmatprep.subr.mxu0 %v80
    %2323 = vmatpush1.msra.mxu0 %v79
    %2324 = vmatprep.subr.mxu0 %v84
    %2325 = vmatpush1.msra.mxu0 %v83
    %2326 = vmatprep.subr.mxu0 %v88
    %2327 = vmatpush1.msra.mxu0 %v87
    %2328 = vmatprep.subr.mxu0 %v92
    %2329 = vmatpush1.msra.mxu0 %v91
    %2330 = vmatprep.subr.mxu0 %v96
    %2331 = vmatpush1.msra.mxu0 %v95
    %2332 = vmatprep.subr.mxu0 %v100
    %2333 = vmatpush1.msra.mxu0 %v99
    %2334 = vmatprep.subr.mxu0 %v104
    %2335 = vmatpush1.msra.mxu0 %v103
    %2336 = vmatprep.subr.mxu0 %v108
    %2337 = vmatpush1.msra.mxu0 %v107
    %2338 = vmatprep.subr.mxu0 %v112
    %2339 = vmatpush1.msra.mxu0 %v111
    %2340 = vmatprep.subr.mxu0 %v116
    %2341 = vmatpush1.msra.mxu0 %v115
    %2342 = vmatprep.subr.mxu0 %v120
    %2343 = vmatpush1.msra.mxu0 %v119
    %2344 = vmatprep.subr.mxu0 %v124
    %2345 = vmatpush1.msra.mxu0 %v123
    %2346 = vmatprep.subr.mxu0 %v128
    %2347 = vmatpush1.msra.mxu0 %v127
    %2348 = vmatprep.subr.mxu0 %v132
    %2349 = vmatpush1.msra.mxu0 %v131
    %2350 = vmatprep.subr.mxu0 %v136
    %2351 = vmatpush1.msra.mxu0 %v135
    %2352 = vmatprep.subr.mxu0 %v140
    %2353 = vmatpush1.msra.mxu0 %v139
    %2354 = vmatprep.subr.mxu0 0.0
    %2355 = vmatpush1.msra.mxu0 0.0
    %2356 = vmatprep.subr.mxu0 0.0
    %2357 = vmatpush1.msra.mxu0 0.0
    %2358 = vmatprep.subr.mxu0 0.0
    %2359 = vmatpush1.msra.mxu0 0.0
    %2360 = vmatprep.subr.mxu0 0.0
    %2361 = vmatpush1.msra.mxu0 0.0
    %2362 = vmatprep.subr.mxu0 0.0
    %2363 = vmatpush1.msra.mxu0 0.0
    %2364 = vmatprep.subr.mxu0 0.0
    %2365 = vmatpush1.msra.mxu0 0.0
    %2366 = vmatprep.subr.mxu0 0.0
    %2367 = vmatpush1.msra.mxu0 0.0
    %2368 = vmatprep.subr.mxu0 0.0
    %2369 = vmatpush1.msra.mxu0 0.0
    %2370 = vmatprep.subr.mxu0 0.0
    %2371 = vmatpush1.msra.mxu0 0.0
    %2372 = vmatprep.subr.mxu0 0.0
    %2373 = vmatpush1.msra.mxu0 0.0
    %2374 = vmatprep.subr.mxu0 0.0
    %2375 = vmatpush1.msra.mxu0 0.0
    %2376 = vmatprep.subr.mxu0 0.0
    %2377 = vmatpush1.msra.mxu0 0.0
    %2378 = vmatprep.subr.mxu0 0.0
    %2379 = vmatpush1.msra.mxu0 0.0
    %2380 = vmatprep.subr.mxu0 0.0
    %2381 = vmatpush1.msra.mxu0 0.0
    %2382 = vmatprep.subr.mxu0 0.0
    %2383 = vmatpush1.msra.mxu0 0.0
    %2384 = vmatprep.subr.mxu0 0.0
    %2385 = vmatpush1.msra.mxu0 0.0
    %2386 = vmatprep.mubr.f32.mxu0 0.0
    %2387 = vmatmul.mubr.f32.gmra.mrb[0].mxu0 %v2242
    %v2388 = vpop.f32.mrb[0].mxu0
    %v2389 = vadd.f32 %v282, %v2388
    %v2390 = vpop.f32.mrb[0].mxu0
    %v2391 = vadd.f32 %v286, %v2390
    %2392 = vdwg.mxu0
    %v2393 = vtanh.pop %v2318
    %v2394 = vtanh.pop %v2320
    %v2395 = vtanh.pop %v2389
    %v2396 = vtanh.pop %v2391
    %2397 = vmatprep.subr.mxu0 %v142
    %2398 = vmatpush1.msra.mxu0 %v141
    %2399 = vmatprep.subr.mxu0 %v144
    %2400 = vmatpush1.msra.mxu0 %v143
    %2401 = vmatprep.subr.mxu0 %v146
    %2402 = vmatpush1.msra.mxu0 %v145
    %2403 = vmatprep.subr.mxu0 %v148
    %2404 = vmatpush1.msra.mxu0 %v147
    %2405 = vmatprep.subr.mxu0 %v150
    %2406 = vmatpush1.msra.mxu0 %v149
    %2407 = vmatprep.subr.mxu0 %v152
    %2408 = vmatpush1.msra.mxu0 %v151
    %2409 = vmatprep.subr.mxu0 %v154
    %2410 = vmatpush1.msra.mxu0 %v153
    %2411 = vmatprep.subr.mxu0 %v156
    %2412 = vmatpush1.msra.mxu0 %v155
    %2413 = vmatprep.subr.mxu0 %v158
    %2414 = vmatpush1.msra.mxu0 %v157
    %2415 = vmatprep.subr.mxu0 %v160
    %2416 = vmatpush1.msra.mxu0 %v159
    %2417 = vmatprep.subr.mxu0 %v162
    %2418 = vmatpush1.msra.mxu0 %v161
    %2419 = vmatprep.subr.mxu0 %v164
    %2420 = vmatpush1.msra.mxu0 %v163
    %2421 = vmatprep.subr.mxu0 %v166
    %2422 = vmatpush1.msra.mxu0 %v165
    %2423 = vmatprep.subr.mxu0 %v168
    %2424 = vmatpush1.msra.mxu0 %v167
    %2425 = vmatprep.subr.mxu0 %v170
    %2426 = vmatpush1.msra.mxu0 %v169
    %2427 = vmatprep.subr.mxu0 %v172
    %2428 = vmatpush1.msra.mxu0 %v171
    %2429 = vmatprep.subr.mxu0 %v174
    %2430 = vmatpush1.msra.mxu0 %v173
    %2431 = vmatprep.subr.mxu0 %v176
    %2432 = vmatpush1.msra.mxu0 %v175
    %2433 = vmatprep.subr.mxu0 %v178
    %2434 = vmatpush1.msra.mxu0 %v177
    %2435 = vmatprep.subr.mxu0 %v180
    %2436 = vmatpush1.msra.mxu0 %v179
    %2437 = vmatprep.subr.mxu0 %v182
    %2438 = vmatpush1.msra.mxu0 %v181
    %2439 = vmatprep.subr.mxu0 %v184
    %2440 = vmatpush1.msra.mxu0 %v183
    %2441 = vmatprep.subr.mxu0 %v186
    %2442 = vmatpush1.msra.mxu0 %v185
    %2443 = vmatprep.subr.mxu0 %v188
    %2444 = vmatpush1.msra.mxu0 %v187
    %2445 = vmatprep.subr.mxu0 %v190
    %2446 = vmatpush1.msra.mxu0 %v189
    %2447 = vmatprep.subr.mxu0 %v192
    %2448 = vmatpush1.msra.mxu0 %v191
    %2449 = vmatprep.subr.mxu0 %v194
    %2450 = vmatpush1.msra.mxu0 %v193
    %2451 = vmatprep.subr.mxu0 %v196
    %2452 = vmatpush1.msra.mxu0 %v195
    %2453 = vmatprep.subr.mxu0 %v198
    %2454 = vmatpush1.msra.mxu0 %v197
    %2455 = vmatprep.subr.mxu0 %v200
    %2456 = vmatpush1.msra.mxu0 %v199
    %2457 = vmatprep.subr.mxu0 %v202
    %2458 = vmatpush1.msra.mxu0 %v201
    %2459 = vmatprep.subr.mxu0 %v204
    %2460 = vmatpush1.msra.mxu0 %v203
    %2461 = vmatprep.mubr.f32.mxu0 %v2394
    %2462 = vmatmul.mubr.f32.gmra.mrb[0].mxu0 %v2393
    %v2463 = vpop.f32.mrb[0].mxu0
    %v2464 = vadd.f32 %v296, %v2463
    %v2465 = vpop.f32.mrb[0].mxu0
    %v2466 = vadd.f32 %v300, %v2465
    %2467 = vdwg.mxu0
    %2468 = vmatprep.subr.mxu0 %v206
    %2469 = vmatpush1.msra.mxu0 %v205
    %2470 = vmatprep.subr.mxu0 %v208
    %2471 = vmatpush1.msra.mxu0 %v207
    %2472 = vmatprep.subr.mxu0 %v210
    %2473 = vmatpush1.msra.mxu0 %v209
    %2474 = vmatprep.subr.mxu0 %v212
    %2475 = vmatpush1.msra.mxu0 %v211
    %2476 = vmatprep.subr.mxu0 %v214
    %2477 = vmatpush1.msra.mxu0 %v213
    %2478 = vmatprep.subr.mxu0 %v216
    %2479 = vmatpush1.msra.mxu0 %v215
    %2480 = vmatprep.subr.mxu0 %v218
    %2481 = vmatpush1.msra.mxu0 %v217
    %2482 = vmatprep.subr.mxu0 %v220
    %2483 = vmatpush1.msra.mxu0 %v219
    %2484 = vmatprep.subr.mxu0 %v222
    %2485 = vmatpush1.msra.mxu0 %v221
    %2486 = vmatprep.subr.mxu0 %v224
    %2487 = vmatpush1.msra.mxu0 %v223
    %2488 = vmatprep.subr.mxu0 %v226
    %2489 = vmatpush1.msra.mxu0 %v225
    %2490 = vmatprep.subr.mxu0 %v228
    %2491 = vmatpush1.msra.mxu0 %v227
    %2492 = vmatprep.subr.mxu0 %v230
    %2493 = vmatpush1.msra.mxu0 %v229
    %2494 = vmatprep.subr.mxu0 %v232
    %2495 = vmatpush1.msra.mxu0 %v231
    %2496 = vmatprep.subr.mxu0 %v234
    %2497 = vmatpush1.msra.mxu0 %v233
    %2498 = vmatprep.subr.mxu0 %v236
    %2499 = vmatpush1.msra.mxu0 %v235
    %2500 = vmatprep.subr.mxu0 %v238
    %2501 = vmatpush1.msra.mxu0 %v237
    %2502 = vmatprep.subr.mxu0 %v240
    %2503 = vmatpush1.msra.mxu0 %v239
    %2504 = vmatprep.subr.mxu0 %v242
    %2505 = vmatpush1.msra.mxu0 %v241
    %2506 = vmatprep.subr.mxu0 %v244
    %2507 = vmatpush1.msra.mxu0 %v243
    %2508 = vmatprep.subr.mxu0 %v246
    %2509 = vmatpush1.msra.mxu0 %v245
    %2510 = vmatprep.subr.mxu0 %v248
    %2511 = vmatpush1.msra.mxu0 %v247
    %2512 = vmatprep.subr.mxu0 %v250
    %2513 = vmatpush1.msra.mxu0 %v249
    %2514 = vmatprep.subr.mxu0 %v252
    %2515 = vmatpush1.msra.mxu0 %v251
    %2516 = vmatprep.subr.mxu0 %v254
    %2517 = vmatpush1.msra.mxu0 %v253
    %2518 = vmatprep.subr.mxu0 %v256
    %2519 = vmatpush1.msra.mxu0 %v255
    %2520 = vmatprep.subr.mxu0 %v258
    %2521 = vmatpush1.msra.mxu0 %v257
    %2522 = vmatprep.subr.mxu0 %v260
    %2523 = vmatpush1.msra.mxu0 %v259
    %2524 = vmatprep.subr.mxu0 %v262
    %2525 = vmatpush1.msra.mxu0 %v261
    %2526 = vmatprep.subr.mxu0 %v264
    %2527 = vmatpush1.msra.mxu0 %v263
    %2528 = vmatprep.subr.mxu0 %v266
    %2529 = vmatpush1.msra.mxu0 %v265
    %2530 = vmatprep.subr.mxu0 %v268
    %2531 = vmatpush1.msra.mxu0 %v267
    %2532 = vmatprep.mubr.f32.mxu0 %v2396
    %2533 = vmatmul.mubr.f32.gmra.mrb[0].mxu0 %v2395
    %v2534 = vpop.f32.mrb[0].mxu0
    %v2535 = vadd.f32 %v2464, %v2534
    %v2536 = vpop.f32.mrb[0].mxu0
    %v2537 = vadd.f32 %v2466, %v2536
    %2538 = vdwg.mxu0
    %v2539 = vadd.f32 %v2242, %v2535
    %v2548 = vrot.slane %v2244, 7
    %v2549 = vsel %vm610, %v2548, %v2243
    %v2550 = vrot.slane %v2245, 6
    %v2551 = vsel %vm613, %v2550, %v2549
    %v2552 = vrot.slane %v2246, 5
    %v2553 = vsel %vm616, %v2552, %v2551
    %v2554 = vrot.slane %v2247, 4
    %v2555 = vsel %vm619, %v2554, %v2553
    %v2556 = vrot.slane %v2248, 3
    %v2557 = vsel %vm622, %v2556, %v2555
    %v2558 = vrot.slane %v2249, 2
    %v2559 = vsel %vm625, %v2558, %v2557
    %v2560 = vrot.slane %v2250, 1
    %v2561 = vsel %vm628, %v2560, %v2559
    %v2563 = vmul.f32 %v2537, %v2561
    %v2564 = vadd.f32 %v2539, %v2563
    %v2565 = vld [vmem:[#allocation5 + $0x7] sm:$0x1]
    %v2566 = vld [vmem:[#allocation5 + $0xf] sm:$0x1]
    %v2567 = vld [vmem:[#allocation5 + $0x17] sm:$0x1]
    %v2568 = vld [vmem:[#allocation5 + $0x1f] sm:$0x1]
    %v2569 = vld [vmem:[#allocation5 + $0x27] sm:$0x1]
    %v2570 = vld [vmem:[#allocation5 + $0x2f] sm:$0x1]
    %v2571 = vld [vmem:[#allocation5 + $0x37] sm:$0x1]
    %v2572 = vld [vmem:[#allocation5 + $0x3f] sm:$0x1]
    %2573 = vmatprep.subr.mxu0 %v78
    %2574 = vmatpush1.msra.mxu0 %v77
    %2575 = vmatprep.subr.mxu0 %v82
    %2576 = vmatpush1.msra.mxu0 %v81
    %2577 = vmatprep.subr.mxu0 %v86
    %2578 = vmatpush1.msra.mxu0 %v85
    %2579 = vmatprep.subr.mxu0 %v90
    %2580 = vmatpush1.msra.mxu0 %v89
    %2581 = vmatprep.subr.mxu0 %v94
    %2582 = vmatpush1.msra.mxu0 %v93
    %2583 = vmatprep.subr.mxu0 %v98
    %2584 = vmatpush1.msra.mxu0 %v97
    %2585 = vmatprep.subr.mxu0 %v102
    %2586 = vmatpush1.msra.mxu0 %v101
    %2587 = vmatprep.subr.mxu0 %v106
    %2588 = vmatpush1.msra.mxu0 %v105
    %2589 = vmatprep.subr.mxu0 %v110
    %2590 = vmatpush1.msra.mxu0 %v109
    %2591 = vmatprep.subr.mxu0 %v114
    %2592 = vmatpush1.msra.mxu0 %v113
    %2593 = vmatprep.subr.mxu0 %v118
    %2594 = vmatpush1.msra.mxu0 %v117
    %2595 = vmatprep.subr.mxu0 %v122
    %2596 = vmatpush1.msra.mxu0 %v121
    %2597 = vmatprep.subr.mxu0 %v126
    %2598 = vmatpush1.msra.mxu0 %v125
    %2599 = vmatprep.subr.mxu0 %v130
    %2600 = vmatpush1.msra.mxu0 %v129
    %2601 = vmatprep.subr.mxu0 %v134
    %2602 = vmatpush1.msra.mxu0 %v133
    %2603 = vmatprep.subr.mxu0 %v138
    %2604 = vmatpush1.msra.mxu0 %v137
    %2605 = vmatprep.subr.mxu0 0.0
    %2606 = vmatpush1.msra.mxu0 0.0
    %2607 = vmatprep.subr.mxu0 0.0
    %2608 = vmatpush1.msra.mxu0 0.0
    %2609 = vmatprep.subr.mxu0 0.0
    %2610 = vmatpush1.msra.mxu0 0.0
    %2611 = vmatprep.subr.mxu0 0.0
    %2612 = vmatpush1.msra.mxu0 0.0
    %2613 = vmatprep.subr.mxu0 0.0
    %2614 = vmatpush1.msra.mxu0 0.0
    %2615 = vmatprep.subr.mxu0 0.0
    %2616 = vmatpush1.msra.mxu0 0.0
    %2617 = vmatprep.subr.mxu0 0.0
    %2618 = vmatpush1.msra.mxu0 0.0
    %2619 = vmatprep.subr.mxu0 0.0
    %2620 = vmatpush1.msra.mxu0 0.0
    %2621 = vmatprep.subr.mxu0 0.0
    %2622 = vmatpush1.msra.mxu0 0.0
    %2623 = vmatprep.subr.mxu0 0.0
    %2624 = vmatpush1.msra.mxu0 0.0
    %2625 = vmatprep.subr.mxu0 0.0
    %2626 = vmatpush1.msra.mxu0 0.0
    %2627 = vmatprep.subr.mxu0 0.0
    %2628 = vmatpush1.msra.mxu0 0.0
    %2629 = vmatprep.subr.mxu0 0.0
    %2630 = vmatpush1.msra.mxu0 0.0
    %2631 = vmatprep.subr.mxu0 0.0
    %2632 = vmatpush1.msra.mxu0 0.0
    %2633 = vmatprep.subr.mxu0 0.0
    %2634 = vmatpush1.msra.mxu0 0.0
    %2635 = vmatprep.subr.mxu0 0.0
    %2636 = vmatpush1.msra.mxu0 0.0
    %2637 = vmatprep.mubr.f32.mxu0 0.0
    %2638 = vmatmul.mubr.f32.gmra.mrb[0].mxu0 %v2564
    %v2639 = vpop.f32.mrb[0].mxu0
    %v2640 = vadd.f32 %v274, %v2639
    %v2641 = vpop.f32.mrb[0].mxu0
    %v2642 = vadd.f32 %v278, %v2641
    %2643 = vdwg.mxu0
    %2644 = vmatprep.subr.mxu0 %v80
    %2645 = vmatpush1.msra.mxu0 %v79
    %2646 = vmatprep.subr.mxu0 %v84
    %2647 = vmatpush1.msra.mxu0 %v83
    %2648 = vmatprep.subr.mxu0 %v88
    %2649 = vmatpush1.msra.mxu0 %v87
    %2650 = vmatprep.subr.mxu0 %v92
    %2651 = vmatpush1.msra.mxu0 %v91
    %2652 = vmatprep.subr.mxu0 %v96
    %2653 = vmatpush1.msra.mxu0 %v95
    %2654 = vmatprep.subr.mxu0 %v100
    %2655 = vmatpush1.msra.mxu0 %v99
    %2656 = vmatprep.subr.mxu0 %v104
    %2657 = vmatpush1.msra.mxu0 %v103
    %2658 = vmatprep.subr.mxu0 %v108
    %2659 = vmatpush1.msra.mxu0 %v107
    %2660 = vmatprep.subr.mxu0 %v112
    %2661 = vmatpush1.msra.mxu0 %v111
    %2662 = vmatprep.subr.mxu0 %v116
    %2663 = vmatpush1.msra.mxu0 %v115
    %2664 = vmatprep.subr.mxu0 %v120
    %2665 = vmatpush1.msra.mxu0 %v119
    %2666 = vmatprep.subr.mxu0 %v124
    %2667 = vmatpush1.msra.mxu0 %v123
    %2668 = vmatprep.subr.mxu0 %v128
    %2669 = vmatpush1.msra.mxu0 %v127
    %2670 = vmatprep.subr.mxu0 %v132
    %2671 = vmatpush1.msra.mxu0 %v131
    %2672 = vmatprep.subr.mxu0 %v136
    %2673 = vmatpush1.msra.mxu0 %v135
    %2674 = vmatprep.subr.mxu0 %v140
    %2675 = vmatpush1.msra.mxu0 %v139
    %2676 = vmatprep.subr.mxu0 0.0
    %2677 = vmatpush1.msra.mxu0 0.0
    %2678 = vmatprep.subr.mxu0 0.0
    %2679 = vmatpush1.msra.mxu0 0.0
    %2680 = vmatprep.subr.mxu0 0.0
    %2681 = vmatpush1.msra.mxu0 0.0
    %2682 = vmatprep.subr.mxu0 0.0
    %2683 = vmatpush1.msra.mxu0 0.0
    %2684 = vmatprep.subr.mxu0 0.0
    %2685 = vmatpush1.msra.mxu0 0.0
    %2686 = vmatprep.subr.mxu0 0.0
    %2687 = vmatpush1.msra.mxu0 0.0
    %2688 = vmatprep.subr.mxu0 0.0
    %2689 = vmatpush1.msra.mxu0 0.0
    %2690 = vmatprep.subr.mxu0 0.0
    %2691 = vmatpush1.msra.mxu0 0.0
    %2692 = vmatprep.subr.mxu0 0.0
    %2693 = vmatpush1.msra.mxu0 0.0
    %2694 = vmatprep.subr.mxu0 0.0
    %2695 = vmatpush1.msra.mxu0 0.0
    %2696 = vmatprep.subr.mxu0 0.0
    %2697 = vmatpush1.msra.mxu0 0.0
    %2698 = vmatprep.subr.mxu0 0.0
    %2699 = vmatpush1.msra.mxu0 0.0
    %2700 = vmatprep.subr.mxu0 0.0
    %2701 = vmatpush1.msra.mxu0 0.0
    %2702 = vmatprep.subr.mxu0 0.0
    %2703 = vmatpush1.msra.mxu0 0.0
    %2704 = vmatprep.subr.mxu0 0.0
    %2705 = vmatpush1.msra.mxu0 0.0
    %2706 = vmatprep.subr.mxu0 0.0
    %2707 = vmatpush1.msra.mxu0 0.0
    %2708 = vmatprep.mubr.f32.mxu0 0.0
    %2709 = vmatmul.mubr.f32.gmra.mrb[0].mxu0 %v2564
    %v2710 = vpop.f32.mrb[0].mxu0
    %v2711 = vadd.f32 %v282, %v2710
    %v2712 = vpop.f32.mrb[0].mxu0
    %v2713 = vadd.f32 %v286, %v2712
    %2714 = vdwg.mxu0
    %v2715 = vtanh.pop %v2640
    %v2716 = vtanh.pop %v2642
    %v2717 = vtanh.pop %v2711
    %v2718 = vtanh.pop %v2713
    %2719 = vmatprep.subr.mxu0 %v142
    %2720 = vmatpush1.msra.mxu0 %v141
    %2721 = vmatprep.subr.mxu0 %v144
    %2722 = vmatpush1.msra.mxu0 %v143
    %2723 = vmatprep.subr.mxu0 %v146
    %2724 = vmatpush1.msra.mxu0 %v145
    %2725 = vmatprep.subr.mxu0 %v148
    %2726 = vmatpush1.msra.mxu0 %v147
    %2727 = vmatprep.subr.mxu0 %v150
    %2728 = vmatpush1.msra.mxu0 %v149
    %2729 = vmatprep.subr.mxu0 %v152
    %2730 = vmatpush1.msra.mxu0 %v151
    %2731 = vmatprep.subr.mxu0 %v154
    %2732 = vmatpush1.msra.mxu0 %v153
    %2733 = vmatprep.subr.mxu0 %v156
    %2734 = vmatpush1.msra.mxu0 %v155
    %2735 = vmatprep.subr.mxu0 %v158
    %2736 = vmatpush1.msra.mxu0 %v157
    %2737 = vmatprep.subr.mxu0 %v160
    %2738 = vmatpush1.msra.mxu0 %v159
    %2739 = vmatprep.subr.mxu0 %v162
    %2740 = vmatpush1.msra.mxu0 %v161
    %2741 = vmatprep.subr.mxu0 %v164
    %2742 = vmatpush1.msra.mxu0 %v163
    %2743 = vmatprep.subr.mxu0 %v166
    %2744 = vmatpush1.msra.mxu0 %v165
    %2745 = vmatprep.subr.mxu0 %v168
    %2746 = vmatpush1.msra.mxu0 %v167
    %2747 = vmatprep.subr.mxu0 %v170
    %2748 = vmatpush1.msra.mxu0 %v169
    %2749 = vmatprep.subr.mxu0 %v172
    %2750 = vmatpush1.msra.mxu0 %v171
    %2751 = vmatprep.subr.mxu0 %v174
    %2752 = vmatpush1.msra.mxu0 %v173
    %2753 = vmatprep.subr.mxu0 %v176
    %2754 = vmatpush1.msra.mxu0 %v175
    %2755 = vmatprep.subr.mxu0 %v178
    %2756 = vmatpush1.msra.mxu0 %v177
    %2757 = vmatprep.subr.mxu0 %v180
    %2758 = vmatpush1.msra.mxu0 %v179
    %2759 = vmatprep.subr.mxu0 %v182
    %2760 = vmatpush1.msra.mxu0 %v181
    %2761 = vmatprep.subr.mxu0 %v184
    %2762 = vmatpush1.msra.mxu0 %v183
    %2763 = vmatprep.subr.mxu0 %v186
    %2764 = vmatpush1.msra.mxu0 %v185
    %2765 = vmatprep.subr.mxu0 %v188
    %2766 = vmatpush1.msra.mxu0 %v187
    %2767 = vmatprep.subr.mxu0 %v190
    %2768 = vmatpush1.msra.mxu0 %v189
    %2769 = vmatprep.subr.mxu0 %v192
    %2770 = vmatpush1.msra.mxu0 %v191
    %2771 = vmatprep.subr.mxu0 %v194
    %2772 = vmatpush1.msra.mxu0 %v193
    %2773 = vmatprep.subr.mxu0 %v196
    %2774 = vmatpush1.msra.mxu0 %v195
    %2775 = vmatprep.subr.mxu0 %v198
    %2776 = vmatpush1.msra.mxu0 %v197
    %2777 = vmatprep.subr.mxu0 %v200
    %2778 = vmatpush1.msra.mxu0 %v199
    %2779 = vmatprep.subr.mxu0 %v202
    %2780 = vmatpush1.msra.mxu0 %v201
    %2781 = vmatprep.subr.mxu0 %v204
    %2782 = vmatpush1.msra.mxu0 %v203
    %2783 = vmatprep.mubr.f32.mxu0 %v2716
    %2784 = vmatmul.mubr.f32.gmra.mrb[0].mxu0 %v2715
    %v2785 = vpop.f32.mrb[0].mxu0
    %v2786 = vadd.f32 %v296, %v2785
    %v2787 = vpop.f32.mrb[0].mxu0
    %v2788 = vadd.f32 %v300, %v2787
    %2789 = vdwg.mxu0
    %2790 = vmatprep.subr.mxu0 %v206
    %2791 = vmatpush1.msra.mxu0 %v205
    %2792 = vmatprep.subr.mxu0 %v208
    %2793 = vmatpush1.msra.mxu0 %v207
    %2794 = vmatprep.subr.mxu0 %v210
    %2795 = vmatpush1.msra.mxu0 %v209
    %2796 = vmatprep.subr.mxu0 %v212
    %2797 = vmatpush1.msra.mxu0 %v211
    %2798 = vmatprep.subr.mxu0 %v214
    %2799 = vmatpush1.msra.mxu0 %v213
    %2800 = vmatprep.subr.mxu0 %v216
    %2801 = vmatpush1.msra.mxu0 %v215
    %2802 = vmatprep.subr.mxu0 %v218
    %2803 = vmatpush1.msra.mxu0 %v217
    %2804 = vmatprep.subr.mxu0 %v220
    %2805 = vmatpush1.msra.mxu0 %v219
    %2806 = vmatprep.subr.mxu0 %v222
    %2807 = vmatpush1.msra.mxu0 %v221
    %2808 = vmatprep.subr.mxu0 %v224
    %2809 = vmatpush1.msra.mxu0 %v223
    %2810 = vmatprep.subr.mxu0 %v226
    %2811 = vmatpush1.msra.mxu0 %v225
    %2812 = vmatprep.subr.mxu0 %v228
    %2813 = vmatpush1.msra.mxu0 %v227
    %2814 = vmatprep.subr.mxu0 %v230
    %2815 = vmatpush1.msra.mxu0 %v229
    %2816 = vmatprep.subr.mxu0 %v232
    %2817 = vmatpush1.msra.mxu0 %v231
    %2818 = vmatprep.subr.mxu0 %v234
    %2819 = vmatpush1.msra.mxu0 %v233
    %2820 = vmatprep.subr.mxu0 %v236
    %2821 = vmatpush1.msra.mxu0 %v235
    %2822 = vmatprep.subr.mxu0 %v238
    %2823 = vmatpush1.msra.mxu0 %v237
    %2824 = vmatprep.subr.mxu0 %v240
    %2825 = vmatpush1.msra.mxu0 %v239
    %2826 = vmatprep.subr.mxu0 %v242
    %2827 = vmatpush1.msra.mxu0 %v241
    %2828 = vmatprep.subr.mxu0 %v244
    %2829 = vmatpush1.msra.mxu0 %v243
    %2830 = vmatprep.subr.mxu0 %v246
    %2831 = vmatpush1.msra.mxu0 %v245
    %2832 = vmatprep.subr.mxu0 %v248
    %2833 = vmatpush1.msra.mxu0 %v247
    %2834 = vmatprep.subr.mxu0 %v250
    %2835 = vmatpush1.msra.mxu0 %v249
    %2836 = vmatprep.subr.mxu0 %v252
    %2837 = vmatpush1.msra.mxu0 %v251
    %2838 = vmatprep.subr.mxu0 %v254
    %2839 = vmatpush1.msra.mxu0 %v253
    %2840 = vmatprep.subr.mxu0 %v256
    %2841 = vmatpush1.msra.mxu0 %v255
    %2842 = vmatprep.subr.mxu0 %v258
    %2843 = vmatpush1.msra.mxu0 %v257
    %2844 = vmatprep.subr.mxu0 %v260
    %2845 = vmatpush1.msra.mxu0 %v259
    %2846 = vmatprep.subr.mxu0 %v262
    %2847 = vmatpush1.msra.mxu0 %v261
    %2848 = vmatprep.subr.mxu0 %v264
    %2849 = vmatpush1.msra.mxu0 %v263
    %2850 = vmatprep.subr.mxu0 %v266
    %2851 = vmatpush1.msra.mxu0 %v265
    %2852 = vmatprep.subr.mxu0 %v268
    %2853 = vmatpush1.msra.mxu0 %v267
    %2854 = vmatprep.mubr.f32.mxu0 %v2718
    %2855 = vmatmul.mubr.f32.gmra.mrb[0].mxu0 %v2717
    %v2856 = vpop.f32.mrb[0].mxu0
    %v2857 = vadd.f32 %v2786, %v2856
    %v2858 = vpop.f32.mrb[0].mxu0
    %v2859 = vadd.f32 %v2788, %v2858
    %2860 = vdwg.mxu0
    %v2861 = vadd.f32 %v2564, %v2857
    %v2870 = vrot.slane %v2566, 7
    %v2871 = vsel %vm610, %v2870, %v2565
    %v2872 = vrot.slane %v2567, 6
    %v2873 = vsel %vm613, %v2872, %v2871
    %v2874 = vrot.slane %v2568, 5
    %v2875 = vsel %vm616, %v2874, %v2873
    %v2876 = vrot.slane %v2569, 4
    %v2877 = vsel %vm619, %v2876, %v2875
    %v2878 = vrot.slane %v2570, 3
    %v2879 = vsel %vm622, %v2878, %v2877
    %v2880 = vrot.slane %v2571, 2
    %v2881 = vsel %vm625, %v2880, %v2879
    %v2882 = vrot.slane %v2572, 1
    %v2883 = vsel %vm628, %v2882, %v2881
    %v2885 = vmul.f32 %v2859, %v2883
    %v2886 = vadd.f32 %v2861, %v2885
    %2887 = vst [vmem:[#allocation10] sm:$0xff] %v2886
    // Predicated region
    $region42: #{tpu_custom_call.1} parent=1 // pred_check
      _
    $region43: #{tpu_custom_call.1} parent=1 // pred_check_branch
      %2889 = sbr.rel (0) target = $region45
    $region44: #{tpu_custom_call.1} parent=1 // pred_region
      %s2891 = ssub.s32 128, 128
      %2892 = vsyncadd [#allocation4], %s2891
      %s2894 = sshll.u32 [#allocation10], 4
      %s2895 = int_to_ptr.vmem [resolvable:$true] %s2894
      %2897 = dma.vmem_to_hbm [thread:$0]  %s2895, 128, %s6, [#allocation4]
    $region45: #{tpu_custom_call.1} parent=1 // pred_fallthru
      _
    // Predicated region
    $region46: #{tpu_custom_call.1} parent=1 // pred_check
      _
    $region47: #{tpu_custom_call.1} parent=1 // pred_check_branch
      %2899 = sbr.rel (0) target = $region49
    $region48: #{tpu_custom_call.1} parent=1 // pred_region
      %2900 = dma.done [#allocation4], 128
    $region49: #{tpu_custom_call.1} parent=1 // pred_fallthru
      _
    %2901 = vsyncpa [#allocation3], 1
    %2902 = vsyncpa [#allocation6], 1
    %2903 = vsyncpa [#allocation9], 1
    %2904 = vsyncpa [#allocation4], 1

</llo_original>
